<compile_context>
chip_gen: v7x
topology: tpu7x:2x2x1
jax: 0.10.0
libtpu: 0.0.40
codegen_flags: <defaults>
</compile_context>

<pallas_src>
import jax
import jax.numpy as jnp
from jax.experimental import pallas as pl
from jax.experimental.pallas import tpu as pltpu

IN_FEATURES = 495  # fixed by nn.Linear(495, embedding_size) in the module


def _sigmoid(x):
    return 1.0 / (1.0 + jnp.exp(-x))


def _round_up(x, m):
    return ((x + m - 1) // m) * m


def _mirna_embedding_kernel(x_ref, w_ref, b_ref, cross_ref, out_ref):
    """One row-tile: out = sigmoid(concat([x @ W^T + b, cross], axis=1)).

    x_ref:     [TILE_N, 495]    (f32 or bf16)  row tile of m_features
    w_ref:     [495, E]         (f32 or bf16)  resident across the grid
    b_ref:     [1, E]           (f32)          resident across the grid
    cross_ref: [TILE_N, C]      (f32 or bf16)  row tile of crossfeatures
    out_ref:   [TILE_N, E + C]  (f32)
    """
    e = w_ref.shape[1]
    c = cross_ref.shape[1]

    # MXU matmul, f32 accumulate. HIGHEST precision only matters for f32
    # inputs (bf16 inputs are exact in a single MXU pass).
    prec = jax.lax.Precision.HIGHEST if x_ref.dtype == jnp.float32 else None
    lin = jnp.dot(
        x_ref[...],
        w_ref[...],
        preferred_element_type=jnp.float32,
        precision=prec,
    )
    lin = lin + b_ref[...]  # broadcast [1, E] over the row tile
    # TODO(synk): nn.Dropout implemented as identity (eval-mode inference);
    # training-mode dropout would need pltpu.prng_seed/prng_random_bits.

    out_ref[:, 0:e] = _sigmoid(lin)
    out_ref[:, e:e + c] = _sigmoid(cross_ref[...].astype(jnp.float32))


def mirna_embedding_forward(m_features, weight, bias, crossfeatures,
                            *, tile_n=1024, cast_to_bf16=False):
    """sigmoid(concat([m_features @ weight.T + bias, crossfeatures], axis=1)).

    m_features:    [N, 495]   float32
    weight:        [E, 495]   float32 (PyTorch nn.Linear layout)
    bias:          [E]        float32
    crossfeatures: [N, C]     float32
    returns:       [N, E + C] float32
    """
    n, in_f = m_features.shape
    e, in_f2 = weight.shape
    assert in_f2 == in_f
    n2, c = crossfeatures.shape
    assert n2 == n
    assert bias.shape == (e,)

    w_t = weight.T                              # [495, E]; x @ W.T == x @ w_t
    b2d = bias.reshape(1, e).astype(jnp.float32)

    if cast_to_bf16:
        # HBM-bandwidth-bound op: halve input bytes; compute stays f32.
        m_features = m_features.astype(jnp.bfloat16)
        w_t = w_t.astype(jnp.bfloat16)
        crossfeatures = crossfeatures.astype(jnp.bfloat16)

    # Row tile: multiple of 8 sublanes; cap so small problems use one step.
    tile_n = max(8, min(tile_n, _round_up(n, 8)))
    tile_n = _round_up(tile_n, 8)
    grid = (pl.cdiv(n, tile_n),)

    in_bytes = jnp.dtype(m_features.dtype).itemsize
    cost = pl.CostEstimate(
        flops=2 * n * in_f * e + 4 * n * (e + c),
        transcendentals=n * (e + c),
        bytes_accessed=(n * in_f + n * c) * in_bytes
        + in_f * e * jnp.dtype(w_t.dtype).itemsize
        + e * 4
        + n * (e + c) * 4,
    )

    return pl.pallas_call(
        _mirna_embedding_kernel,
        out_shape=jax.ShapeDtypeStruct((n, e + c), jnp.float32),
        grid_spec=pltpu.PrefetchScalarGridSpec(
            num_scalar_prefetch=0,
            grid=grid,
            in_specs=[
                pl.BlockSpec((tile_n, in_f), lambda i: (i, 0)),  # m_features tile
                pl.BlockSpec((in_f, e), lambda i: (0, 0)),       # W^T resident
                pl.BlockSpec((1, e), lambda i: (0, 0)),          # bias resident
                pl.BlockSpec((tile_n, c), lambda i: (i, 0)),     # crossfeatures tile
            ],
            out_specs=pl.BlockSpec((tile_n, e + c), lambda i: (i, 0)),
        ),
        compiler_params=pltpu.CompilerParams(
            dimension_semantics=("parallel",),  # independent row tiles (megacore on v7x)
        ),
        cost_estimate=cost,
    )(m_features, w_t, b2d, crossfeatures)


def reference_forward(m_features, weight, bias, crossfeatures):
    rep = jnp.dot(m_features, weight.T,
                  precision=jax.lax.Precision.HIGHEST) + bias
    a = jnp.concatenate([rep, crossfeatures], axis=1)
    return _sigmoid(a)


if __name__ == "__main__":
    key = jax.random.PRNGKey(0)
    k_x, k_w, k_b, k_c = jax.random.split(key, 4)

    N = 512   # number of miRNA nodes (small test size)
    E = 64    # embedding_size
    C = 64    # crossfeatures width

    m_features = jax.random.normal(k_x, (N, IN_FEATURES), dtype=jnp.float32)
    crossfeatures = jax.random.normal(k_c, (N, C), dtype=jnp.float32)

    # nn.Linear(495, E)-style parameters (deterministic test data).
    bound = 1.0 / (IN_FEATURES ** 0.5)
    weight = jax.random.uniform(k_w, (E, IN_FEATURES), dtype=jnp.float32,
                                minval=-bound, maxval=bound)
    bias = jax.random.uniform(k_b, (E,), dtype=jnp.float32,
                              minval=-bound, maxval=bound)

    # f32 path — tile_n=128 exercises a 4-step pipelined grid at this small N.
    out = mirna_embedding_forward(m_features, weight, bias, crossfeatures,
                                  tile_n=128)
    out = jax.block_until_ready(out)
    ref = reference_forward(m_features, weight, bias, crossfeatures)
    assert out.shape == (N, E + C)
    assert jnp.allclose(out, ref, atol=1e-5, rtol=1e-5), "f32 mismatch vs reference"

    # bf16-input path (halves HBM traffic; f32 accumulate/sigmoid in kernel).
    out_bf16 = mirna_embedding_forward(m_features, weight, bias, crossfeatures,
                                       tile_n=128, cast_to_bf16=True)
    out_bf16 = jax.block_until_ready(out_bf16)
    ref_bf16 = reference_forward(
        m_features.astype(jnp.bfloat16).astype(jnp.float32),
        weight.astype(jnp.bfloat16).astype(jnp.float32),
        bias,
        crossfeatures.astype(jnp.bfloat16).astype(jnp.float32),
    )
    assert jnp.allclose(out_bf16, ref_bf16, atol=1e-3, rtol=1e-3), \
        "bf16 mismatch vs reference"

    print("KERNEL_OK")
</pallas_src>

<mosaic_0001>
module attributes {stable_mosaic.version = 11 : i64} {
  func.func @_mirna_embedding_kernel(%arg0: i32, %arg1: memref<128x495xf32, #tpu.memory_space<vmem>>, %arg2: memref<495x64xf32, #tpu.memory_space<vmem>>, %arg3: memref<1x64xf32, #tpu.memory_space<vmem>>, %arg4: memref<128x64xf32, #tpu.memory_space<vmem>>, %arg5: memref<128x128xf32, #tpu.memory_space<vmem>>) attributes {dimension_semantics = [#tpu.dimension_semantics<parallel>], iteration_bounds = array<i64: 4>, scalar_prefetch = 0 : i64, scratch_operands = 0 : i64, tpu.core_type = #tpu.core_type<tc>, window_params = [{transform_indices = @transform_0, window_bounds = array<i64: 128, 495>}, {pipeline_mode = #tpu.pipeline_mode<synchronous>, transform_indices = @transform_1, window_bounds = array<i64: 495, 64>}, {pipeline_mode = #tpu.pipeline_mode<synchronous>, transform_indices = @transform_2, window_bounds = array<i64: 1, 64>}, {transform_indices = @transform_3, window_bounds = array<i64: 128, 64>}, {transform_indices = @transform_4, window_bounds = array<i64: 128, 128>}]} {
    %c0 = arith.constant 0 : index
    %c0_0 = arith.constant 0 : index
    %0 = vector.load %arg1[%c0, %c0_0] : memref<128x495xf32, #tpu.memory_space<vmem>>, vector<128x495xf32>
    %c0_1 = arith.constant 0 : index
    %c0_2 = arith.constant 0 : index
    %1 = vector.load %arg2[%c0_1, %c0_2] : memref<495x64xf32, #tpu.memory_space<vmem>>, vector<495x64xf32>
    %cst = arith.constant dense<0.000000e+00> : vector<128x64xf32>
    %2 = tpu.matmul %0, %1, %cst {dimension_numbers = #tpu.dot_dimension_numbers<[1], [0], [0], [1], [0, 0, 1, 1], [], []>, precision = #tpu.contract_precision<fp32>} : vector<128x495xf32>, vector<495x64xf32>, vector<128x64xf32> -> vector<128x64xf32>
    %c0_3 = arith.constant 0 : index
    %c0_4 = arith.constant 0 : index
    %3 = vector.load %arg3[%c0_3, %c0_4] : memref<1x64xf32, #tpu.memory_space<vmem>>, vector<1x64xf32>
    %4 = vector.broadcast %3 : vector<1x64xf32> to vector<128x64xf32>
    %5 = arith.addf %2, %4 : vector<128x64xf32>
    %cst_5 = arith.constant 0.000000e+00 : f32
    %6 = vector.broadcast %cst_5 : f32 to vector<128x64xf32>
    %7 = arith.subf %6, %5 : vector<128x64xf32>
    %8 = math.exp %7 : vector<128x64xf32>
    %cst_6 = arith.constant 1.000000e+00 : f32
    %9 = vector.broadcast %cst_6 : f32 to vector<128x64xf32>
    %10 = arith.addf %9, %8 : vector<128x64xf32>
    %cst_7 = arith.constant 1.000000e+00 : f32
    %11 = vector.broadcast %cst_7 : f32 to vector<128x64xf32>
    %12 = arith.divf %11, %10 : vector<128x64xf32>
    %c0_8 = arith.constant 0 : index
    %c0_9 = arith.constant 0 : index
    %13 = vector.load %arg5[%c0_8, %c0_9] : memref<128x128xf32, #tpu.memory_space<vmem>>, vector<128x64xf32>
    tpu.vector_store %arg5[%c0_8, %c0_9], %12 {strides = array<i32>} : memref<128x128xf32, #tpu.memory_space<vmem>>, vector<128x64xf32>,
    %c0_10 = arith.constant 0 : index
    %c0_11 = arith.constant 0 : index
    %14 = vector.load %arg4[%c0_10, %c0_11] : memref<128x64xf32, #tpu.memory_space<vmem>>, vector<128x64xf32>
    %cst_12 = arith.constant 0.000000e+00 : f32
    %15 = vector.broadcast %cst_12 : f32 to vector<128x64xf32>
    %16 = arith.subf %15, %14 : vector<128x64xf32>
    %17 = math.exp %16 : vector<128x64xf32>
    %cst_13 = arith.constant 1.000000e+00 : f32
    %18 = vector.broadcast %cst_13 : f32 to vector<128x64xf32>
    %19 = arith.addf %18, %17 : vector<128x64xf32>
    %cst_14 = arith.constant 1.000000e+00 : f32
    %20 = vector.broadcast %cst_14 : f32 to vector<128x64xf32>
    %21 = arith.divf %20, %19 : vector<128x64xf32>
    %c0_15 = arith.constant 0 : index
    %c64 = arith.constant 64 : index
    %22 = vector.load %arg5[%c0_15, %c64] : memref<128x128xf32, #tpu.memory_space<vmem>>, vector<128x64xf32>
    tpu.vector_store %arg5[%c0_15, %c64], %21 {strides = array<i32>} : memref<128x128xf32, #tpu.memory_space<vmem>>, vector<128x64xf32>,
    return
  }
  func.func @transform_0(%arg0: i32) -> (i32, i32) {
    %c0_i32 = arith.constant 0 : i32
    %c0_i32_0 = arith.constant 0 : i32
    return %arg0, %c0_i32 : i32, i32
  }
  func.func @transform_1(%arg0: i32) -> (i32, i32) {
    %c0_i32 = arith.constant 0 : i32
    %c0_i32_0 = arith.constant 0 : i32
    %c0_i32_1 = arith.constant 0 : i32
    return %c0_i32, %c0_i32_0 : i32, i32
  }
  func.func @transform_2(%arg0: i32) -> (i32, i32) {
    %c0_i32 = arith.constant 0 : i32
    %c0_i32_0 = arith.constant 0 : i32
    %c0_i32_1 = arith.constant 0 : i32
    return %c0_i32, %c0_i32_0 : i32, i32
  }
  func.func @transform_3(%arg0: i32) -> (i32, i32) {
    %c0_i32 = arith.constant 0 : i32
    %c0_i32_0 = arith.constant 0 : i32
    return %arg0, %c0_i32 : i32, i32
  }
  func.func @transform_4(%arg0: i32) -> (i32, i32) {
    %c0_i32 = arith.constant 0 : i32
    %c0_i32_0 = arith.constant 0 : i32
    return %arg0, %c0_i32 : i32, i32
  }
}

</mosaic_0001>

<llo_original>
// kernel: tpu_custom_call.1
$region0: #{tpu_custom_call.1}
  #allocation0 [shape = 'u32[]', space=smem, size = 0x4, offset = 0x4, fixed_abs, tag = 'smem constant byte address 0x4 - core index']
  #allocation1 [shape = 'u32[144,128]{1,0:T(1,128)}', space=vmem, size = 0x12000, scoped, tag = 'internal scratch']
  %s0 = inlined_call_operand.vmem [shape: f32[512,495], index: 0, kind: input, shape index: {}]
  %s1 = inlined_call_operand.vmem [shape: f32[495,64], index: 1, kind: input, shape index: {}]
  %s2 = inlined_call_operand.vmem [shape: f32[1,64], index: 2, kind: input, shape index: {}]
  %s3 = inlined_call_operand.vmem [shape: f32[512,64], index: 3, kind: input, shape index: {}]
  %s4 = inlined_call_operand.hbm [shape: f32[512,128], index: 4, kind: output, shape index: {}]
  %s5 = sld [smem:[#allocation0]]
  $region49: #{tpu_custom_call.1} parent=0
    _
  %s7 = ssub.s32 1, %s5
  %s8 = scalar_select 0, %s7, %s5
  $region1: #{tpu_custom_call.1} parent=0
    #allocation2 [shape = 'u8[131072]{0}', space=vmem, size = 0x20000, scoped, tag = 'output window, operand 0']
    #allocation3 [shape = 's32[2]{0}', space=sflag, size = 0x8, scoped, tag = 'scoped memory for tpu_custom_call.1']
    %9 = vsyncpa [#allocation3], 0
    %s10 = scalar_lea.sflag [#allocation3], 1
    %11 = vsyncpa %s10, 0
    loop: start=0, step=1, limit=6
    $region2: #{tpu_custom_call.1} parent=1 // loop_pre_header
      _
    $region3: #{tpu_custom_call.1} parent=1 // loop_header
      %s13 = sphi 0, %s17
      %p14 = scmp.ge.s32.totalorder %s13, 6
      %s23 = sphi 0, %s25
      %s26 = sphi 0, %s23
      %s27 = sphi 0, %s26
      %s43 = sphi 0, %s27
      %s47 = sphi 0, %s47
      %s49 = sphi 0, %s47
      %s50 = sphi 0, %s49
      %s64 = sphi 0, %s50
      %s68 = sphi 0, %s68
      %s70 = sphi 0, %s68
      %s71 = sphi 0, %s70
      %s85 = sphi 0, %s71
      %s91 = sphi 0, %s93
      %s94 = sphi 0, %s91
      %s95 = sphi 0, %s94
      %s111 = sphi 0, %s95
      %s117 = sphi 0, %s119
      %s120 = sphi 0, %s117
      %s121 = sphi 0, %s120
      %s137 = sphi 0, %s121
    $region4: #{tpu_custom_call.1} parent=1 // loop_header_branch
      %16 = sbr.rel (%p14) target = $region8
    $region5: #{tpu_custom_call.1} parent=1 // loop_body
      %s18 = ssub.s32 %s13, 1
      %s19 = ssub.s32 %s13, 2
      %s20 = sadd.s32 %s13, 1
      %s21 = ssub.s32 %s13, %s20
      %p22 = scmp.eq.s32.totalorder %s21, 0
      %s24 = sadd.s32 %s23, 1
      %s25 = scalar_select %p22, %s23, %s24
      %p28 = pneg %p22
      %p29 = scmp.eq.s32.totalorder %s13, 3
      %p30 = por %p28, %p29
      %p31 = scmp.ne.s32.totalorder %s23, %s26
      %p32 = scmp.eq.s32.totalorder %s13, 0
      %p33 = por %p31, %p32
      %p34 = scmp.ne.s32.totalorder %s23, %s26
      %p35 = scmp.eq.s32.totalorder %s18, 3
      %p36 = por %p34, %p35
      %p37 = scmp.ne.s32.totalorder %s26, %s27
      %p38 = scmp.eq.s32.totalorder %s18, 0
      %p39 = por %p37, %p38
      %p40 = scmp.ne.s32.totalorder %s26, %s27
      %p41 = scmp.eq.s32.totalorder %s19, 3
      %p42 = por %p40, %p41
      %p44 = scmp.ne.s32.totalorder %s27, %s43
      %p45 = scmp.eq.s32.totalorder %s19, 0
      %p46 = por %p44, %p45
      %s48 = sadd.s32 %s47, 1
      %p51 = scmp.eq.s32.totalorder %s13, 3
      %p52 = scmp.ne.s32.totalorder %s47, %s49
      %p53 = scmp.eq.s32.totalorder %s13, 0
      %p54 = por %p52, %p53
      %p55 = scmp.ne.s32.totalorder %s47, %s49
      %p56 = scmp.eq.s32.totalorder %s18, 3
      %p57 = por %p55, %p56
      %p58 = scmp.ne.s32.totalorder %s49, %s50
      %p59 = scmp.eq.s32.totalorder %s18, 0
      %p60 = por %p58, %p59
      %p61 = scmp.ne.s32.totalorder %s49, %s50
      %p62 = scmp.eq.s32.totalorder %s19, 3
      %p63 = por %p61, %p62
      %p65 = scmp.ne.s32.totalorder %s50, %s64
      %p66 = scmp.eq.s32.totalorder %s19, 0
      %p67 = por %p65, %p66
      %s69 = sadd.s32 %s68, 1
      %p72 = scmp.eq.s32.totalorder %s13, 3
      %p73 = scmp.ne.s32.totalorder %s68, %s70
      %p74 = scmp.eq.s32.totalorder %s13, 0
      %p75 = por %p73, %p74
      %p76 = scmp.ne.s32.totalorder %s68, %s70
      %p77 = scmp.eq.s32.totalorder %s18, 3
      %p78 = por %p76, %p77
      %p79 = scmp.ne.s32.totalorder %s70, %s71
      %p80 = scmp.eq.s32.totalorder %s18, 0
      %p81 = por %p79, %p80
      %p82 = scmp.ne.s32.totalorder %s70, %s71
      %p83 = scmp.eq.s32.totalorder %s19, 3
      %p84 = por %p82, %p83
      %p86 = scmp.ne.s32.totalorder %s71, %s85
      %p87 = scmp.eq.s32.totalorder %s19, 0
      %p88 = por %p86, %p87
      %s89 = ssub.s32 %s13, %s20
      %p90 = scmp.eq.s32.totalorder %s89, 0
      %s92 = sadd.s32 %s91, 1
      %s93 = scalar_select %p90, %s91, %s92
      %p96 = pneg %p90
      %p97 = scmp.eq.s32.totalorder %s13, 3
      %p98 = por %p96, %p97
      %p99 = scmp.ne.s32.totalorder %s91, %s94
      %p100 = scmp.eq.s32.totalorder %s13, 0
      %p101 = por %p99, %p100
      %p102 = scmp.ne.s32.totalorder %s91, %s94
      %p103 = scmp.eq.s32.totalorder %s18, 3
      %p104 = por %p102, %p103
      %p105 = scmp.ne.s32.totalorder %s94, %s95
      %p106 = scmp.eq.s32.totalorder %s18, 0
      %p107 = por %p105, %p106
      %p108 = scmp.ne.s32.totalorder %s94, %s95
      %p109 = scmp.eq.s32.totalorder %s19, 3
      %p110 = por %p108, %p109
      %p112 = scmp.ne.s32.totalorder %s95, %s111
      %p113 = scmp.eq.s32.totalorder %s19, 0
      %p114 = por %p112, %p113
      %s115 = ssub.s32 %s13, %s20
      %p116 = scmp.eq.s32.totalorder %s115, 0
      %s118 = sadd.s32 %s117, 1
      %s119 = scalar_select %p116, %s117, %s118
      %p122 = pneg %p116
      %p123 = scmp.eq.s32.totalorder %s13, 3
      %p124 = por %p122, %p123
      %p125 = scmp.ne.s32.totalorder %s117, %s120
      %p126 = scmp.eq.s32.totalorder %s13, 0
      %p127 = por %p125, %p126
      %p128 = scmp.ne.s32.totalorder %s117, %s120
      %p129 = scmp.eq.s32.totalorder %s18, 3
      %p130 = por %p128, %p129
      %p131 = scmp.ne.s32.totalorder %s120, %s121
      %p132 = scmp.eq.s32.totalorder %s18, 0
      %p133 = por %p131, %p132
      %p134 = scmp.ne.s32.totalorder %s120, %s121
      %p135 = scmp.eq.s32.totalorder %s19, 3
      %p136 = por %p134, %p135
      %p138 = scmp.ne.s32.totalorder %s121, %s137
      %p139 = scmp.eq.s32.totalorder %s19, 0
      %p140 = por %p138, %p139
      %p141 = scmp.le.s32.totalorder 1, %s13
      %p142 = scmp.lt.s32.totalorder %s13, 5
      %p143 = pnand %p141, %p142
      %p144 = pneg %p143
      // Predicated region
      $region9: #{tpu_custom_call.1} parent=5 // pred_check
        _
      $region10: #{tpu_custom_call.1} parent=5 // pred_check_branch
        %146 = sbr.rel (%p143) target = $region12
      $region11: #{tpu_custom_call.1} parent=5 // pred_region
        %s147 = ssub.s32 %s13, 1
        // Predicated region
        $region13: #{tpu_custom_call.1} parent=11 // pred_check
          %p148 = pneg %p60
        $region14: #{tpu_custom_call.1} parent=11 // pred_check_branch
          %150 = sbr.rel (%p148) target = $region16
        $region15: #{tpu_custom_call.1} parent=11 // pred_region
          _
        $region16: #{tpu_custom_call.1} parent=11 // pred_fallthru
          _
        // Predicated region
        $region17: #{tpu_custom_call.1} parent=11 // pred_check
          %p151 = pneg %p81
        $region18: #{tpu_custom_call.1} parent=11 // pred_check_branch
          %153 = sbr.rel (%p151) target = $region20
        $region19: #{tpu_custom_call.1} parent=11 // pred_region
          _
        $region20: #{tpu_custom_call.1} parent=11 // pred_fallthru
          _
      $region12: #{tpu_custom_call.1} parent=5 // pred_fallthru
        _
      %p154 = scmp.lt.s32.totalorder %s13, 4
      // Predicated region
      $region21: #{tpu_custom_call.1} parent=5 // pred_check
        %p155 = pneg %p154
      $region22: #{tpu_custom_call.1} parent=5 // pred_check_branch
        %157 = sbr.rel (%p155) target = $region24
      $region23: #{tpu_custom_call.1} parent=5 // pred_region
        // Predicated region
        $region25: #{tpu_custom_call.1} parent=23 // pred_check
          %p158 = pneg %p33
        $region26: #{tpu_custom_call.1} parent=23 // pred_check_branch
          %160 = sbr.rel (%p158) target = $region28
        $region27: #{tpu_custom_call.1} parent=23 // pred_region
          %s161 = smul.u32 16, %s13
          %p162 = scmp.lt.s32.totalorder %s161, 63
          %s163 = scalar_select %p162, %s161, 63
          %s164 = smul.addr %s163, 4
          %s165 = smul.addr %s164, 8
          %s166 = scalar_lea.vmem %s0, %s165
          %s167 = smul.u32 16, %s13
        $region28: #{tpu_custom_call.1} parent=23 // pred_fallthru
          _
        // Predicated region
        $region29: #{tpu_custom_call.1} parent=23 // pred_check
          %p168 = pneg %p101
        $region30: #{tpu_custom_call.1} parent=23 // pred_check_branch
          %170 = sbr.rel (%p168) target = $region32
        $region31: #{tpu_custom_call.1} parent=23 // pred_region
          %s171 = smul.u32 16, %s13
          %p172 = scmp.lt.s32.totalorder %s171, 63
          %s173 = scalar_select %p172, %s171, 63
          %s174 = smul.addr %s173, 8
          %s175 = scalar_lea.vmem %s3, %s174
          %s176 = smul.u32 16, %s13
        $region32: #{tpu_custom_call.1} parent=23 // pred_fallthru
          _
      $region24: #{tpu_custom_call.1} parent=5 // pred_fallthru
        _
      %p177 = scmp.le.s32.totalorder 1, %s13
      %p178 = scmp.lt.s32.totalorder %s13, 5
      %p179 = pnand %p177, %p178
      %p180 = pneg %p179
      // Predicated region
      $region33: #{tpu_custom_call.1} parent=5 // pred_check
        _
      $region34: #{tpu_custom_call.1} parent=5 // pred_check_branch
        %182 = sbr.rel (%p179) target = $region36
      $region35: #{tpu_custom_call.1} parent=5 // pred_region
        %s183 = ssub.s32 %s13, 1
        %s184 = smul.u32 16, %s18
        %p185 = scmp.lt.s32.totalorder %s184, 63
        %s186 = scalar_select %p185, %s184, 63
        %s187 = smul.addr %s186, 4
        %s188 = smul.addr %s187, 8
        %s189 = scalar_lea.vmem %s0, %s188
        %p190 = pneg %p39
        %p191 = pneg %p36
        %p192 = pneg %p60
        %p193 = pneg %p57
        %p194 = pneg %p81
        %p195 = pneg %p78
        %s196 = smul.u32 16, %s18
        %p197 = scmp.lt.s32.totalorder %s196, 63
        %s198 = scalar_select %p197, %s196, 63
        %s199 = smul.addr %s198, 8
        %s200 = scalar_lea.vmem %s3, %s199
        %p201 = pneg %p107
        %p202 = pneg %p104
        %p203 = pneg %p133
        %p204 = pneg %p130
        %s205 = sand.u32 %s120, 1
        %s206 = scalar_lea.sflag [#allocation3], %s205
        %s207 = sand.u32 %s120, 1
        %s208 = smul.addr %s207, 128
        %s209 = scalar_lea.vmem [#allocation2], %s208
        %s210 = smul.u32 16, %s18
        %p211 = scmp.lt.s32.totalorder %s210, 63
        %s212 = scalar_select %p211, %s210, 63
        %s213 = smul.addr %s212, 4
        %s214 = smul.addr %s213, 8
        %s215 = scalar_lea.vmem %s0, %s214
        %s216 = smul.u32 16, %s18
        %s217 = smul.u32 16, %s18
        %p218 = scmp.lt.s32.totalorder %s217, 63
        %s219 = scalar_select %p218, %s217, 63
        %s220 = smul.addr %s219, 8
        %s221 = scalar_lea.vmem %s3, %s220
        %s222 = smul.u32 16, %s18
        %s223 = smul.u32 16, %s18
        %v224 = vld [vmem:[%s215] sm:$0xff]
        %v225 = vld [vmem:[%s215 + $0x8] sm:$0xff]
        %v226 = vld [vmem:[%s215 + $0x10] sm:$0xff]
        %v227 = vld [vmem:[%s215 + $0x18] sm:$0xff]
        %v228 = vld [vmem:[%s215 + $0x20] sm:$0xff]
        %v229 = vld [vmem:[%s215 + $0x28] sm:$0xff]
        %v230 = vld [vmem:[%s215 + $0x30] sm:$0xff]
        %v231 = vld [vmem:[%s215 + $0x38] sm:$0xff]
        %v232 = vld [vmem:[%s215 + $0x40] sm:$0xff]
        %v233 = vld [vmem:[%s215 + $0x48] sm:$0xff]
        %v234 = vld [vmem:[%s215 + $0x50] sm:$0xff]
        %v235 = vld [vmem:[%s215 + $0x58] sm:$0xff]
        %v236 = vld [vmem:[%s215 + $0x60] sm:$0xff]
        %v237 = vld [vmem:[%s215 + $0x68] sm:$0xff]
        %v238 = vld [vmem:[%s215 + $0x70] sm:$0xff]
        %v239 = vld [vmem:[%s215 + $0x78] sm:$0xff]
        %v240 = vld [vmem:[%s215 + $0x80] sm:$0xff]
        %v241 = vld [vmem:[%s215 + $0x88] sm:$0xff]
        %v242 = vld [vmem:[%s215 + $0x90] sm:$0xff]
        %v243 = vld [vmem:[%s215 + $0x98] sm:$0xff]
        %v244 = vld [vmem:[%s215 + $0xa0] sm:$0xff]
        %v245 = vld [vmem:[%s215 + $0xa8] sm:$0xff]
        %v246 = vld [vmem:[%s215 + $0xb0] sm:$0xff]
        %v247 = vld [vmem:[%s215 + $0xb8] sm:$0xff]
        %v248 = vld [vmem:[%s215 + $0xc0] sm:$0xff]
        %v249 = vld [vmem:[%s215 + $0xc8] sm:$0xff]
        %v250 = vld [vmem:[%s215 + $0xd0] sm:$0xff]
        %v251 = vld [vmem:[%s215 + $0xd8] sm:$0xff]
        %v252 = vld [vmem:[%s215 + $0xe0] sm:$0xff]
        %v253 = vld [vmem:[%s215 + $0xe8] sm:$0xff]
        %v254 = vld [vmem:[%s215 + $0xf0] sm:$0xff]
        %v255 = vld [vmem:[%s215 + $0xf8] sm:$0xff]
        %v256 = vld [vmem:[%s215 + $0x100] sm:$0xff]
        %v257 = vld [vmem:[%s215 + $0x108] sm:$0xff]
        %v258 = vld [vmem:[%s215 + $0x110] sm:$0xff]
        %v259 = vld [vmem:[%s215 + $0x118] sm:$0xff]
        %v260 = vld [vmem:[%s215 + $0x120] sm:$0xff]
        %v261 = vld [vmem:[%s215 + $0x128] sm:$0xff]
        %v262 = vld [vmem:[%s215 + $0x130] sm:$0xff]
        %v263 = vld [vmem:[%s215 + $0x138] sm:$0xff]
        %v264 = vld [vmem:[%s215 + $0x140] sm:$0xff]
        %v265 = vld [vmem:[%s215 + $0x148] sm:$0xff]
        %v266 = vld [vmem:[%s215 + $0x150] sm:$0xff]
        %v267 = vld [vmem:[%s215 + $0x158] sm:$0xff]
        %v268 = vld [vmem:[%s215 + $0x160] sm:$0xff]
        %v269 = vld [vmem:[%s215 + $0x168] sm:$0xff]
        %v270 = vld [vmem:[%s215 + $0x170] sm:$0xff]
        %v271 = vld [vmem:[%s215 + $0x178] sm:$0xff]
        %v272 = vld [vmem:[%s215 + $0x180] sm:$0xff]
        %v273 = vld [vmem:[%s215 + $0x188] sm:$0xff]
        %v274 = vld [vmem:[%s215 + $0x190] sm:$0xff]
        %v275 = vld [vmem:[%s215 + $0x198] sm:$0xff]
        %v276 = vld [vmem:[%s215 + $0x1a0] sm:$0xff]
        %v277 = vld [vmem:[%s215 + $0x1a8] sm:$0xff]
        %v278 = vld [vmem:[%s215 + $0x1b0] sm:$0xff]
        %v279 = vld [vmem:[%s215 + $0x1b8] sm:$0xff]
        %v280 = vld [vmem:[%s215 + $0x1c0] sm:$0xff]
        %v281 = vld [vmem:[%s215 + $0x1c8] sm:$0xff]
        %v282 = vld [vmem:[%s215 + $0x1d0] sm:$0xff]
        %v283 = vld [vmem:[%s215 + $0x1d8] sm:$0xff]
        %v284 = vld [vmem:[%s215 + $0x1e0] sm:$0xff]
        %v285 = vld [vmem:[%s215 + $0x1e8] sm:$0xff]
        %v286 = vld [vmem:[%s215 + $0x1f0] sm:$0xff]
        %v287 = vld [vmem:[%s215 + $0x1f8] sm:$0xff]
        %v288 = vld [vmem:[%s1] sm:$0xff]
        %v289 = vld [vmem:[%s1 + $0x8] sm:$0xff]
        %v290 = vld [vmem:[%s1 + $0x10] sm:$0xff]
        %v291 = vld [vmem:[%s1 + $0x18] sm:$0xff]
        %v292 = vld [vmem:[%s1 + $0x20] sm:$0xff]
        %v293 = vld [vmem:[%s1 + $0x28] sm:$0xff]
        %v294 = vld [vmem:[%s1 + $0x30] sm:$0xff]
        %v295 = vld [vmem:[%s1 + $0x38] sm:$0xff]
        %v296 = vld [vmem:[%s1 + $0x40] sm:$0xff]
        %v297 = vld [vmem:[%s1 + $0x48] sm:$0xff]
        %v298 = vld [vmem:[%s1 + $0x50] sm:$0xff]
        %v299 = vld [vmem:[%s1 + $0x58] sm:$0xff]
        %v300 = vld [vmem:[%s1 + $0x60] sm:$0xff]
        %v301 = vld [vmem:[%s1 + $0x68] sm:$0xff]
        %v302 = vld [vmem:[%s1 + $0x70] sm:$0xff]
        %v303 = vld [vmem:[%s1 + $0x78] sm:$0xff]
        %v304 = vld [vmem:[%s1 + $0x80] sm:$0xff]
        %v305 = vld [vmem:[%s1 + $0x88] sm:$0xff]
        %v306 = vld [vmem:[%s1 + $0x90] sm:$0xff]
        %v307 = vld [vmem:[%s1 + $0x98] sm:$0xff]
        %v308 = vld [vmem:[%s1 + $0xa0] sm:$0xff]
        %v309 = vld [vmem:[%s1 + $0xa8] sm:$0xff]
        %v310 = vld [vmem:[%s1 + $0xb0] sm:$0xff]
        %v311 = vld [vmem:[%s1 + $0xb8] sm:$0xff]
        %v312 = vld [vmem:[%s1 + $0xc0] sm:$0xff]
        %v313 = vld [vmem:[%s1 + $0xc8] sm:$0xff]
        %v314 = vld [vmem:[%s1 + $0xd0] sm:$0xff]
        %v315 = vld [vmem:[%s1 + $0xd8] sm:$0xff]
        %v316 = vld [vmem:[%s1 + $0xe0] sm:$0xff]
        %v317 = vld [vmem:[%s1 + $0xe8] sm:$0xff]
        %v318 = vld [vmem:[%s1 + $0xf0] sm:$0xff]
        %v319 = vld [vmem:[%s1 + $0xf8] sm:$0xff]
        %v320 = vld [vmem:[%s1 + $0x100] sm:$0xff]
        %v321 = vld [vmem:[%s1 + $0x108] sm:$0xff]
        %v322 = vld [vmem:[%s1 + $0x110] sm:$0xff]
        %v323 = vld [vmem:[%s1 + $0x118] sm:$0xff]
        %v324 = vld [vmem:[%s1 + $0x120] sm:$0xff]
        %v325 = vld [vmem:[%s1 + $0x128] sm:$0xff]
        %v326 = vld [vmem:[%s1 + $0x130] sm:$0xff]
        %v327 = vld [vmem:[%s1 + $0x138] sm:$0xff]
        %v328 = vld [vmem:[%s1 + $0x140] sm:$0xff]
        %v329 = vld [vmem:[%s1 + $0x148] sm:$0xff]
        %v330 = vld [vmem:[%s1 + $0x150] sm:$0xff]
        %v331 = vld [vmem:[%s1 + $0x158] sm:$0xff]
        %v332 = vld [vmem:[%s1 + $0x160] sm:$0xff]
        %v333 = vld [vmem:[%s1 + $0x168] sm:$0xff]
        %v334 = vld [vmem:[%s1 + $0x170] sm:$0xff]
        %v335 = vld [vmem:[%s1 + $0x178] sm:$0xff]
        %v336 = vld [vmem:[%s1 + $0x180] sm:$0xff]
        %v337 = vld [vmem:[%s1 + $0x188] sm:$0xff]
        %v338 = vld [vmem:[%s1 + $0x190] sm:$0xff]
        %v339 = vld [vmem:[%s1 + $0x198] sm:$0xff]
        %v340 = vld [vmem:[%s1 + $0x1a0] sm:$0xff]
        %v341 = vld [vmem:[%s1 + $0x1a8] sm:$0xff]
        %v342 = vld [vmem:[%s1 + $0x1b0] sm:$0xff]
        %v343 = vld [vmem:[%s1 + $0x1b8] sm:$0xff]
        %v344 = vld [vmem:[%s1 + $0x1c0] sm:$0xff]
        %v345 = vld [vmem:[%s1 + $0x1c8] sm:$0xff]
        %v346 = vld [vmem:[%s1 + $0x1d0] sm:$0xff]
        %v347 = vld [vmem:[%s1 + $0x1d8] sm:$0xff]
        %v348 = vld [vmem:[%s1 + $0x1e0] sm:$0xff]
        %v349 = vld [vmem:[%s1 + $0x1e8] sm:$0x7f]
        %v350 = vld [vmem:[%s2] sm:$0x1]
        %v352 = vlaneseq
        %v353 = vshrl.u32 %v352, 7
        %v354 = vsub.s32 0, %v353
        %v355 = vrot.slane %v350, %v354
        %vm357 = vcmask 908288
        %v359 = vsel %vm357, %v227, 0
        %v362 = vsel %vm357, %v231, 0
        %v365 = vsel %vm357, %v235, 0
        %v368 = vsel %vm357, %v239, 0
        %v371 = vsel %vm357, %v243, 0
        %v374 = vsel %vm357, %v247, 0
        %v377 = vsel %vm357, %v251, 0
        %v380 = vsel %vm357, %v255, 0
        %v383 = vsel %vm357, %v259, 0
        %v386 = vsel %vm357, %v263, 0
        %v389 = vsel %vm357, %v267, 0
        %v392 = vsel %vm357, %v271, 0
        %v395 = vsel %vm357, %v275, 0
        %v398 = vsel %vm357, %v279, 0
        %v401 = vsel %vm357, %v283, 0
        %v404 = vsel %vm357, %v287, 0
        %vm406 = vcmask 1046528
        %v408 = vsel %vm406, %v349, 0
        %410 = vmatprep.subr.mxu0 0.0
        %v411 = vand.u32 %v288, 4294901760
        %412 = vmatpush1.msra.mxu0 %v411
        %413 = vmatprep.subr.mxu0 0.0
        %v414 = vand.u32 %v289, 4294901760
        %415 = vmatpush1.msra.mxu0 %v414
        %416 = vmatprep.subr.mxu0 0.0
        %v417 = vand.u32 %v290, 4294901760
        %418 = vmatpush1.msra.mxu0 %v417
        %419 = vmatprep.subr.mxu0 0.0
        %v420 = vand.u32 %v291, 4294901760
        %421 = vmatpush1.msra.mxu0 %v420
        %422 = vmatprep.subr.mxu0 0.0
        %v423 = vand.u32 %v292, 4294901760
        %424 = vmatpush1.msra.mxu0 %v423
        %425 = vmatprep.subr.mxu0 0.0
        %v426 = vand.u32 %v293, 4294901760
        %427 = vmatpush1.msra.mxu0 %v426
        %428 = vmatprep.subr.mxu0 0.0
        %v429 = vand.u32 %v294, 4294901760
        %430 = vmatpush1.msra.mxu0 %v429
        %431 = vmatprep.subr.mxu0 0.0
        %v432 = vand.u32 %v295, 4294901760
        %433 = vmatpush1.msra.mxu0 %v432
        %434 = vmatprep.subr.mxu0 0.0
        %v435 = vand.u32 %v296, 4294901760
        %436 = vmatpush1.msra.mxu0 %v435
        %437 = vmatprep.subr.mxu0 0.0
        %v438 = vand.u32 %v297, 4294901760
        %439 = vmatpush1.msra.mxu0 %v438
        %440 = vmatprep.subr.mxu0 0.0
        %v441 = vand.u32 %v298, 4294901760
        %442 = vmatpush1.msra.mxu0 %v441
        %443 = vmatprep.subr.mxu0 0.0
        %v444 = vand.u32 %v299, 4294901760
        %445 = vmatpush1.msra.mxu0 %v444
        %446 = vmatprep.subr.mxu0 0.0
        %v447 = vand.u32 %v300, 4294901760
        %448 = vmatpush1.msra.mxu0 %v447
        %449 = vmatprep.subr.mxu0 0.0
        %v450 = vand.u32 %v301, 4294901760
        %451 = vmatpush1.msra.mxu0 %v450
        %452 = vmatprep.subr.mxu0 0.0
        %v453 = vand.u32 %v302, 4294901760
        %454 = vmatpush1.msra.mxu0 %v453
        %455 = vmatprep.subr.mxu0 0.0
        %v456 = vand.u32 %v303, 4294901760
        %457 = vmatpush1.msra.mxu0 %v456
        %458 = vmatprep.subr.mxu0 0.0
        %v459 = vand.u32 %v304, 4294901760
        %460 = vmatpush1.msra.mxu0 %v459
        %461 = vmatprep.subr.mxu0 0.0
        %v462 = vand.u32 %v305, 4294901760
        %463 = vmatpush1.msra.mxu0 %v462
        %464 = vmatprep.subr.mxu0 0.0
        %v465 = vand.u32 %v306, 4294901760
        %466 = vmatpush1.msra.mxu0 %v465
        %467 = vmatprep.subr.mxu0 0.0
        %v468 = vand.u32 %v307, 4294901760
        %469 = vmatpush1.msra.mxu0 %v468
        %470 = vmatprep.subr.mxu0 0.0
        %v471 = vand.u32 %v308, 4294901760
        %472 = vmatpush1.msra.mxu0 %v471
        %473 = vmatprep.subr.mxu0 0.0
        %v474 = vand.u32 %v309, 4294901760
        %475 = vmatpush1.msra.mxu0 %v474
        %476 = vmatprep.subr.mxu0 0.0
        %v477 = vand.u32 %v310, 4294901760
        %478 = vmatpush1.msra.mxu0 %v477
        %479 = vmatprep.subr.mxu0 0.0
        %v480 = vand.u32 %v311, 4294901760
        %481 = vmatpush1.msra.mxu0 %v480
        %482 = vmatprep.subr.mxu0 0.0
        %v483 = vand.u32 %v312, 4294901760
        %484 = vmatpush1.msra.mxu0 %v483
        %485 = vmatprep.subr.mxu0 0.0
        %v486 = vand.u32 %v313, 4294901760
        %487 = vmatpush1.msra.mxu0 %v486
        %488 = vmatprep.subr.mxu0 0.0
        %v489 = vand.u32 %v314, 4294901760
        %490 = vmatpush1.msra.mxu0 %v489
        %491 = vmatprep.subr.mxu0 0.0
        %v492 = vand.u32 %v315, 4294901760
        %493 = vmatpush1.msra.mxu0 %v492
        %494 = vmatprep.subr.mxu0 0.0
        %v495 = vand.u32 %v316, 4294901760
        %496 = vmatpush1.msra.mxu0 %v495
        %497 = vmatprep.subr.mxu0 0.0
        %v498 = vand.u32 %v317, 4294901760
        %499 = vmatpush1.msra.mxu0 %v498
        %500 = vmatprep.subr.mxu0 0.0
        %v501 = vand.u32 %v318, 4294901760
        %502 = vmatpush1.msra.mxu0 %v501
        %503 = vmatprep.subr.mxu0 0.0
        %v504 = vand.u32 %v319, 4294901760
        %505 = vmatpush1.msra.mxu0 %v504
        %v506 = vand.u32 %v225, 4294901760
        %v507 = vsub.f32 %v225, %v506
        %v508 = vand.u32 %v507, 4294901760
        %v509 = vsub.f32 %v507, %v508
        %v510 = vand.u32 %v509, 4294901760
        %511 = vmatprep.mubr.f32.mxu0 %v510
        %v512 = vand.u32 %v224, 4294901760
        %v513 = vsub.f32 %v224, %v512
        %v514 = vand.u32 %v513, 4294901760
        %v515 = vsub.f32 %v513, %v514
        %v516 = vand.u32 %v515, 4294901760
        %517 = vmatmul.mubr.f32.gmra.mrb[0].mxu0 %v516
        %v518 = vpop.f32.mrb[0].mxu0
        %v519 = vadd.f32 %v355, %v518
        %v520 = vpop.f32.mrb[0].mxu0
        %v521 = vand.u32 %v229, 4294901760
        %v522 = vsub.f32 %v229, %v521
        %v523 = vand.u32 %v522, 4294901760
        %v524 = vsub.f32 %v522, %v523
        %v525 = vand.u32 %v524, 4294901760
        %526 = vmatprep.mubr.f32.mxu0 %v525
        %v527 = vand.u32 %v228, 4294901760
        %v528 = vsub.f32 %v228, %v527
        %v529 = vand.u32 %v528, 4294901760
        %v530 = vsub.f32 %v528, %v529
        %v531 = vand.u32 %v530, 4294901760
        %532 = vmatmul.mubr.f32.gmra.mrb[0].mxu0 %v531
        %v533 = vpop.f32.mrb[0].mxu0
        %v534 = vadd.f32 %v355, %v533
        %v535 = vpop.f32.mrb[0].mxu0
        %v536 = vand.u32 %v233, 4294901760
        %v537 = vsub.f32 %v233, %v536
        %v538 = vand.u32 %v537, 4294901760
        %v539 = vsub.f32 %v537, %v538
        %v540 = vand.u32 %v539, 4294901760
        %541 = vmatprep.mubr.f32.mxu0 %v540
        %v542 = vand.u32 %v232, 4294901760
        %v543 = vsub.f32 %v232, %v542
        %v544 = vand.u32 %v543, 4294901760
        %v545 = vsub.f32 %v543, %v544
        %v546 = vand.u32 %v545, 4294901760
        %547 = vmatmul.mubr.f32.gmra.mrb[0].mxu0 %v546
        %v548 = vpop.f32.mrb[0].mxu0
        %v549 = vadd.f32 %v355, %v548
        %v550 = vpop.f32.mrb[0].mxu0
        %v551 = vand.u32 %v237, 4294901760
        %v552 = vsub.f32 %v237, %v551
        %v553 = vand.u32 %v552, 4294901760
        %v554 = vsub.f32 %v552, %v553
        %v555 = vand.u32 %v554, 4294901760
        %556 = vmatprep.mubr.f32.mxu0 %v555
        %v557 = vand.u32 %v236, 4294901760
        %v558 = vsub.f32 %v236, %v557
        %v559 = vand.u32 %v558, 4294901760
        %v560 = vsub.f32 %v558, %v559
        %v561 = vand.u32 %v560, 4294901760
        %562 = vmatmul.mubr.f32.gmra.mrb[0].mxu0 %v561
        %v563 = vpop.f32.mrb[0].mxu0
        %v564 = vadd.f32 %v355, %v563
        %v565 = vpop.f32.mrb[0].mxu0
        %v566 = vand.u32 %v241, 4294901760
        %v567 = vsub.f32 %v241, %v566
        %v568 = vand.u32 %v567, 4294901760
        %v569 = vsub.f32 %v567, %v568
        %v570 = vand.u32 %v569, 4294901760
        %571 = vmatprep.mubr.f32.mxu0 %v570
        %v572 = vand.u32 %v240, 4294901760
        %v573 = vsub.f32 %v240, %v572
        %v574 = vand.u32 %v573, 4294901760
        %v575 = vsub.f32 %v573, %v574
        %v576 = vand.u32 %v575, 4294901760
        %577 = vmatmul.mubr.f32.gmra.mrb[0].mxu0 %v576
        %v578 = vpop.f32.mrb[0].mxu0
        %v579 = vadd.f32 %v355, %v578
        %v580 = vpop.f32.mrb[0].mxu0
        %v581 = vand.u32 %v245, 4294901760
        %v582 = vsub.f32 %v245, %v581
        %v583 = vand.u32 %v582, 4294901760
        %v584 = vsub.f32 %v582, %v583
        %v585 = vand.u32 %v584, 4294901760
        %586 = vmatprep.mubr.f32.mxu0 %v585
        %v587 = vand.u32 %v244, 4294901760
        %v588 = vsub.f32 %v244, %v587
        %v589 = vand.u32 %v588, 4294901760
        %v590 = vsub.f32 %v588, %v589
        %v591 = vand.u32 %v590, 4294901760
        %592 = vmatmul.mubr.f32.gmra.mrb[0].mxu0 %v591
        %v593 = vpop.f32.mrb[0].mxu0
        %v594 = vadd.f32 %v355, %v593
        %v595 = vpop.f32.mrb[0].mxu0
        %v596 = vand.u32 %v249, 4294901760
        %v597 = vsub.f32 %v249, %v596
        %v598 = vand.u32 %v597, 4294901760
        %v599 = vsub.f32 %v597, %v598
        %v600 = vand.u32 %v599, 4294901760
        %601 = vmatprep.mubr.f32.mxu0 %v600
        %v602 = vand.u32 %v248, 4294901760
        %v603 = vsub.f32 %v248, %v602
        %v604 = vand.u32 %v603, 4294901760
        %v605 = vsub.f32 %v603, %v604
        %v606 = vand.u32 %v605, 4294901760
        %607 = vmatmul.mubr.f32.gmra.mrb[0].mxu0 %v606
        %v608 = vpop.f32.mrb[0].mxu0
        %v609 = vadd.f32 %v355, %v608
        %v610 = vpop.f32.mrb[0].mxu0
        %v611 = vand.u32 %v253, 4294901760
        %v612 = vsub.f32 %v253, %v611
        %v613 = vand.u32 %v612, 4294901760
        %v614 = vsub.f32 %v612, %v613
        %v615 = vand.u32 %v614, 4294901760
        %616 = vmatprep.mubr.f32.mxu0 %v615
        %v617 = vand.u32 %v252, 4294901760
        %v618 = vsub.f32 %v252, %v617
        %v619 = vand.u32 %v618, 4294901760
        %v620 = vsub.f32 %v618, %v619
        %v621 = vand.u32 %v620, 4294901760
        %622 = vmatmul.mubr.f32.gmra.mrb[0].mxu0 %v621
        %v623 = vpop.f32.mrb[0].mxu0
        %v624 = vadd.f32 %v355, %v623
        %v625 = vpop.f32.mrb[0].mxu0
        %v626 = vand.u32 %v257, 4294901760
        %v627 = vsub.f32 %v257, %v626
        %v628 = vand.u32 %v627, 4294901760
        %v629 = vsub.f32 %v627, %v628
        %v630 = vand.u32 %v629, 4294901760
        %631 = vmatprep.mubr.f32.mxu0 %v630
        %v632 = vand.u32 %v256, 4294901760
        %v633 = vsub.f32 %v256, %v632
        %v634 = vand.u32 %v633, 4294901760
        %v635 = vsub.f32 %v633, %v634
        %v636 = vand.u32 %v635, 4294901760
        %637 = vmatmul.mubr.f32.gmra.mrb[0].mxu0 %v636
        %v638 = vpop.f32.mrb[0].mxu0
        %v639 = vadd.f32 %v355, %v638
        %v640 = vpop.f32.mrb[0].mxu0
        %v641 = vand.u32 %v261, 4294901760
        %v642 = vsub.f32 %v261, %v641
        %v643 = vand.u32 %v642, 4294901760
        %v644 = vsub.f32 %v642, %v643
        %v645 = vand.u32 %v644, 4294901760
        %646 = vmatprep.mubr.f32.mxu0 %v645
        %v647 = vand.u32 %v260, 4294901760
        %v648 = vsub.f32 %v260, %v647
        %v649 = vand.u32 %v648, 4294901760
        %v650 = vsub.f32 %v648, %v649
        %v651 = vand.u32 %v650, 4294901760
        %652 = vmatmul.mubr.f32.gmra.mrb[0].mxu0 %v651
        %v653 = vpop.f32.mrb[0].mxu0
        %v654 = vadd.f32 %v355, %v653
        %v655 = vpop.f32.mrb[0].mxu0
        %v656 = vand.u32 %v265, 4294901760
        %v657 = vsub.f32 %v265, %v656
        %v658 = vand.u32 %v657, 4294901760
        %v659 = vsub.f32 %v657, %v658
        %v660 = vand.u32 %v659, 4294901760
        %661 = vmatprep.mubr.f32.mxu0 %v660
        %v662 = vand.u32 %v264, 4294901760
        %v663 = vsub.f32 %v264, %v662
        %v664 = vand.u32 %v663, 4294901760
        %v665 = vsub.f32 %v663, %v664
        %v666 = vand.u32 %v665, 4294901760
        %667 = vmatmul.mubr.f32.gmra.mrb[0].mxu0 %v666
        %v668 = vpop.f32.mrb[0].mxu0
        %v669 = vadd.f32 %v355, %v668
        %v670 = vpop.f32.mrb[0].mxu0
        %v671 = vand.u32 %v269, 4294901760
        %v672 = vsub.f32 %v269, %v671
        %v673 = vand.u32 %v672, 4294901760
        %v674 = vsub.f32 %v672, %v673
        %v675 = vand.u32 %v674, 4294901760
        %676 = vmatprep.mubr.f32.mxu0 %v675
        %v677 = vand.u32 %v268, 4294901760
        %v678 = vsub.f32 %v268, %v677
        %v679 = vand.u32 %v678, 4294901760
        %v680 = vsub.f32 %v678, %v679
        %v681 = vand.u32 %v680, 4294901760
        %682 = vmatmul.mubr.f32.gmra.mrb[0].mxu0 %v681
        %v683 = vpop.f32.mrb[0].mxu0
        %v684 = vadd.f32 %v355, %v683
        %v685 = vpop.f32.mrb[0].mxu0
        %v686 = vand.u32 %v273, 4294901760
        %v687 = vsub.f32 %v273, %v686
        %v688 = vand.u32 %v687, 4294901760
        %v689 = vsub.f32 %v687, %v688
        %v690 = vand.u32 %v689, 4294901760
        %691 = vmatprep.mubr.f32.mxu0 %v690
        %v692 = vand.u32 %v272, 4294901760
        %v693 = vsub.f32 %v272, %v692
        %v694 = vand.u32 %v693, 4294901760
        %v695 = vsub.f32 %v693, %v694
        %v696 = vand.u32 %v695, 4294901760
        %697 = vmatmul.mubr.f32.gmra.mrb[0].mxu0 %v696
        %v698 = vpop.f32.mrb[0].mxu0
        %v699 = vadd.f32 %v355, %v698
        %v700 = vpop.f32.mrb[0].mxu0
        %v701 = vand.u32 %v277, 4294901760
        %v702 = vsub.f32 %v277, %v701
        %v703 = vand.u32 %v702, 4294901760
        %v704 = vsub.f32 %v702, %v703
        %v705 = vand.u32 %v704, 4294901760
        %706 = vmatprep.mubr.f32.mxu0 %v705
        %v707 = vand.u32 %v276, 4294901760
        %v708 = vsub.f32 %v276, %v707
        %v709 = vand.u32 %v708, 4294901760
        %v710 = vsub.f32 %v708, %v709
        %v711 = vand.u32 %v710, 4294901760
        %712 = vmatmul.mubr.f32.gmra.mrb[0].mxu0 %v711
        %v713 = vpop.f32.mrb[0].mxu0
        %v714 = vadd.f32 %v355, %v713
        %v715 = vpop.f32.mrb[0].mxu0
        %v716 = vand.u32 %v281, 4294901760
        %v717 = vsub.f32 %v281, %v716
        %v718 = vand.u32 %v717, 4294901760
        %v719 = vsub.f32 %v717, %v718
        %v720 = vand.u32 %v719, 4294901760
        %721 = vmatprep.mubr.f32.mxu0 %v720
        %v722 = vand.u32 %v280, 4294901760
        %v723 = vsub.f32 %v280, %v722
        %v724 = vand.u32 %v723, 4294901760
        %v725 = vsub.f32 %v723, %v724
        %v726 = vand.u32 %v725, 4294901760
        %727 = vmatmul.mubr.f32.gmra.mrb[0].mxu0 %v726
        %v728 = vpop.f32.mrb[0].mxu0
        %v729 = vadd.f32 %v355, %v728
        %v730 = vpop.f32.mrb[0].mxu0
        %v731 = vand.u32 %v285, 4294901760
        %v732 = vsub.f32 %v285, %v731
        %v733 = vand.u32 %v732, 4294901760
        %v734 = vsub.f32 %v732, %v733
        %v735 = vand.u32 %v734, 4294901760
        %736 = vmatprep.mubr.f32.mxu0 %v735
        %v737 = vand.u32 %v284, 4294901760
        %v738 = vsub.f32 %v284, %v737
        %v739 = vand.u32 %v738, 4294901760
        %v740 = vsub.f32 %v738, %v739
        %v741 = vand.u32 %v740, 4294901760
        %742 = vmatmul.mubr.f32.gmra.mrb[0].mxu0 %v741
        %v743 = vpop.f32.mrb[0].mxu0
        %v744 = vadd.f32 %v355, %v743
        %v745 = vpop.f32.mrb[0].mxu0
        %746 = vdwg.mxu0
        %747 = vmatprep.subr.mxu0 0.0
        %v748 = vand.u32 %v288, 4294901760
        %v749 = vsub.f32 %v288, %v748
        %v750 = vand.u32 %v749, 4294901760
        %v751 = vsub.f32 %v749, %v750
        %v752 = vand.u32 %v751, 4294901760
        %753 = vmatpush1.msra.mxu0 %v752
        %754 = vmatprep.subr.mxu0 0.0
        %v755 = vand.u32 %v289, 4294901760
        %v756 = vsub.f32 %v289, %v755
        %v757 = vand.u32 %v756, 4294901760
        %v758 = vsub.f32 %v756, %v757
        %v759 = vand.u32 %v758, 4294901760
        %760 = vmatpush1.msra.mxu0 %v759
        %761 = vmatprep.subr.mxu0 0.0
        %v762 = vand.u32 %v290, 4294901760
        %v763 = vsub.f32 %v290, %v762
        %v764 = vand.u32 %v763, 4294901760
        %v765 = vsub.f32 %v763, %v764
        %v766 = vand.u32 %v765, 4294901760
        %767 = vmatpush1.msra.mxu0 %v766
        %768 = vmatprep.subr.mxu0 0.0
        %v769 = vand.u32 %v291, 4294901760
        %v770 = vsub.f32 %v291, %v769
        %v771 = vand.u32 %v770, 4294901760
        %v772 = vsub.f32 %v770, %v771
        %v773 = vand.u32 %v772, 4294901760
        %774 = vmatpush1.msra.mxu0 %v773
        %775 = vmatprep.subr.mxu0 0.0
        %v776 = vand.u32 %v292, 4294901760
        %v777 = vsub.f32 %v292, %v776
        %v778 = vand.u32 %v777, 4294901760
        %v779 = vsub.f32 %v777, %v778
        %v780 = vand.u32 %v779, 4294901760
        %781 = vmatpush1.msra.mxu0 %v780
        %782 = vmatprep.subr.mxu0 0.0
        %v783 = vand.u32 %v293, 4294901760
        %v784 = vsub.f32 %v293, %v783
        %v785 = vand.u32 %v784, 4294901760
        %v786 = vsub.f32 %v784, %v785
        %v787 = vand.u32 %v786, 4294901760
        %788 = vmatpush1.msra.mxu0 %v787
        %789 = vmatprep.subr.mxu0 0.0
        %v790 = vand.u32 %v294, 4294901760
        %v791 = vsub.f32 %v294, %v790
        %v792 = vand.u32 %v791, 4294901760
        %v793 = vsub.f32 %v791, %v792
        %v794 = vand.u32 %v793, 4294901760
        %795 = vmatpush1.msra.mxu0 %v794
        %796 = vmatprep.subr.mxu0 0.0
        %v797 = vand.u32 %v295, 4294901760
        %v798 = vsub.f32 %v295, %v797
        %v799 = vand.u32 %v798, 4294901760
        %v800 = vsub.f32 %v798, %v799
        %v801 = vand.u32 %v800, 4294901760
        %802 = vmatpush1.msra.mxu0 %v801
        %803 = vmatprep.subr.mxu0 0.0
        %v804 = vand.u32 %v296, 4294901760
        %v805 = vsub.f32 %v296, %v804
        %v806 = vand.u32 %v805, 4294901760
        %v807 = vsub.f32 %v805, %v806
        %v808 = vand.u32 %v807, 4294901760
        %809 = vmatpush1.msra.mxu0 %v808
        %810 = vmatprep.subr.mxu0 0.0
        %v811 = vand.u32 %v297, 4294901760
        %v812 = vsub.f32 %v297, %v811
        %v813 = vand.u32 %v812, 4294901760
        %v814 = vsub.f32 %v812, %v813
        %v815 = vand.u32 %v814, 4294901760
        %816 = vmatpush1.msra.mxu0 %v815
        %817 = vmatprep.subr.mxu0 0.0
        %v818 = vand.u32 %v298, 4294901760
        %v819 = vsub.f32 %v298, %v818
        %v820 = vand.u32 %v819, 4294901760
        %v821 = vsub.f32 %v819, %v820
        %v822 = vand.u32 %v821, 4294901760
        %823 = vmatpush1.msra.mxu0 %v822
        %824 = vmatprep.subr.mxu0 0.0
        %v825 = vand.u32 %v299, 4294901760
        %v826 = vsub.f32 %v299, %v825
        %v827 = vand.u32 %v826, 4294901760
        %v828 = vsub.f32 %v826, %v827
        %v829 = vand.u32 %v828, 4294901760
        %830 = vmatpush1.msra.mxu0 %v829
        %831 = vmatprep.subr.mxu0 0.0
        %v832 = vand.u32 %v300, 4294901760
        %v833 = vsub.f32 %v300, %v832
        %v834 = vand.u32 %v833, 4294901760
        %v835 = vsub.f32 %v833, %v834
        %v836 = vand.u32 %v835, 4294901760
        %837 = vmatpush1.msra.mxu0 %v836
        %838 = vmatprep.subr.mxu0 0.0
        %v839 = vand.u32 %v301, 4294901760
        %v840 = vsub.f32 %v301, %v839
        %v841 = vand.u32 %v840, 4294901760
        %v842 = vsub.f32 %v840, %v841
        %v843 = vand.u32 %v842, 4294901760
        %844 = vmatpush1.msra.mxu0 %v843
        %845 = vmatprep.subr.mxu0 0.0
        %v846 = vand.u32 %v302, 4294901760
        %v847 = vsub.f32 %v302, %v846
        %v848 = vand.u32 %v847, 4294901760
        %v849 = vsub.f32 %v847, %v848
        %v850 = vand.u32 %v849, 4294901760
        %851 = vmatpush1.msra.mxu0 %v850
        %852 = vmatprep.subr.mxu0 0.0
        %v853 = vand.u32 %v303, 4294901760
        %v854 = vsub.f32 %v303, %v853
        %v855 = vand.u32 %v854, 4294901760
        %v856 = vsub.f32 %v854, %v855
        %v857 = vand.u32 %v856, 4294901760
        %858 = vmatpush1.msra.mxu0 %v857
        %859 = vmatprep.subr.mxu0 0.0
        %v860 = vand.u32 %v304, 4294901760
        %v861 = vsub.f32 %v304, %v860
        %v862 = vand.u32 %v861, 4294901760
        %v863 = vsub.f32 %v861, %v862
        %v864 = vand.u32 %v863, 4294901760
        %865 = vmatpush1.msra.mxu0 %v864
        %866 = vmatprep.subr.mxu0 0.0
        %v867 = vand.u32 %v305, 4294901760
        %v868 = vsub.f32 %v305, %v867
        %v869 = vand.u32 %v868, 4294901760
        %v870 = vsub.f32 %v868, %v869
        %v871 = vand.u32 %v870, 4294901760
        %872 = vmatpush1.msra.mxu0 %v871
        %873 = vmatprep.subr.mxu0 0.0
        %v874 = vand.u32 %v306, 4294901760
        %v875 = vsub.f32 %v306, %v874
        %v876 = vand.u32 %v875, 4294901760
        %v877 = vsub.f32 %v875, %v876
        %v878 = vand.u32 %v877, 4294901760
        %879 = vmatpush1.msra.mxu0 %v878
        %880 = vmatprep.subr.mxu0 0.0
        %v881 = vand.u32 %v307, 4294901760
        %v882 = vsub.f32 %v307, %v881
        %v883 = vand.u32 %v882, 4294901760
        %v884 = vsub.f32 %v882, %v883
        %v885 = vand.u32 %v884, 4294901760
        %886 = vmatpush1.msra.mxu0 %v885
        %887 = vmatprep.subr.mxu0 0.0
        %v888 = vand.u32 %v308, 4294901760
        %v889 = vsub.f32 %v308, %v888
        %v890 = vand.u32 %v889, 4294901760
        %v891 = vsub.f32 %v889, %v890
        %v892 = vand.u32 %v891, 4294901760
        %893 = vmatpush1.msra.mxu0 %v892
        %894 = vmatprep.subr.mxu0 0.0
        %v895 = vand.u32 %v309, 4294901760
        %v896 = vsub.f32 %v309, %v895
        %v897 = vand.u32 %v896, 4294901760
        %v898 = vsub.f32 %v896, %v897
        %v899 = vand.u32 %v898, 4294901760
        %900 = vmatpush1.msra.mxu0 %v899
        %901 = vmatprep.subr.mxu0 0.0
        %v902 = vand.u32 %v310, 4294901760
        %v903 = vsub.f32 %v310, %v902
        %v904 = vand.u32 %v903, 4294901760
        %v905 = vsub.f32 %v903, %v904
        %v906 = vand.u32 %v905, 4294901760
        %907 = vmatpush1.msra.mxu0 %v906
        %908 = vmatprep.subr.mxu0 0.0
        %v909 = vand.u32 %v311, 4294901760
        %v910 = vsub.f32 %v311, %v909
        %v911 = vand.u32 %v910, 4294901760
        %v912 = vsub.f32 %v910, %v911
        %v913 = vand.u32 %v912, 4294901760
        %914 = vmatpush1.msra.mxu0 %v913
        %915 = vmatprep.subr.mxu0 0.0
        %v916 = vand.u32 %v312, 4294901760
        %v917 = vsub.f32 %v312, %v916
        %v918 = vand.u32 %v917, 4294901760
        %v919 = vsub.f32 %v917, %v918
        %v920 = vand.u32 %v919, 4294901760
        %921 = vmatpush1.msra.mxu0 %v920
        %922 = vmatprep.subr.mxu0 0.0
        %v923 = vand.u32 %v313, 4294901760
        %v924 = vsub.f32 %v313, %v923
        %v925 = vand.u32 %v924, 4294901760
        %v926 = vsub.f32 %v924, %v925
        %v927 = vand.u32 %v926, 4294901760
        %928 = vmatpush1.msra.mxu0 %v927
        %929 = vmatprep.subr.mxu0 0.0
        %v930 = vand.u32 %v314, 4294901760
        %v931 = vsub.f32 %v314, %v930
        %v932 = vand.u32 %v931, 4294901760
        %v933 = vsub.f32 %v931, %v932
        %v934 = vand.u32 %v933, 4294901760
        %935 = vmatpush1.msra.mxu0 %v934
        %936 = vmatprep.subr.mxu0 0.0
        %v937 = vand.u32 %v315, 4294901760
        %v938 = vsub.f32 %v315, %v937
        %v939 = vand.u32 %v938, 4294901760
        %v940 = vsub.f32 %v938, %v939
        %v941 = vand.u32 %v940, 4294901760
        %942 = vmatpush1.msra.mxu0 %v941
        %943 = vmatprep.subr.mxu0 0.0
        %v944 = vand.u32 %v316, 4294901760
        %v945 = vsub.f32 %v316, %v944
        %v946 = vand.u32 %v945, 4294901760
        %v947 = vsub.f32 %v945, %v946
        %v948 = vand.u32 %v947, 4294901760
        %949 = vmatpush1.msra.mxu0 %v948
        %950 = vmatprep.subr.mxu0 0.0
        %v951 = vand.u32 %v317, 4294901760
        %v952 = vsub.f32 %v317, %v951
        %v953 = vand.u32 %v952, 4294901760
        %v954 = vsub.f32 %v952, %v953
        %v955 = vand.u32 %v954, 4294901760
        %956 = vmatpush1.msra.mxu0 %v955
        %957 = vmatprep.subr.mxu0 0.0
        %v958 = vand.u32 %v318, 4294901760
        %v959 = vsub.f32 %v318, %v958
        %v960 = vand.u32 %v959, 4294901760
        %v961 = vsub.f32 %v959, %v960
        %v962 = vand.u32 %v961, 4294901760
        %963 = vmatpush1.msra.mxu0 %v962
        %964 = vmatprep.subr.mxu0 0.0
        %v965 = vand.u32 %v319, 4294901760
        %v966 = vsub.f32 %v319, %v965
        %v967 = vand.u32 %v966, 4294901760
        %v968 = vsub.f32 %v966, %v967
        %v969 = vand.u32 %v968, 4294901760
        %970 = vmatpush1.msra.mxu0 %v969
        %v971 = vand.u32 %v225, 4294901760
        %972 = vmatprep.mubr.f32.mxu0 %v971
        %v973 = vand.u32 %v224, 4294901760
        %974 = vmatmul.mubr.f32.gmra.mrb[0].mxu0 %v973
        %v975 = vpop.f32.mrb[0].mxu0
        %v976 = vadd.f32 %v519, %v975
        %v977 = vpop.f32.mrb[0].mxu0
        %v978 = vand.u32 %v229, 4294901760
        %979 = vmatprep.mubr.f32.mxu0 %v978
        %v980 = vand.u32 %v228, 4294901760
        %981 = vmatmul.mubr.f32.gmra.mrb[0].mxu0 %v980
        %v982 = vpop.f32.mrb[0].mxu0
        %v983 = vadd.f32 %v534, %v982
        %v984 = vpop.f32.mrb[0].mxu0
        %v985 = vand.u32 %v233, 4294901760
        %986 = vmatprep.mubr.f32.mxu0 %v985
        %v987 = vand.u32 %v232, 4294901760
        %988 = vmatmul.mubr.f32.gmra.mrb[0].mxu0 %v987
        %v989 = vpop.f32.mrb[0].mxu0
        %v990 = vadd.f32 %v549, %v989
        %v991 = vpop.f32.mrb[0].mxu0
        %v992 = vand.u32 %v237, 4294901760
        %993 = vmatprep.mubr.f32.mxu0 %v992
        %v994 = vand.u32 %v236, 4294901760
        %995 = vmatmul.mubr.f32.gmra.mrb[0].mxu0 %v994
        %v996 = vpop.f32.mrb[0].mxu0
        %v997 = vadd.f32 %v564, %v996
        %v998 = vpop.f32.mrb[0].mxu0
        %v999 = vand.u32 %v241, 4294901760
        %1000 = vmatprep.mubr.f32.mxu0 %v999
        %v1001 = vand.u32 %v240, 4294901760
        %1002 = vmatmul.mubr.f32.gmra.mrb[0].mxu0 %v1001
        %v1003 = vpop.f32.mrb[0].mxu0
        %v1004 = vadd.f32 %v579, %v1003
        %v1005 = vpop.f32.mrb[0].mxu0
        %v1006 = vand.u32 %v245, 4294901760
        %1007 = vmatprep.mubr.f32.mxu0 %v1006
        %v1008 = vand.u32 %v244, 4294901760
        %1009 = vmatmul.mubr.f32.gmra.mrb[0].mxu0 %v1008
        %v1010 = vpop.f32.mrb[0].mxu0
        %v1011 = vadd.f32 %v594, %v1010
        %v1012 = vpop.f32.mrb[0].mxu0
        %v1013 = vand.u32 %v249, 4294901760
        %1014 = vmatprep.mubr.f32.mxu0 %v1013
        %v1015 = vand.u32 %v248, 4294901760
        %1016 = vmatmul.mubr.f32.gmra.mrb[0].mxu0 %v1015
        %v1017 = vpop.f32.mrb[0].mxu0
        %v1018 = vadd.f32 %v609, %v1017
        %v1019 = vpop.f32.mrb[0].mxu0
        %v1020 = vand.u32 %v253, 4294901760
        %1021 = vmatprep.mubr.f32.mxu0 %v1020
        %v1022 = vand.u32 %v252, 4294901760
        %1023 = vmatmul.mubr.f32.gmra.mrb[0].mxu0 %v1022
        %v1024 = vpop.f32.mrb[0].mxu0
        %v1025 = vadd.f32 %v624, %v1024
        %v1026 = vpop.f32.mrb[0].mxu0
        %v1027 = vand.u32 %v257, 4294901760
        %1028 = vmatprep.mubr.f32.mxu0 %v1027
        %v1029 = vand.u32 %v256, 4294901760
        %1030 = vmatmul.mubr.f32.gmra.mrb[0].mxu0 %v1029
        %v1031 = vpop.f32.mrb[0].mxu0
        %v1032 = vadd.f32 %v639, %v1031
        %v1033 = vpop.f32.mrb[0].mxu0
        %v1034 = vand.u32 %v261, 4294901760
        %1035 = vmatprep.mubr.f32.mxu0 %v1034
        %v1036 = vand.u32 %v260, 4294901760
        %1037 = vmatmul.mubr.f32.gmra.mrb[0].mxu0 %v1036
        %v1038 = vpop.f32.mrb[0].mxu0
        %v1039 = vadd.f32 %v654, %v1038
        %v1040 = vpop.f32.mrb[0].mxu0
        %v1041 = vand.u32 %v265, 4294901760
        %1042 = vmatprep.mubr.f32.mxu0 %v1041
        %v1043 = vand.u32 %v264, 4294901760
        %1044 = vmatmul.mubr.f32.gmra.mrb[0].mxu0 %v1043
        %v1045 = vpop.f32.mrb[0].mxu0
        %v1046 = vadd.f32 %v669, %v1045
        %v1047 = vpop.f32.mrb[0].mxu0
        %v1048 = vand.u32 %v269, 4294901760
        %1049 = vmatprep.mubr.f32.mxu0 %v1048
        %v1050 = vand.u32 %v268, 4294901760
        %1051 = vmatmul.mubr.f32.gmra.mrb[0].mxu0 %v1050
        %v1052 = vpop.f32.mrb[0].mxu0
        %v1053 = vadd.f32 %v684, %v1052
        %v1054 = vpop.f32.mrb[0].mxu0
        %v1055 = vand.u32 %v273, 4294901760
        %1056 = vmatprep.mubr.f32.mxu0 %v1055
        %v1057 = vand.u32 %v272, 4294901760
        %1058 = vmatmul.mubr.f32.gmra.mrb[0].mxu0 %v1057
        %v1059 = vpop.f32.mrb[0].mxu0
        %v1060 = vadd.f32 %v699, %v1059
        %v1061 = vpop.f32.mrb[0].mxu0
        %v1062 = vand.u32 %v277, 4294901760
        %1063 = vmatprep.mubr.f32.mxu0 %v1062
        %v1064 = vand.u32 %v276, 4294901760
        %1065 = vmatmul.mubr.f32.gmra.mrb[0].mxu0 %v1064
        %v1066 = vpop.f32.mrb[0].mxu0
        %v1067 = vadd.f32 %v714, %v1066
        %v1068 = vpop.f32.mrb[0].mxu0
        %v1069 = vand.u32 %v281, 4294901760
        %1070 = vmatprep.mubr.f32.mxu0 %v1069
        %v1071 = vand.u32 %v280, 4294901760
        %1072 = vmatmul.mubr.f32.gmra.mrb[0].mxu0 %v1071
        %v1073 = vpop.f32.mrb[0].mxu0
        %v1074 = vadd.f32 %v729, %v1073
        %v1075 = vpop.f32.mrb[0].mxu0
        %v1076 = vand.u32 %v285, 4294901760
        %1077 = vmatprep.mubr.f32.mxu0 %v1076
        %v1078 = vand.u32 %v284, 4294901760
        %1079 = vmatmul.mubr.f32.gmra.mrb[0].mxu0 %v1078
        %v1080 = vpop.f32.mrb[0].mxu0
        %v1081 = vadd.f32 %v744, %v1080
        %v1082 = vpop.f32.mrb[0].mxu0
        %1083 = vdwg.mxu0
        %1084 = vmatprep.subr.mxu0 0.0
        %v1085 = vand.u32 %v288, 4294901760
        %v1086 = vsub.f32 %v288, %v1085
        %1087 = vmatpush1.msra.mxu0 %v1086
        %1088 = vmatprep.subr.mxu0 0.0
        %v1089 = vand.u32 %v289, 4294901760
        %v1090 = vsub.f32 %v289, %v1089
        %1091 = vmatpush1.msra.mxu0 %v1090
        %1092 = vmatprep.subr.mxu0 0.0
        %v1093 = vand.u32 %v290, 4294901760
        %v1094 = vsub.f32 %v290, %v1093
        %1095 = vmatpush1.msra.mxu0 %v1094
        %1096 = vmatprep.subr.mxu0 0.0
        %v1097 = vand.u32 %v291, 4294901760
        %v1098 = vsub.f32 %v291, %v1097
        %1099 = vmatpush1.msra.mxu0 %v1098
        %1100 = vmatprep.subr.mxu0 0.0
        %v1101 = vand.u32 %v292, 4294901760
        %v1102 = vsub.f32 %v292, %v1101
        %1103 = vmatpush1.msra.mxu0 %v1102
        %1104 = vmatprep.subr.mxu0 0.0
        %v1105 = vand.u32 %v293, 4294901760
        %v1106 = vsub.f32 %v293, %v1105
        %1107 = vmatpush1.msra.mxu0 %v1106
        %1108 = vmatprep.subr.mxu0 0.0
        %v1109 = vand.u32 %v294, 4294901760
        %v1110 = vsub.f32 %v294, %v1109
        %1111 = vmatpush1.msra.mxu0 %v1110
        %1112 = vmatprep.subr.mxu0 0.0
        %v1113 = vand.u32 %v295, 4294901760
        %v1114 = vsub.f32 %v295, %v1113
        %1115 = vmatpush1.msra.mxu0 %v1114
        %1116 = vmatprep.subr.mxu0 0.0
        %v1117 = vand.u32 %v296, 4294901760
        %v1118 = vsub.f32 %v296, %v1117
        %1119 = vmatpush1.msra.mxu0 %v1118
        %1120 = vmatprep.subr.mxu0 0.0
        %v1121 = vand.u32 %v297, 4294901760
        %v1122 = vsub.f32 %v297, %v1121
        %1123 = vmatpush1.msra.mxu0 %v1122
        %1124 = vmatprep.subr.mxu0 0.0
        %v1125 = vand.u32 %v298, 4294901760
        %v1126 = vsub.f32 %v298, %v1125
        %1127 = vmatpush1.msra.mxu0 %v1126
        %1128 = vmatprep.subr.mxu0 0.0
        %v1129 = vand.u32 %v299, 4294901760
        %v1130 = vsub.f32 %v299, %v1129
        %1131 = vmatpush1.msra.mxu0 %v1130
        %1132 = vmatprep.subr.mxu0 0.0
        %v1133 = vand.u32 %v300, 4294901760
        %v1134 = vsub.f32 %v300, %v1133
        %1135 = vmatpush1.msra.mxu0 %v1134
        %1136 = vmatprep.subr.mxu0 0.0
        %v1137 = vand.u32 %v301, 4294901760
        %v1138 = vsub.f32 %v301, %v1137
        %1139 = vmatpush1.msra.mxu0 %v1138
        %1140 = vmatprep.subr.mxu0 0.0
        %v1141 = vand.u32 %v302, 4294901760
        %v1142 = vsub.f32 %v302, %v1141
        %1143 = vmatpush1.msra.mxu0 %v1142
        %1144 = vmatprep.subr.mxu0 0.0
        %v1145 = vand.u32 %v303, 4294901760
        %v1146 = vsub.f32 %v303, %v1145
        %1147 = vmatpush1.msra.mxu0 %v1146
        %1148 = vmatprep.subr.mxu0 0.0
        %v1149 = vand.u32 %v304, 4294901760
        %v1150 = vsub.f32 %v304, %v1149
        %1151 = vmatpush1.msra.mxu0 %v1150
        %1152 = vmatprep.subr.mxu0 0.0
        %v1153 = vand.u32 %v305, 4294901760
        %v1154 = vsub.f32 %v305, %v1153
        %1155 = vmatpush1.msra.mxu0 %v1154
        %1156 = vmatprep.subr.mxu0 0.0
        %v1157 = vand.u32 %v306, 4294901760
        %v1158 = vsub.f32 %v306, %v1157
        %1159 = vmatpush1.msra.mxu0 %v1158
        %1160 = vmatprep.subr.mxu0 0.0
        %v1161 = vand.u32 %v307, 4294901760
        %v1162 = vsub.f32 %v307, %v1161
        %1163 = vmatpush1.msra.mxu0 %v1162
        %1164 = vmatprep.subr.mxu0 0.0
        %v1165 = vand.u32 %v308, 4294901760
        %v1166 = vsub.f32 %v308, %v1165
        %1167 = vmatpush1.msra.mxu0 %v1166
        %1168 = vmatprep.subr.mxu0 0.0
        %v1169 = vand.u32 %v309, 4294901760
        %v1170 = vsub.f32 %v309, %v1169
        %1171 = vmatpush1.msra.mxu0 %v1170
        %1172 = vmatprep.subr.mxu0 0.0
        %v1173 = vand.u32 %v310, 4294901760
        %v1174 = vsub.f32 %v310, %v1173
        %1175 = vmatpush1.msra.mxu0 %v1174
        %1176 = vmatprep.subr.mxu0 0.0
        %v1177 = vand.u32 %v311, 4294901760
        %v1178 = vsub.f32 %v311, %v1177
        %1179 = vmatpush1.msra.mxu0 %v1178
        %1180 = vmatprep.subr.mxu0 0.0
        %v1181 = vand.u32 %v312, 4294901760
        %v1182 = vsub.f32 %v312, %v1181
        %1183 = vmatpush1.msra.mxu0 %v1182
        %1184 = vmatprep.subr.mxu0 0.0
        %v1185 = vand.u32 %v313, 4294901760
        %v1186 = vsub.f32 %v313, %v1185
        %1187 = vmatpush1.msra.mxu0 %v1186
        %1188 = vmatprep.subr.mxu0 0.0
        %v1189 = vand.u32 %v314, 4294901760
        %v1190 = vsub.f32 %v314, %v1189
        %1191 = vmatpush1.msra.mxu0 %v1190
        %1192 = vmatprep.subr.mxu0 0.0
        %v1193 = vand.u32 %v315, 4294901760
        %v1194 = vsub.f32 %v315, %v1193
        %1195 = vmatpush1.msra.mxu0 %v1194
        %1196 = vmatprep.subr.mxu0 0.0
        %v1197 = vand.u32 %v316, 4294901760
        %v1198 = vsub.f32 %v316, %v1197
        %1199 = vmatpush1.msra.mxu0 %v1198
        %1200 = vmatprep.subr.mxu0 0.0
        %v1201 = vand.u32 %v317, 4294901760
        %v1202 = vsub.f32 %v317, %v1201
        %1203 = vmatpush1.msra.mxu0 %v1202
        %1204 = vmatprep.subr.mxu0 0.0
        %v1205 = vand.u32 %v318, 4294901760
        %v1206 = vsub.f32 %v318, %v1205
        %1207 = vmatpush1.msra.mxu0 %v1206
        %1208 = vmatprep.subr.mxu0 0.0
        %v1209 = vand.u32 %v319, 4294901760
        %v1210 = vsub.f32 %v319, %v1209
        %1211 = vmatpush1.msra.mxu0 %v1210
        %v1212 = vand.u32 %v225, 4294901760
        %v1213 = vsub.f32 %v225, %v1212
        %1214 = vmatprep.mubr.f32.mxu0 %v1213
        %v1215 = vand.u32 %v224, 4294901760
        %v1216 = vsub.f32 %v224, %v1215
        %1217 = vmatmul.mubr.f32.gmra.mrb[0].mxu0 %v1216
        %v1218 = vpop.f32.mrb[0].mxu0
        %v1219 = vadd.f32 %v976, %v1218
        %v1220 = vpop.f32.mrb[0].mxu0
        %v1221 = vand.u32 %v229, 4294901760
        %v1222 = vsub.f32 %v229, %v1221
        %1223 = vmatprep.mubr.f32.mxu0 %v1222
        %v1224 = vand.u32 %v228, 4294901760
        %v1225 = vsub.f32 %v228, %v1224
        %1226 = vmatmul.mubr.f32.gmra.mrb[0].mxu0 %v1225
        %v1227 = vpop.f32.mrb[0].mxu0
        %v1228 = vadd.f32 %v983, %v1227
        %v1229 = vpop.f32.mrb[0].mxu0
        %v1230 = vand.u32 %v233, 4294901760
        %v1231 = vsub.f32 %v233, %v1230
        %1232 = vmatprep.mubr.f32.mxu0 %v1231
        %v1233 = vand.u32 %v232, 4294901760
        %v1234 = vsub.f32 %v232, %v1233
        %1235 = vmatmul.mubr.f32.gmra.mrb[0].mxu0 %v1234
        %v1236 = vpop.f32.mrb[0].mxu0
        %v1237 = vadd.f32 %v990, %v1236
        %v1238 = vpop.f32.mrb[0].mxu0
        %v1239 = vand.u32 %v237, 4294901760
        %v1240 = vsub.f32 %v237, %v1239
        %1241 = vmatprep.mubr.f32.mxu0 %v1240
        %v1242 = vand.u32 %v236, 4294901760
        %v1243 = vsub.f32 %v236, %v1242
        %1244 = vmatmul.mubr.f32.gmra.mrb[0].mxu0 %v1243
        %v1245 = vpop.f32.mrb[0].mxu0
        %v1246 = vadd.f32 %v997, %v1245
        %v1247 = vpop.f32.mrb[0].mxu0
        %v1248 = vand.u32 %v241, 4294901760
        %v1249 = vsub.f32 %v241, %v1248
        %1250 = vmatprep.mubr.f32.mxu0 %v1249
        %v1251 = vand.u32 %v240, 4294901760
        %v1252 = vsub.f32 %v240, %v1251
        %1253 = vmatmul.mubr.f32.gmra.mrb[0].mxu0 %v1252
        %v1254 = vpop.f32.mrb[0].mxu0
        %v1255 = vadd.f32 %v1004, %v1254
        %v1256 = vpop.f32.mrb[0].mxu0
        %v1257 = vand.u32 %v245, 4294901760
        %v1258 = vsub.f32 %v245, %v1257
        %1259 = vmatprep.mubr.f32.mxu0 %v1258
        %v1260 = vand.u32 %v244, 4294901760
        %v1261 = vsub.f32 %v244, %v1260
        %1262 = vmatmul.mubr.f32.gmra.mrb[0].mxu0 %v1261
        %v1263 = vpop.f32.mrb[0].mxu0
        %v1264 = vadd.f32 %v1011, %v1263
        %v1265 = vpop.f32.mrb[0].mxu0
        %v1266 = vand.u32 %v249, 4294901760
        %v1267 = vsub.f32 %v249, %v1266
        %1268 = vmatprep.mubr.f32.mxu0 %v1267
        %v1269 = vand.u32 %v248, 4294901760
        %v1270 = vsub.f32 %v248, %v1269
        %1271 = vmatmul.mubr.f32.gmra.mrb[0].mxu0 %v1270
        %v1272 = vpop.f32.mrb[0].mxu0
        %v1273 = vadd.f32 %v1018, %v1272
        %v1274 = vpop.f32.mrb[0].mxu0
        %v1275 = vand.u32 %v253, 4294901760
        %v1276 = vsub.f32 %v253, %v1275
        %1277 = vmatprep.mubr.f32.mxu0 %v1276
        %v1278 = vand.u32 %v252, 4294901760
        %v1279 = vsub.f32 %v252, %v1278
        %1280 = vmatmul.mubr.f32.gmra.mrb[0].mxu0 %v1279
        %v1281 = vpop.f32.mrb[0].mxu0
        %v1282 = vadd.f32 %v1025, %v1281
        %v1283 = vpop.f32.mrb[0].mxu0
        %v1284 = vand.u32 %v257, 4294901760
        %v1285 = vsub.f32 %v257, %v1284
        %1286 = vmatprep.mubr.f32.mxu0 %v1285
        %v1287 = vand.u32 %v256, 4294901760
        %v1288 = vsub.f32 %v256, %v1287
        %1289 = vmatmul.mubr.f32.gmra.mrb[0].mxu0 %v1288
        %v1290 = vpop.f32.mrb[0].mxu0
        %v1291 = vadd.f32 %v1032, %v1290
        %v1292 = vpop.f32.mrb[0].mxu0
        %v1293 = vand.u32 %v261, 4294901760
        %v1294 = vsub.f32 %v261, %v1293
        %1295 = vmatprep.mubr.f32.mxu0 %v1294
        %v1296 = vand.u32 %v260, 4294901760
        %v1297 = vsub.f32 %v260, %v1296
        %1298 = vmatmul.mubr.f32.gmra.mrb[0].mxu0 %v1297
        %v1299 = vpop.f32.mrb[0].mxu0
        %v1300 = vadd.f32 %v1039, %v1299
        %v1301 = vpop.f32.mrb[0].mxu0
        %v1302 = vand.u32 %v265, 4294901760
        %v1303 = vsub.f32 %v265, %v1302
        %1304 = vmatprep.mubr.f32.mxu0 %v1303
        %v1305 = vand.u32 %v264, 4294901760
        %v1306 = vsub.f32 %v264, %v1305
        %1307 = vmatmul.mubr.f32.gmra.mrb[0].mxu0 %v1306
        %v1308 = vpop.f32.mrb[0].mxu0
        %v1309 = vadd.f32 %v1046, %v1308
        %v1310 = vpop.f32.mrb[0].mxu0
        %v1311 = vand.u32 %v269, 4294901760
        %v1312 = vsub.f32 %v269, %v1311
        %1313 = vmatprep.mubr.f32.mxu0 %v1312
        %v1314 = vand.u32 %v268, 4294901760
        %v1315 = vsub.f32 %v268, %v1314
        %1316 = vmatmul.mubr.f32.gmra.mrb[0].mxu0 %v1315
        %v1317 = vpop.f32.mrb[0].mxu0
        %v1318 = vadd.f32 %v1053, %v1317
        %v1319 = vpop.f32.mrb[0].mxu0
        %v1320 = vand.u32 %v273, 4294901760
        %v1321 = vsub.f32 %v273, %v1320
        %1322 = vmatprep.mubr.f32.mxu0 %v1321
        %v1323 = vand.u32 %v272, 4294901760
        %v1324 = vsub.f32 %v272, %v1323
        %1325 = vmatmul.mubr.f32.gmra.mrb[0].mxu0 %v1324
        %v1326 = vpop.f32.mrb[0].mxu0
        %v1327 = vadd.f32 %v1060, %v1326
        %v1328 = vpop.f32.mrb[0].mxu0
        %v1329 = vand.u32 %v277, 4294901760
        %v1330 = vsub.f32 %v277, %v1329
        %1331 = vmatprep.mubr.f32.mxu0 %v1330
        %v1332 = vand.u32 %v276, 4294901760
        %v1333 = vsub.f32 %v276, %v1332
        %1334 = vmatmul.mubr.f32.gmra.mrb[0].mxu0 %v1333
        %v1335 = vpop.f32.mrb[0].mxu0
        %v1336 = vadd.f32 %v1067, %v1335
        %v1337 = vpop.f32.mrb[0].mxu0
        %v1338 = vand.u32 %v281, 4294901760
        %v1339 = vsub.f32 %v281, %v1338
        %1340 = vmatprep.mubr.f32.mxu0 %v1339
        %v1341 = vand.u32 %v280, 4294901760
        %v1342 = vsub.f32 %v280, %v1341
        %1343 = vmatmul.mubr.f32.gmra.mrb[0].mxu0 %v1342
        %v1344 = vpop.f32.mrb[0].mxu0
        %v1345 = vadd.f32 %v1074, %v1344
        %v1346 = vpop.f32.mrb[0].mxu0
        %v1347 = vand.u32 %v285, 4294901760
        %v1348 = vsub.f32 %v285, %v1347
        %1349 = vmatprep.mubr.f32.mxu0 %v1348
        %v1350 = vand.u32 %v284, 4294901760
        %v1351 = vsub.f32 %v284, %v1350
        %1352 = vmatmul.mubr.f32.gmra.mrb[0].mxu0 %v1351
        %v1353 = vpop.f32.mrb[0].mxu0
        %v1354 = vadd.f32 %v1081, %v1353
        %v1355 = vpop.f32.mrb[0].mxu0
        %1356 = vdwg.mxu0
        %1357 = vmatprep.subr.mxu0 0.0
        %v1358 = vand.u32 %v288, 4294901760
        %1359 = vmatpush1.msra.mxu0 %v1358
        %1360 = vmatprep.subr.mxu0 0.0
        %v1361 = vand.u32 %v289, 4294901760
        %1362 = vmatpush1.msra.mxu0 %v1361
        %1363 = vmatprep.subr.mxu0 0.0
        %v1364 = vand.u32 %v290, 4294901760
        %1365 = vmatpush1.msra.mxu0 %v1364
        %1366 = vmatprep.subr.mxu0 0.0
        %v1367 = vand.u32 %v291, 4294901760
        %1368 = vmatpush1.msra.mxu0 %v1367
        %1369 = vmatprep.subr.mxu0 0.0
        %v1370 = vand.u32 %v292, 4294901760
        %1371 = vmatpush1.msra.mxu0 %v1370
        %1372 = vmatprep.subr.mxu0 0.0
        %v1373 = vand.u32 %v293, 4294901760
        %1374 = vmatpush1.msra.mxu0 %v1373
        %1375 = vmatprep.subr.mxu0 0.0
        %v1376 = vand.u32 %v294, 4294901760
        %1377 = vmatpush1.msra.mxu0 %v1376
        %1378 = vmatprep.subr.mxu0 0.0
        %v1379 = vand.u32 %v295, 4294901760
        %1380 = vmatpush1.msra.mxu0 %v1379
        %1381 = vmatprep.subr.mxu0 0.0
        %v1382 = vand.u32 %v296, 4294901760
        %1383 = vmatpush1.msra.mxu0 %v1382
        %1384 = vmatprep.subr.mxu0 0.0
        %v1385 = vand.u32 %v297, 4294901760
        %1386 = vmatpush1.msra.mxu0 %v1385
        %1387 = vmatprep.subr.mxu0 0.0
        %v1388 = vand.u32 %v298, 4294901760
        %1389 = vmatpush1.msra.mxu0 %v1388
        %1390 = vmatprep.subr.mxu0 0.0
        %v1391 = vand.u32 %v299, 4294901760
        %1392 = vmatpush1.msra.mxu0 %v1391
        %1393 = vmatprep.subr.mxu0 0.0
        %v1394 = vand.u32 %v300, 4294901760
        %1395 = vmatpush1.msra.mxu0 %v1394
        %1396 = vmatprep.subr.mxu0 0.0
        %v1397 = vand.u32 %v301, 4294901760
        %1398 = vmatpush1.msra.mxu0 %v1397
        %1399 = vmatprep.subr.mxu0 0.0
        %v1400 = vand.u32 %v302, 4294901760
        %1401 = vmatpush1.msra.mxu0 %v1400
        %1402 = vmatprep.subr.mxu0 0.0
        %v1403 = vand.u32 %v303, 4294901760
        %1404 = vmatpush1.msra.mxu0 %v1403
        %1405 = vmatprep.subr.mxu0 0.0
        %v1406 = vand.u32 %v304, 4294901760
        %1407 = vmatpush1.msra.mxu0 %v1406
        %1408 = vmatprep.subr.mxu0 0.0
        %v1409 = vand.u32 %v305, 4294901760
        %1410 = vmatpush1.msra.mxu0 %v1409
        %1411 = vmatprep.subr.mxu0 0.0
        %v1412 = vand.u32 %v306, 4294901760
        %1413 = vmatpush1.msra.mxu0 %v1412
        %1414 = vmatprep.subr.mxu0 0.0
        %v1415 = vand.u32 %v307, 4294901760
        %1416 = vmatpush1.msra.mxu0 %v1415
        %1417 = vmatprep.subr.mxu0 0.0
        %v1418 = vand.u32 %v308, 4294901760
        %1419 = vmatpush1.msra.mxu0 %v1418
        %1420 = vmatprep.subr.mxu0 0.0
        %v1421 = vand.u32 %v309, 4294901760
        %1422 = vmatpush1.msra.mxu0 %v1421
        %1423 = vmatprep.subr.mxu0 0.0
        %v1424 = vand.u32 %v310, 4294901760
        %1425 = vmatpush1.msra.mxu0 %v1424
        %1426 = vmatprep.subr.mxu0 0.0
        %v1427 = vand.u32 %v311, 4294901760
        %1428 = vmatpush1.msra.mxu0 %v1427
        %1429 = vmatprep.subr.mxu0 0.0
        %v1430 = vand.u32 %v312, 4294901760
        %1431 = vmatpush1.msra.mxu0 %v1430
        %1432 = vmatprep.subr.mxu0 0.0
        %v1433 = vand.u32 %v313, 4294901760
        %1434 = vmatpush1.msra.mxu0 %v1433
        %1435 = vmatprep.subr.mxu0 0.0
        %v1436 = vand.u32 %v314, 4294901760
        %1437 = vmatpush1.msra.mxu0 %v1436
        %1438 = vmatprep.subr.mxu0 0.0
        %v1439 = vand.u32 %v315, 4294901760
        %1440 = vmatpush1.msra.mxu0 %v1439
        %1441 = vmatprep.subr.mxu0 0.0
        %v1442 = vand.u32 %v316, 4294901760
        %1443 = vmatpush1.msra.mxu0 %v1442
        %1444 = vmatprep.subr.mxu0 0.0
        %v1445 = vand.u32 %v317, 4294901760
        %1446 = vmatpush1.msra.mxu0 %v1445
        %1447 = vmatprep.subr.mxu0 0.0
        %v1448 = vand.u32 %v318, 4294901760
        %1449 = vmatpush1.msra.mxu0 %v1448
        %1450 = vmatprep.subr.mxu0 0.0
        %v1451 = vand.u32 %v319, 4294901760
        %1452 = vmatpush1.msra.mxu0 %v1451
        %v1453 = vand.u32 %v225, 4294901760
        %v1454 = vsub.f32 %v225, %v1453
        %v1455 = vand.u32 %v1454, 4294901760
        %1456 = vmatprep.mubr.f32.mxu0 %v1455
        %v1457 = vand.u32 %v224, 4294901760
        %v1458 = vsub.f32 %v224, %v1457
        %v1459 = vand.u32 %v1458, 4294901760
        %1460 = vmatmul.mubr.f32.gmra.mrb[0].mxu0 %v1459
        %v1461 = vpop.f32.mrb[0].mxu0
        %v1462 = vadd.f32 %v1219, %v1461
        %v1463 = vpop.f32.mrb[0].mxu0
        %v1464 = vand.u32 %v229, 4294901760
        %v1465 = vsub.f32 %v229, %v1464
        %v1466 = vand.u32 %v1465, 4294901760
        %1467 = vmatprep.mubr.f32.mxu0 %v1466
        %v1468 = vand.u32 %v228, 4294901760
        %v1469 = vsub.f32 %v228, %v1468
        %v1470 = vand.u32 %v1469, 4294901760
        %1471 = vmatmul.mubr.f32.gmra.mrb[0].mxu0 %v1470
        %v1472 = vpop.f32.mrb[0].mxu0
        %v1473 = vadd.f32 %v1228, %v1472
        %v1474 = vpop.f32.mrb[0].mxu0
        %v1475 = vand.u32 %v233, 4294901760
        %v1476 = vsub.f32 %v233, %v1475
        %v1477 = vand.u32 %v1476, 4294901760
        %1478 = vmatprep.mubr.f32.mxu0 %v1477
        %v1479 = vand.u32 %v232, 4294901760
        %v1480 = vsub.f32 %v232, %v1479
        %v1481 = vand.u32 %v1480, 4294901760
        %1482 = vmatmul.mubr.f32.gmra.mrb[0].mxu0 %v1481
        %v1483 = vpop.f32.mrb[0].mxu0
        %v1484 = vadd.f32 %v1237, %v1483
        %v1485 = vpop.f32.mrb[0].mxu0
        %v1486 = vand.u32 %v237, 4294901760
        %v1487 = vsub.f32 %v237, %v1486
        %v1488 = vand.u32 %v1487, 4294901760
        %1489 = vmatprep.mubr.f32.mxu0 %v1488
        %v1490 = vand.u32 %v236, 4294901760
        %v1491 = vsub.f32 %v236, %v1490
        %v1492 = vand.u32 %v1491, 4294901760
        %1493 = vmatmul.mubr.f32.gmra.mrb[0].mxu0 %v1492
        %v1494 = vpop.f32.mrb[0].mxu0
        %v1495 = vadd.f32 %v1246, %v1494
        %v1496 = vpop.f32.mrb[0].mxu0
        %v1497 = vand.u32 %v241, 4294901760
        %v1498 = vsub.f32 %v241, %v1497
        %v1499 = vand.u32 %v1498, 4294901760
        %1500 = vmatprep.mubr.f32.mxu0 %v1499
        %v1501 = vand.u32 %v240, 4294901760
        %v1502 = vsub.f32 %v240, %v1501
        %v1503 = vand.u32 %v1502, 4294901760
        %1504 = vmatmul.mubr.f32.gmra.mrb[0].mxu0 %v1503
        %v1505 = vpop.f32.mrb[0].mxu0
        %v1506 = vadd.f32 %v1255, %v1505
        %v1507 = vpop.f32.mrb[0].mxu0
        %v1508 = vand.u32 %v245, 4294901760
        %v1509 = vsub.f32 %v245, %v1508
        %v1510 = vand.u32 %v1509, 4294901760
        %1511 = vmatprep.mubr.f32.mxu0 %v1510
        %v1512 = vand.u32 %v244, 4294901760
        %v1513 = vsub.f32 %v244, %v1512
        %v1514 = vand.u32 %v1513, 4294901760
        %1515 = vmatmul.mubr.f32.gmra.mrb[0].mxu0 %v1514
        %v1516 = vpop.f32.mrb[0].mxu0
        %v1517 = vadd.f32 %v1264, %v1516
        %v1518 = vpop.f32.mrb[0].mxu0
        %v1519 = vand.u32 %v249, 4294901760
        %v1520 = vsub.f32 %v249, %v1519
        %v1521 = vand.u32 %v1520, 4294901760
        %1522 = vmatprep.mubr.f32.mxu0 %v1521
        %v1523 = vand.u32 %v248, 4294901760
        %v1524 = vsub.f32 %v248, %v1523
        %v1525 = vand.u32 %v1524, 4294901760
        %1526 = vmatmul.mubr.f32.gmra.mrb[0].mxu0 %v1525
        %v1527 = vpop.f32.mrb[0].mxu0
        %v1528 = vadd.f32 %v1273, %v1527
        %v1529 = vpop.f32.mrb[0].mxu0
        %v1530 = vand.u32 %v253, 4294901760
        %v1531 = vsub.f32 %v253, %v1530
        %v1532 = vand.u32 %v1531, 4294901760
        %1533 = vmatprep.mubr.f32.mxu0 %v1532
        %v1534 = vand.u32 %v252, 4294901760
        %v1535 = vsub.f32 %v252, %v1534
        %v1536 = vand.u32 %v1535, 4294901760
        %1537 = vmatmul.mubr.f32.gmra.mrb[0].mxu0 %v1536
        %v1538 = vpop.f32.mrb[0].mxu0
        %v1539 = vadd.f32 %v1282, %v1538
        %v1540 = vpop.f32.mrb[0].mxu0
        %v1541 = vand.u32 %v257, 4294901760
        %v1542 = vsub.f32 %v257, %v1541
        %v1543 = vand.u32 %v1542, 4294901760
        %1544 = vmatprep.mubr.f32.mxu0 %v1543
        %v1545 = vand.u32 %v256, 4294901760
        %v1546 = vsub.f32 %v256, %v1545
        %v1547 = vand.u32 %v1546, 4294901760
        %1548 = vmatmul.mubr.f32.gmra.mrb[0].mxu0 %v1547
        %v1549 = vpop.f32.mrb[0].mxu0
        %v1550 = vadd.f32 %v1291, %v1549
        %v1551 = vpop.f32.mrb[0].mxu0
        %v1552 = vand.u32 %v261, 4294901760
        %v1553 = vsub.f32 %v261, %v1552
        %v1554 = vand.u32 %v1553, 4294901760
        %1555 = vmatprep.mubr.f32.mxu0 %v1554
        %v1556 = vand.u32 %v260, 4294901760
        %v1557 = vsub.f32 %v260, %v1556
        %v1558 = vand.u32 %v1557, 4294901760
        %1559 = vmatmul.mubr.f32.gmra.mrb[0].mxu0 %v1558
        %v1560 = vpop.f32.mrb[0].mxu0
        %v1561 = vadd.f32 %v1300, %v1560
        %v1562 = vpop.f32.mrb[0].mxu0
        %v1563 = vand.u32 %v265, 4294901760
        %v1564 = vsub.f32 %v265, %v1563
        %v1565 = vand.u32 %v1564, 4294901760
        %1566 = vmatprep.mubr.f32.mxu0 %v1565
        %v1567 = vand.u32 %v264, 4294901760
        %v1568 = vsub.f32 %v264, %v1567
        %v1569 = vand.u32 %v1568, 4294901760
        %1570 = vmatmul.mubr.f32.gmra.mrb[0].mxu0 %v1569
        %v1571 = vpop.f32.mrb[0].mxu0
        %v1572 = vadd.f32 %v1309, %v1571
        %v1573 = vpop.f32.mrb[0].mxu0
        %v1574 = vand.u32 %v269, 4294901760
        %v1575 = vsub.f32 %v269, %v1574
        %v1576 = vand.u32 %v1575, 4294901760
        %1577 = vmatprep.mubr.f32.mxu0 %v1576
        %v1578 = vand.u32 %v268, 4294901760
        %v1579 = vsub.f32 %v268, %v1578
        %v1580 = vand.u32 %v1579, 4294901760
        %1581 = vmatmul.mubr.f32.gmra.mrb[0].mxu0 %v1580
        %v1582 = vpop.f32.mrb[0].mxu0
        %v1583 = vadd.f32 %v1318, %v1582
        %v1584 = vpop.f32.mrb[0].mxu0
        %v1585 = vand.u32 %v273, 4294901760
        %v1586 = vsub.f32 %v273, %v1585
        %v1587 = vand.u32 %v1586, 4294901760
        %1588 = vmatprep.mubr.f32.mxu0 %v1587
        %v1589 = vand.u32 %v272, 4294901760
        %v1590 = vsub.f32 %v272, %v1589
        %v1591 = vand.u32 %v1590, 4294901760
        %1592 = vmatmul.mubr.f32.gmra.mrb[0].mxu0 %v1591
        %v1593 = vpop.f32.mrb[0].mxu0
        %v1594 = vadd.f32 %v1327, %v1593
        %v1595 = vpop.f32.mrb[0].mxu0
        %v1596 = vand.u32 %v277, 4294901760
        %v1597 = vsub.f32 %v277, %v1596
        %v1598 = vand.u32 %v1597, 4294901760
        %1599 = vmatprep.mubr.f32.mxu0 %v1598
        %v1600 = vand.u32 %v276, 4294901760
        %v1601 = vsub.f32 %v276, %v1600
        %v1602 = vand.u32 %v1601, 4294901760
        %1603 = vmatmul.mubr.f32.gmra.mrb[0].mxu0 %v1602
        %v1604 = vpop.f32.mrb[0].mxu0
        %v1605 = vadd.f32 %v1336, %v1604
        %v1606 = vpop.f32.mrb[0].mxu0
        %v1607 = vand.u32 %v281, 4294901760
        %v1608 = vsub.f32 %v281, %v1607
        %v1609 = vand.u32 %v1608, 4294901760
        %1610 = vmatprep.mubr.f32.mxu0 %v1609
        %v1611 = vand.u32 %v280, 4294901760
        %v1612 = vsub.f32 %v280, %v1611
        %v1613 = vand.u32 %v1612, 4294901760
        %1614 = vmatmul.mubr.f32.gmra.mrb[0].mxu0 %v1613
        %v1615 = vpop.f32.mrb[0].mxu0
        %v1616 = vadd.f32 %v1345, %v1615
        %v1617 = vpop.f32.mrb[0].mxu0
        %v1618 = vand.u32 %v285, 4294901760
        %v1619 = vsub.f32 %v285, %v1618
        %v1620 = vand.u32 %v1619, 4294901760
        %1621 = vmatprep.mubr.f32.mxu0 %v1620
        %v1622 = vand.u32 %v284, 4294901760
        %v1623 = vsub.f32 %v284, %v1622
        %v1624 = vand.u32 %v1623, 4294901760
        %1625 = vmatmul.mubr.f32.gmra.mrb[0].mxu0 %v1624
        %v1626 = vpop.f32.mrb[0].mxu0
        %v1627 = vadd.f32 %v1354, %v1626
        %v1628 = vpop.f32.mrb[0].mxu0
        %1629 = vdwg.mxu0
        %1630 = vmatprep.subr.mxu0 0.0
        %v1631 = vand.u32 %v288, 4294901760
        %v1632 = vsub.f32 %v288, %v1631
        %v1633 = vand.u32 %v1632, 4294901760
        %1634 = vmatpush1.msra.mxu0 %v1633
        %1635 = vmatprep.subr.mxu0 0.0
        %v1636 = vand.u32 %v289, 4294901760
        %v1637 = vsub.f32 %v289, %v1636
        %v1638 = vand.u32 %v1637, 4294901760
        %1639 = vmatpush1.msra.mxu0 %v1638
        %1640 = vmatprep.subr.mxu0 0.0
        %v1641 = vand.u32 %v290, 4294901760
        %v1642 = vsub.f32 %v290, %v1641
        %v1643 = vand.u32 %v1642, 4294901760
        %1644 = vmatpush1.msra.mxu0 %v1643
        %1645 = vmatprep.subr.mxu0 0.0
        %v1646 = vand.u32 %v291, 4294901760
        %v1647 = vsub.f32 %v291, %v1646
        %v1648 = vand.u32 %v1647, 4294901760
        %1649 = vmatpush1.msra.mxu0 %v1648
        %1650 = vmatprep.subr.mxu0 0.0
        %v1651 = vand.u32 %v292, 4294901760
        %v1652 = vsub.f32 %v292, %v1651
        %v1653 = vand.u32 %v1652, 4294901760
        %1654 = vmatpush1.msra.mxu0 %v1653
        %1655 = vmatprep.subr.mxu0 0.0
        %v1656 = vand.u32 %v293, 4294901760
        %v1657 = vsub.f32 %v293, %v1656
        %v1658 = vand.u32 %v1657, 4294901760
        %1659 = vmatpush1.msra.mxu0 %v1658
        %1660 = vmatprep.subr.mxu0 0.0
        %v1661 = vand.u32 %v294, 4294901760
        %v1662 = vsub.f32 %v294, %v1661
        %v1663 = vand.u32 %v1662, 4294901760
        %1664 = vmatpush1.msra.mxu0 %v1663
        %1665 = vmatprep.subr.mxu0 0.0
        %v1666 = vand.u32 %v295, 4294901760
        %v1667 = vsub.f32 %v295, %v1666
        %v1668 = vand.u32 %v1667, 4294901760
        %1669 = vmatpush1.msra.mxu0 %v1668
        %1670 = vmatprep.subr.mxu0 0.0
        %v1671 = vand.u32 %v296, 4294901760
        %v1672 = vsub.f32 %v296, %v1671
        %v1673 = vand.u32 %v1672, 4294901760
        %1674 = vmatpush1.msra.mxu0 %v1673
        %1675 = vmatprep.subr.mxu0 0.0
        %v1676 = vand.u32 %v297, 4294901760
        %v1677 = vsub.f32 %v297, %v1676
        %v1678 = vand.u32 %v1677, 4294901760
        %1679 = vmatpush1.msra.mxu0 %v1678
        %1680 = vmatprep.subr.mxu0 0.0
        %v1681 = vand.u32 %v298, 4294901760
        %v1682 = vsub.f32 %v298, %v1681
        %v1683 = vand.u32 %v1682, 4294901760
        %1684 = vmatpush1.msra.mxu0 %v1683
        %1685 = vmatprep.subr.mxu0 0.0
        %v1686 = vand.u32 %v299, 4294901760
        %v1687 = vsub.f32 %v299, %v1686
        %v1688 = vand.u32 %v1687, 4294901760
        %1689 = vmatpush1.msra.mxu0 %v1688
        %1690 = vmatprep.subr.mxu0 0.0
        %v1691 = vand.u32 %v300, 4294901760
        %v1692 = vsub.f32 %v300, %v1691
        %v1693 = vand.u32 %v1692, 4294901760
        %1694 = vmatpush1.msra.mxu0 %v1693
        %1695 = vmatprep.subr.mxu0 0.0
        %v1696 = vand.u32 %v301, 4294901760
        %v1697 = vsub.f32 %v301, %v1696
        %v1698 = vand.u32 %v1697, 4294901760
        %1699 = vmatpush1.msra.mxu0 %v1698
        %1700 = vmatprep.subr.mxu0 0.0
        %v1701 = vand.u32 %v302, 4294901760
        %v1702 = vsub.f32 %v302, %v1701
        %v1703 = vand.u32 %v1702, 4294901760
        %1704 = vmatpush1.msra.mxu0 %v1703
        %1705 = vmatprep.subr.mxu0 0.0
        %v1706 = vand.u32 %v303, 4294901760
        %v1707 = vsub.f32 %v303, %v1706
        %v1708 = vand.u32 %v1707, 4294901760
        %1709 = vmatpush1.msra.mxu0 %v1708
        %1710 = vmatprep.subr.mxu0 0.0
        %v1711 = vand.u32 %v304, 4294901760
        %v1712 = vsub.f32 %v304, %v1711
        %v1713 = vand.u32 %v1712, 4294901760
        %1714 = vmatpush1.msra.mxu0 %v1713
        %1715 = vmatprep.subr.mxu0 0.0
        %v1716 = vand.u32 %v305, 4294901760
        %v1717 = vsub.f32 %v305, %v1716
        %v1718 = vand.u32 %v1717, 4294901760
        %1719 = vmatpush1.msra.mxu0 %v1718
        %1720 = vmatprep.subr.mxu0 0.0
        %v1721 = vand.u32 %v306, 4294901760
        %v1722 = vsub.f32 %v306, %v1721
        %v1723 = vand.u32 %v1722, 4294901760
        %1724 = vmatpush1.msra.mxu0 %v1723
        %1725 = vmatprep.subr.mxu0 0.0
        %v1726 = vand.u32 %v307, 4294901760
        %v1727 = vsub.f32 %v307, %v1726
        %v1728 = vand.u32 %v1727, 4294901760
        %1729 = vmatpush1.msra.mxu0 %v1728
        %1730 = vmatprep.subr.mxu0 0.0
        %v1731 = vand.u32 %v308, 4294901760
        %v1732 = vsub.f32 %v308, %v1731
        %v1733 = vand.u32 %v1732, 4294901760
        %1734 = vmatpush1.msra.mxu0 %v1733
        %1735 = vmatprep.subr.mxu0 0.0
        %v1736 = vand.u32 %v309, 4294901760
        %v1737 = vsub.f32 %v309, %v1736
        %v1738 = vand.u32 %v1737, 4294901760
        %1739 = vmatpush1.msra.mxu0 %v1738
        %1740 = vmatprep.subr.mxu0 0.0
        %v1741 = vand.u32 %v310, 4294901760
        %v1742 = vsub.f32 %v310, %v1741
        %v1743 = vand.u32 %v1742, 4294901760
        %1744 = vmatpush1.msra.mxu0 %v1743
        %1745 = vmatprep.subr.mxu0 0.0
        %v1746 = vand.u32 %v311, 4294901760
        %v1747 = vsub.f32 %v311, %v1746
        %v1748 = vand.u32 %v1747, 4294901760
        %1749 = vmatpush1.msra.mxu0 %v1748
        %1750 = vmatprep.subr.mxu0 0.0
        %v1751 = vand.u32 %v312, 4294901760
        %v1752 = vsub.f32 %v312, %v1751
        %v1753 = vand.u32 %v1752, 4294901760
        %1754 = vmatpush1.msra.mxu0 %v1753
        %1755 = vmatprep.subr.mxu0 0.0
        %v1756 = vand.u32 %v313, 4294901760
        %v1757 = vsub.f32 %v313, %v1756
        %v1758 = vand.u32 %v1757, 4294901760
        %1759 = vmatpush1.msra.mxu0 %v1758
        %1760 = vmatprep.subr.mxu0 0.0
        %v1761 = vand.u32 %v314, 4294901760
        %v1762 = vsub.f32 %v314, %v1761
        %v1763 = vand.u32 %v1762, 4294901760
        %1764 = vmatpush1.msra.mxu0 %v1763
        %1765 = vmatprep.subr.mxu0 0.0
        %v1766 = vand.u32 %v315, 4294901760
        %v1767 = vsub.f32 %v315, %v1766
        %v1768 = vand.u32 %v1767, 4294901760
        %1769 = vmatpush1.msra.mxu0 %v1768
        %1770 = vmatprep.subr.mxu0 0.0
        %v1771 = vand.u32 %v316, 4294901760
        %v1772 = vsub.f32 %v316, %v1771
        %v1773 = vand.u32 %v1772, 4294901760
        %1774 = vmatpush1.msra.mxu0 %v1773
        %1775 = vmatprep.subr.mxu0 0.0
        %v1776 = vand.u32 %v317, 4294901760
        %v1777 = vsub.f32 %v317, %v1776
        %v1778 = vand.u32 %v1777, 4294901760
        %1779 = vmatpush1.msra.mxu0 %v1778
        %1780 = vmatprep.subr.mxu0 0.0
        %v1781 = vand.u32 %v318, 4294901760
        %v1782 = vsub.f32 %v318, %v1781
        %v1783 = vand.u32 %v1782, 4294901760
        %1784 = vmatpush1.msra.mxu0 %v1783
        %1785 = vmatprep.subr.mxu0 0.0
        %v1786 = vand.u32 %v319, 4294901760
        %v1787 = vsub.f32 %v319, %v1786
        %v1788 = vand.u32 %v1787, 4294901760
        %1789 = vmatpush1.msra.mxu0 %v1788
        %v1790 = vand.u32 %v225, 4294901760
        %1791 = vmatprep.mubr.f32.mxu0 %v1790
        %v1792 = vand.u32 %v224, 4294901760
        %1793 = vmatmul.mubr.f32.gmra.mrb[0].mxu0 %v1792
        %v1794 = vpop.f32.mrb[0].mxu0
        %v1795 = vadd.f32 %v1462, %v1794
        %v1796 = vpop.f32.mrb[0].mxu0
        %v1797 = vand.u32 %v229, 4294901760
        %1798 = vmatprep.mubr.f32.mxu0 %v1797
        %v1799 = vand.u32 %v228, 4294901760
        %1800 = vmatmul.mubr.f32.gmra.mrb[0].mxu0 %v1799
        %v1801 = vpop.f32.mrb[0].mxu0
        %v1802 = vadd.f32 %v1473, %v1801
        %v1803 = vpop.f32.mrb[0].mxu0
        %v1804 = vand.u32 %v233, 4294901760
        %1805 = vmatprep.mubr.f32.mxu0 %v1804
        %v1806 = vand.u32 %v232, 4294901760
        %1807 = vmatmul.mubr.f32.gmra.mrb[0].mxu0 %v1806
        %v1808 = vpop.f32.mrb[0].mxu0
        %v1809 = vadd.f32 %v1484, %v1808
        %v1810 = vpop.f32.mrb[0].mxu0
        %v1811 = vand.u32 %v237, 4294901760
        %1812 = vmatprep.mubr.f32.mxu0 %v1811
        %v1813 = vand.u32 %v236, 4294901760
        %1814 = vmatmul.mubr.f32.gmra.mrb[0].mxu0 %v1813
        %v1815 = vpop.f32.mrb[0].mxu0
        %v1816 = vadd.f32 %v1495, %v1815
        %v1817 = vpop.f32.mrb[0].mxu0
        %v1818 = vand.u32 %v241, 4294901760
        %1819 = vmatprep.mubr.f32.mxu0 %v1818
        %v1820 = vand.u32 %v240, 4294901760
        %1821 = vmatmul.mubr.f32.gmra.mrb[0].mxu0 %v1820
        %v1822 = vpop.f32.mrb[0].mxu0
        %v1823 = vadd.f32 %v1506, %v1822
        %v1824 = vpop.f32.mrb[0].mxu0
        %v1825 = vand.u32 %v245, 4294901760
        %1826 = vmatprep.mubr.f32.mxu0 %v1825
        %v1827 = vand.u32 %v244, 4294901760
        %1828 = vmatmul.mubr.f32.gmra.mrb[0].mxu0 %v1827
        %v1829 = vpop.f32.mrb[0].mxu0
        %v1830 = vadd.f32 %v1517, %v1829
        %v1831 = vpop.f32.mrb[0].mxu0
        %v1832 = vand.u32 %v249, 4294901760
        %1833 = vmatprep.mubr.f32.mxu0 %v1832
        %v1834 = vand.u32 %v248, 4294901760
        %1835 = vmatmul.mubr.f32.gmra.mrb[0].mxu0 %v1834
        %v1836 = vpop.f32.mrb[0].mxu0
        %v1837 = vadd.f32 %v1528, %v1836
        %v1838 = vpop.f32.mrb[0].mxu0
        %v1839 = vand.u32 %v253, 4294901760
        %1840 = vmatprep.mubr.f32.mxu0 %v1839
        %v1841 = vand.u32 %v252, 4294901760
        %1842 = vmatmul.mubr.f32.gmra.mrb[0].mxu0 %v1841
        %v1843 = vpop.f32.mrb[0].mxu0
        %v1844 = vadd.f32 %v1539, %v1843
        %v1845 = vpop.f32.mrb[0].mxu0
        %v1846 = vand.u32 %v257, 4294901760
        %1847 = vmatprep.mubr.f32.mxu0 %v1846
        %v1848 = vand.u32 %v256, 4294901760
        %1849 = vmatmul.mubr.f32.gmra.mrb[0].mxu0 %v1848
        %v1850 = vpop.f32.mrb[0].mxu0
        %v1851 = vadd.f32 %v1550, %v1850
        %v1852 = vpop.f32.mrb[0].mxu0
        %v1853 = vand.u32 %v261, 4294901760
        %1854 = vmatprep.mubr.f32.mxu0 %v1853
        %v1855 = vand.u32 %v260, 4294901760
        %1856 = vmatmul.mubr.f32.gmra.mrb[0].mxu0 %v1855
        %v1857 = vpop.f32.mrb[0].mxu0
        %v1858 = vadd.f32 %v1561, %v1857
        %v1859 = vpop.f32.mrb[0].mxu0
        %v1860 = vand.u32 %v265, 4294901760
        %1861 = vmatprep.mubr.f32.mxu0 %v1860
        %v1862 = vand.u32 %v264, 4294901760
        %1863 = vmatmul.mubr.f32.gmra.mrb[0].mxu0 %v1862
        %v1864 = vpop.f32.mrb[0].mxu0
        %v1865 = vadd.f32 %v1572, %v1864
        %v1866 = vpop.f32.mrb[0].mxu0
        %v1867 = vand.u32 %v269, 4294901760
        %1868 = vmatprep.mubr.f32.mxu0 %v1867
        %v1869 = vand.u32 %v268, 4294901760
        %1870 = vmatmul.mubr.f32.gmra.mrb[0].mxu0 %v1869
        %v1871 = vpop.f32.mrb[0].mxu0
        %v1872 = vadd.f32 %v1583, %v1871
        %v1873 = vpop.f32.mrb[0].mxu0
        %v1874 = vand.u32 %v273, 4294901760
        %1875 = vmatprep.mubr.f32.mxu0 %v1874
        %v1876 = vand.u32 %v272, 4294901760
        %1877 = vmatmul.mubr.f32.gmra.mrb[0].mxu0 %v1876
        %v1878 = vpop.f32.mrb[0].mxu0
        %v1879 = vadd.f32 %v1594, %v1878
        %v1880 = vpop.f32.mrb[0].mxu0
        %v1881 = vand.u32 %v277, 4294901760
        %1882 = vmatprep.mubr.f32.mxu0 %v1881
        %v1883 = vand.u32 %v276, 4294901760
        %1884 = vmatmul.mubr.f32.gmra.mrb[0].mxu0 %v1883
        %v1885 = vpop.f32.mrb[0].mxu0
        %v1886 = vadd.f32 %v1605, %v1885
        %v1887 = vpop.f32.mrb[0].mxu0
        %v1888 = vand.u32 %v281, 4294901760
        %1889 = vmatprep.mubr.f32.mxu0 %v1888
        %v1890 = vand.u32 %v280, 4294901760
        %1891 = vmatmul.mubr.f32.gmra.mrb[0].mxu0 %v1890
        %v1892 = vpop.f32.mrb[0].mxu0
        %v1893 = vadd.f32 %v1616, %v1892
        %v1894 = vpop.f32.mrb[0].mxu0
        %v1895 = vand.u32 %v285, 4294901760
        %1896 = vmatprep.mubr.f32.mxu0 %v1895
        %v1897 = vand.u32 %v284, 4294901760
        %1898 = vmatmul.mubr.f32.gmra.mrb[0].mxu0 %v1897
        %v1899 = vpop.f32.mrb[0].mxu0
        %v1900 = vadd.f32 %v1627, %v1899
        %v1901 = vpop.f32.mrb[0].mxu0
        %1902 = vdwg.mxu0
        %1903 = vmatprep.subr.mxu0 0.0
        %v1904 = vand.u32 %v288, 4294901760
        %1905 = vmatpush1.msra.mxu0 %v1904
        %1906 = vmatprep.subr.mxu0 0.0
        %v1907 = vand.u32 %v289, 4294901760
        %1908 = vmatpush1.msra.mxu0 %v1907
        %1909 = vmatprep.subr.mxu0 0.0
        %v1910 = vand.u32 %v290, 4294901760
        %1911 = vmatpush1.msra.mxu0 %v1910
        %1912 = vmatprep.subr.mxu0 0.0
        %v1913 = vand.u32 %v291, 4294901760
        %1914 = vmatpush1.msra.mxu0 %v1913
        %1915 = vmatprep.subr.mxu0 0.0
        %v1916 = vand.u32 %v292, 4294901760
        %1917 = vmatpush1.msra.mxu0 %v1916
        %1918 = vmatprep.subr.mxu0 0.0
        %v1919 = vand.u32 %v293, 4294901760
        %1920 = vmatpush1.msra.mxu0 %v1919
        %1921 = vmatprep.subr.mxu0 0.0
        %v1922 = vand.u32 %v294, 4294901760
        %1923 = vmatpush1.msra.mxu0 %v1922
        %1924 = vmatprep.subr.mxu0 0.0
        %v1925 = vand.u32 %v295, 4294901760
        %1926 = vmatpush1.msra.mxu0 %v1925
        %1927 = vmatprep.subr.mxu0 0.0
        %v1928 = vand.u32 %v296, 4294901760
        %1929 = vmatpush1.msra.mxu0 %v1928
        %1930 = vmatprep.subr.mxu0 0.0
        %v1931 = vand.u32 %v297, 4294901760
        %1932 = vmatpush1.msra.mxu0 %v1931
        %1933 = vmatprep.subr.mxu0 0.0
        %v1934 = vand.u32 %v298, 4294901760
        %1935 = vmatpush1.msra.mxu0 %v1934
        %1936 = vmatprep.subr.mxu0 0.0
        %v1937 = vand.u32 %v299, 4294901760
        %1938 = vmatpush1.msra.mxu0 %v1937
        %1939 = vmatprep.subr.mxu0 0.0
        %v1940 = vand.u32 %v300, 4294901760
        %1941 = vmatpush1.msra.mxu0 %v1940
        %1942 = vmatprep.subr.mxu0 0.0
        %v1943 = vand.u32 %v301, 4294901760
        %1944 = vmatpush1.msra.mxu0 %v1943
        %1945 = vmatprep.subr.mxu0 0.0
        %v1946 = vand.u32 %v302, 4294901760
        %1947 = vmatpush1.msra.mxu0 %v1946
        %1948 = vmatprep.subr.mxu0 0.0
        %v1949 = vand.u32 %v303, 4294901760
        %1950 = vmatpush1.msra.mxu0 %v1949
        %1951 = vmatprep.subr.mxu0 0.0
        %v1952 = vand.u32 %v304, 4294901760
        %1953 = vmatpush1.msra.mxu0 %v1952
        %1954 = vmatprep.subr.mxu0 0.0
        %v1955 = vand.u32 %v305, 4294901760
        %1956 = vmatpush1.msra.mxu0 %v1955
        %1957 = vmatprep.subr.mxu0 0.0
        %v1958 = vand.u32 %v306, 4294901760
        %1959 = vmatpush1.msra.mxu0 %v1958
        %1960 = vmatprep.subr.mxu0 0.0
        %v1961 = vand.u32 %v307, 4294901760
        %1962 = vmatpush1.msra.mxu0 %v1961
        %1963 = vmatprep.subr.mxu0 0.0
        %v1964 = vand.u32 %v308, 4294901760
        %1965 = vmatpush1.msra.mxu0 %v1964
        %1966 = vmatprep.subr.mxu0 0.0
        %v1967 = vand.u32 %v309, 4294901760
        %1968 = vmatpush1.msra.mxu0 %v1967
        %1969 = vmatprep.subr.mxu0 0.0
        %v1970 = vand.u32 %v310, 4294901760
        %1971 = vmatpush1.msra.mxu0 %v1970
        %1972 = vmatprep.subr.mxu0 0.0
        %v1973 = vand.u32 %v311, 4294901760
        %1974 = vmatpush1.msra.mxu0 %v1973
        %1975 = vmatprep.subr.mxu0 0.0
        %v1976 = vand.u32 %v312, 4294901760
        %1977 = vmatpush1.msra.mxu0 %v1976
        %1978 = vmatprep.subr.mxu0 0.0
        %v1979 = vand.u32 %v313, 4294901760
        %1980 = vmatpush1.msra.mxu0 %v1979
        %1981 = vmatprep.subr.mxu0 0.0
        %v1982 = vand.u32 %v314, 4294901760
        %1983 = vmatpush1.msra.mxu0 %v1982
        %1984 = vmatprep.subr.mxu0 0.0
        %v1985 = vand.u32 %v315, 4294901760
        %1986 = vmatpush1.msra.mxu0 %v1985
        %1987 = vmatprep.subr.mxu0 0.0
        %v1988 = vand.u32 %v316, 4294901760
        %1989 = vmatpush1.msra.mxu0 %v1988
        %1990 = vmatprep.subr.mxu0 0.0
        %v1991 = vand.u32 %v317, 4294901760
        %1992 = vmatpush1.msra.mxu0 %v1991
        %1993 = vmatprep.subr.mxu0 0.0
        %v1994 = vand.u32 %v318, 4294901760
        %1995 = vmatpush1.msra.mxu0 %v1994
        %1996 = vmatprep.subr.mxu0 0.0
        %v1997 = vand.u32 %v319, 4294901760
        %1998 = vmatpush1.msra.mxu0 %v1997
        %v1999 = vand.u32 %v225, 4294901760
        %2000 = vmatprep.mubr.f32.mxu0 %v1999
        %v2001 = vand.u32 %v224, 4294901760
        %2002 = vmatmul.mubr.f32.gmra.mrb[0].mxu0 %v2001
        %v2003 = vpop.f32.mrb[0].mxu0
        %v2004 = vadd.f32 %v1795, %v2003
        %v2005 = vpop.f32.mrb[0].mxu0
        %v2006 = vand.u32 %v229, 4294901760
        %2007 = vmatprep.mubr.f32.mxu0 %v2006
        %v2008 = vand.u32 %v228, 4294901760
        %2009 = vmatmul.mubr.f32.gmra.mrb[0].mxu0 %v2008
        %v2010 = vpop.f32.mrb[0].mxu0
        %v2011 = vadd.f32 %v1802, %v2010
        %v2012 = vpop.f32.mrb[0].mxu0
        %v2013 = vand.u32 %v233, 4294901760
        %2014 = vmatprep.mubr.f32.mxu0 %v2013
        %v2015 = vand.u32 %v232, 4294901760
        %2016 = vmatmul.mubr.f32.gmra.mrb[0].mxu0 %v2015
        %v2017 = vpop.f32.mrb[0].mxu0
        %v2018 = vadd.f32 %v1809, %v2017
        %v2019 = vpop.f32.mrb[0].mxu0
        %v2020 = vand.u32 %v237, 4294901760
        %2021 = vmatprep.mubr.f32.mxu0 %v2020
        %v2022 = vand.u32 %v236, 4294901760
        %2023 = vmatmul.mubr.f32.gmra.mrb[0].mxu0 %v2022
        %v2024 = vpop.f32.mrb[0].mxu0
        %v2025 = vadd.f32 %v1816, %v2024
        %v2026 = vpop.f32.mrb[0].mxu0
        %v2027 = vand.u32 %v241, 4294901760
        %2028 = vmatprep.mubr.f32.mxu0 %v2027
        %v2029 = vand.u32 %v240, 4294901760
        %2030 = vmatmul.mubr.f32.gmra.mrb[0].mxu0 %v2029
        %v2031 = vpop.f32.mrb[0].mxu0
        %v2032 = vadd.f32 %v1823, %v2031
        %v2033 = vpop.f32.mrb[0].mxu0
        %v2034 = vand.u32 %v245, 4294901760
        %2035 = vmatprep.mubr.f32.mxu0 %v2034
        %v2036 = vand.u32 %v244, 4294901760
        %2037 = vmatmul.mubr.f32.gmra.mrb[0].mxu0 %v2036
        %v2038 = vpop.f32.mrb[0].mxu0
        %v2039 = vadd.f32 %v1830, %v2038
        %v2040 = vpop.f32.mrb[0].mxu0
        %v2041 = vand.u32 %v249, 4294901760
        %2042 = vmatprep.mubr.f32.mxu0 %v2041
        %v2043 = vand.u32 %v248, 4294901760
        %2044 = vmatmul.mubr.f32.gmra.mrb[0].mxu0 %v2043
        %v2045 = vpop.f32.mrb[0].mxu0
        %v2046 = vadd.f32 %v1837, %v2045
        %v2047 = vpop.f32.mrb[0].mxu0
        %v2048 = vand.u32 %v253, 4294901760
        %2049 = vmatprep.mubr.f32.mxu0 %v2048
        %v2050 = vand.u32 %v252, 4294901760
        %2051 = vmatmul.mubr.f32.gmra.mrb[0].mxu0 %v2050
        %v2052 = vpop.f32.mrb[0].mxu0
        %v2053 = vadd.f32 %v1844, %v2052
        %v2054 = vpop.f32.mrb[0].mxu0
        %v2055 = vand.u32 %v257, 4294901760
        %2056 = vmatprep.mubr.f32.mxu0 %v2055
        %v2057 = vand.u32 %v256, 4294901760
        %2058 = vmatmul.mubr.f32.gmra.mrb[0].mxu0 %v2057
        %v2059 = vpop.f32.mrb[0].mxu0
        %v2060 = vadd.f32 %v1851, %v2059
        %v2061 = vpop.f32.mrb[0].mxu0
        %v2062 = vand.u32 %v261, 4294901760
        %2063 = vmatprep.mubr.f32.mxu0 %v2062
        %v2064 = vand.u32 %v260, 4294901760
        %2065 = vmatmul.mubr.f32.gmra.mrb[0].mxu0 %v2064
        %v2066 = vpop.f32.mrb[0].mxu0
        %v2067 = vadd.f32 %v1858, %v2066
        %v2068 = vpop.f32.mrb[0].mxu0
        %v2069 = vand.u32 %v265, 4294901760
        %2070 = vmatprep.mubr.f32.mxu0 %v2069
        %v2071 = vand.u32 %v264, 4294901760
        %2072 = vmatmul.mubr.f32.gmra.mrb[0].mxu0 %v2071
        %v2073 = vpop.f32.mrb[0].mxu0
        %v2074 = vadd.f32 %v1865, %v2073
        %v2075 = vpop.f32.mrb[0].mxu0
        %v2076 = vand.u32 %v269, 4294901760
        %2077 = vmatprep.mubr.f32.mxu0 %v2076
        %v2078 = vand.u32 %v268, 4294901760
        %2079 = vmatmul.mubr.f32.gmra.mrb[0].mxu0 %v2078
        %v2080 = vpop.f32.mrb[0].mxu0
        %v2081 = vadd.f32 %v1872, %v2080
        %v2082 = vpop.f32.mrb[0].mxu0
        %v2083 = vand.u32 %v273, 4294901760
        %2084 = vmatprep.mubr.f32.mxu0 %v2083
        %v2085 = vand.u32 %v272, 4294901760
        %2086 = vmatmul.mubr.f32.gmra.mrb[0].mxu0 %v2085
        %v2087 = vpop.f32.mrb[0].mxu0
        %v2088 = vadd.f32 %v1879, %v2087
        %v2089 = vpop.f32.mrb[0].mxu0
        %v2090 = vand.u32 %v277, 4294901760
        %2091 = vmatprep.mubr.f32.mxu0 %v2090
        %v2092 = vand.u32 %v276, 4294901760
        %2093 = vmatmul.mubr.f32.gmra.mrb[0].mxu0 %v2092
        %v2094 = vpop.f32.mrb[0].mxu0
        %v2095 = vadd.f32 %v1886, %v2094
        %v2096 = vpop.f32.mrb[0].mxu0
        %v2097 = vand.u32 %v281, 4294901760
        %2098 = vmatprep.mubr.f32.mxu0 %v2097
        %v2099 = vand.u32 %v280, 4294901760
        %2100 = vmatmul.mubr.f32.gmra.mrb[0].mxu0 %v2099
        %v2101 = vpop.f32.mrb[0].mxu0
        %v2102 = vadd.f32 %v1893, %v2101
        %v2103 = vpop.f32.mrb[0].mxu0
        %v2104 = vand.u32 %v285, 4294901760
        %2105 = vmatprep.mubr.f32.mxu0 %v2104
        %v2106 = vand.u32 %v284, 4294901760
        %2107 = vmatmul.mubr.f32.gmra.mrb[0].mxu0 %v2106
        %v2108 = vpop.f32.mrb[0].mxu0
        %v2109 = vadd.f32 %v1900, %v2108
        %v2110 = vpop.f32.mrb[0].mxu0
        %2111 = vdwg.mxu0
        %2112 = vmatprep.subr.mxu0 0.0
        %v2113 = vand.u32 %v320, 4294901760
        %2114 = vmatpush1.msra.mxu0 %v2113
        %2115 = vmatprep.subr.mxu0 0.0
        %v2116 = vand.u32 %v321, 4294901760
        %2117 = vmatpush1.msra.mxu0 %v2116
        %2118 = vmatprep.subr.mxu0 0.0
        %v2119 = vand.u32 %v322, 4294901760
        %2120 = vmatpush1.msra.mxu0 %v2119
        %2121 = vmatprep.subr.mxu0 0.0
        %v2122 = vand.u32 %v323, 4294901760
        %2123 = vmatpush1.msra.mxu0 %v2122
        %2124 = vmatprep.subr.mxu0 0.0
        %v2125 = vand.u32 %v324, 4294901760
        %2126 = vmatpush1.msra.mxu0 %v2125
        %2127 = vmatprep.subr.mxu0 0.0
        %v2128 = vand.u32 %v325, 4294901760
        %2129 = vmatpush1.msra.mxu0 %v2128
        %2130 = vmatprep.subr.mxu0 0.0
        %v2131 = vand.u32 %v326, 4294901760
        %2132 = vmatpush1.msra.mxu0 %v2131
        %2133 = vmatprep.subr.mxu0 0.0
        %v2134 = vand.u32 %v327, 4294901760
        %2135 = vmatpush1.msra.mxu0 %v2134
        %2136 = vmatprep.subr.mxu0 0.0
        %v2137 = vand.u32 %v328, 4294901760
        %2138 = vmatpush1.msra.mxu0 %v2137
        %2139 = vmatprep.subr.mxu0 0.0
        %v2140 = vand.u32 %v329, 4294901760
        %2141 = vmatpush1.msra.mxu0 %v2140
        %2142 = vmatprep.subr.mxu0 0.0
        %v2143 = vand.u32 %v330, 4294901760
        %2144 = vmatpush1.msra.mxu0 %v2143
        %2145 = vmatprep.subr.mxu0 0.0
        %v2146 = vand.u32 %v331, 4294901760
        %2147 = vmatpush1.msra.mxu0 %v2146
        %2148 = vmatprep.subr.mxu0 0.0
        %v2149 = vand.u32 %v332, 4294901760
        %2150 = vmatpush1.msra.mxu0 %v2149
        %2151 = vmatprep.subr.mxu0 0.0
        %v2152 = vand.u32 %v333, 4294901760
        %2153 = vmatpush1.msra.mxu0 %v2152
        %2154 = vmatprep.subr.mxu0 0.0
        %v2155 = vand.u32 %v334, 4294901760
        %2156 = vmatpush1.msra.mxu0 %v2155
        %2157 = vmatprep.subr.mxu0 0.0
        %v2158 = vand.u32 %v335, 4294901760
        %2159 = vmatpush1.msra.mxu0 %v2158
        %2160 = vmatprep.subr.mxu0 0.0
        %v2161 = vand.u32 %v336, 4294901760
        %2162 = vmatpush1.msra.mxu0 %v2161
        %2163 = vmatprep.subr.mxu0 0.0
        %v2164 = vand.u32 %v337, 4294901760
        %2165 = vmatpush1.msra.mxu0 %v2164
        %2166 = vmatprep.subr.mxu0 0.0
        %v2167 = vand.u32 %v338, 4294901760
        %2168 = vmatpush1.msra.mxu0 %v2167
        %2169 = vmatprep.subr.mxu0 0.0
        %v2170 = vand.u32 %v339, 4294901760
        %2171 = vmatpush1.msra.mxu0 %v2170
        %2172 = vmatprep.subr.mxu0 0.0
        %v2173 = vand.u32 %v340, 4294901760
        %2174 = vmatpush1.msra.mxu0 %v2173
        %2175 = vmatprep.subr.mxu0 0.0
        %v2176 = vand.u32 %v341, 4294901760
        %2177 = vmatpush1.msra.mxu0 %v2176
        %2178 = vmatprep.subr.mxu0 0.0
        %v2179 = vand.u32 %v342, 4294901760
        %2180 = vmatpush1.msra.mxu0 %v2179
        %2181 = vmatprep.subr.mxu0 0.0
        %v2182 = vand.u32 %v343, 4294901760
        %2183 = vmatpush1.msra.mxu0 %v2182
        %2184 = vmatprep.subr.mxu0 0.0
        %v2185 = vand.u32 %v344, 4294901760
        %2186 = vmatpush1.msra.mxu0 %v2185
        %2187 = vmatprep.subr.mxu0 0.0
        %v2188 = vand.u32 %v345, 4294901760
        %2189 = vmatpush1.msra.mxu0 %v2188
        %2190 = vmatprep.subr.mxu0 0.0
        %v2191 = vand.u32 %v346, 4294901760
        %2192 = vmatpush1.msra.mxu0 %v2191
        %2193 = vmatprep.subr.mxu0 0.0
        %v2194 = vand.u32 %v347, 4294901760
        %2195 = vmatpush1.msra.mxu0 %v2194
        %2196 = vmatprep.subr.mxu0 0.0
        %v2197 = vand.u32 %v348, 4294901760
        %2198 = vmatpush1.msra.mxu0 %v2197
        %2199 = vmatprep.subr.mxu0 0.0
        %v2200 = vand.u32 %v408, 4294901760
        %2201 = vmatpush1.msra.mxu0 %v2200
        %2202 = vmatprep.subr.mxu0 0.0
        %2203 = vmatpush1.msra.mxu0 0.0
        %2204 = vmatprep.subr.mxu0 0.0
        %2205 = vmatpush1.msra.mxu0 0.0
        %v2206 = vand.u32 %v359, 4294901760
        %v2207 = vsub.f32 %v359, %v2206
        %v2208 = vand.u32 %v2207, 4294901760
        %v2209 = vsub.f32 %v2207, %v2208
        %v2210 = vand.u32 %v2209, 4294901760
        %2211 = vmatprep.mubr.f32.mxu0 %v2210
        %v2212 = vand.u32 %v226, 4294901760
        %v2213 = vsub.f32 %v226, %v2212
        %v2214 = vand.u32 %v2213, 4294901760
        %v2215 = vsub.f32 %v2213, %v2214
        %v2216 = vand.u32 %v2215, 4294901760
        %2217 = vmatmul.mubr.f32.gmra.mrb[0].mxu0 %v2216
        %v2218 = vpop.f32.mrb[0].mxu0
        %v2219 = vadd.f32 %v2004, %v2218
        %v2220 = vpop.f32.mrb[0].mxu0
        %v2221 = vand.u32 %v362, 4294901760
        %v2222 = vsub.f32 %v362, %v2221
        %v2223 = vand.u32 %v2222, 4294901760
        %v2224 = vsub.f32 %v2222, %v2223
        %v2225 = vand.u32 %v2224, 4294901760
        %2226 = vmatprep.mubr.f32.mxu0 %v2225
        %v2227 = vand.u32 %v230, 4294901760
        %v2228 = vsub.f32 %v230, %v2227
        %v2229 = vand.u32 %v2228, 4294901760
        %v2230 = vsub.f32 %v2228, %v2229
        %v2231 = vand.u32 %v2230, 4294901760
        %2232 = vmatmul.mubr.f32.gmra.mrb[0].mxu0 %v2231
        %v2233 = vpop.f32.mrb[0].mxu0
        %v2234 = vadd.f32 %v2011, %v2233
        %v2235 = vpop.f32.mrb[0].mxu0
        %v2236 = vand.u32 %v365, 4294901760
        %v2237 = vsub.f32 %v365, %v2236
        %v2238 = vand.u32 %v2237, 4294901760
        %v2239 = vsub.f32 %v2237, %v2238
        %v2240 = vand.u32 %v2239, 4294901760
        %2241 = vmatprep.mubr.f32.mxu0 %v2240
        %v2242 = vand.u32 %v234, 4294901760
        %v2243 = vsub.f32 %v234, %v2242
        %v2244 = vand.u32 %v2243, 4294901760
        %v2245 = vsub.f32 %v2243, %v2244
        %v2246 = vand.u32 %v2245, 4294901760
        %2247 = vmatmul.mubr.f32.gmra.mrb[0].mxu0 %v2246
        %v2248 = vpop.f32.mrb[0].mxu0
        %v2249 = vadd.f32 %v2018, %v2248
        %v2250 = vpop.f32.mrb[0].mxu0
        %v2251 = vand.u32 %v368, 4294901760
        %v2252 = vsub.f32 %v368, %v2251
        %v2253 = vand.u32 %v2252, 4294901760
        %v2254 = vsub.f32 %v2252, %v2253
        %v2255 = vand.u32 %v2254, 4294901760
        %2256 = vmatprep.mubr.f32.mxu0 %v2255
        %v2257 = vand.u32 %v238, 4294901760
        %v2258 = vsub.f32 %v238, %v2257
        %v2259 = vand.u32 %v2258, 4294901760
        %v2260 = vsub.f32 %v2258, %v2259
        %v2261 = vand.u32 %v2260, 4294901760
        %2262 = vmatmul.mubr.f32.gmra.mrb[0].mxu0 %v2261
        %v2263 = vpop.f32.mrb[0].mxu0
        %v2264 = vadd.f32 %v2025, %v2263
        %v2265 = vpop.f32.mrb[0].mxu0
        %v2266 = vand.u32 %v371, 4294901760
        %v2267 = vsub.f32 %v371, %v2266
        %v2268 = vand.u32 %v2267, 4294901760
        %v2269 = vsub.f32 %v2267, %v2268
        %v2270 = vand.u32 %v2269, 4294901760
        %2271 = vmatprep.mubr.f32.mxu0 %v2270
        %v2272 = vand.u32 %v242, 4294901760
        %v2273 = vsub.f32 %v242, %v2272
        %v2274 = vand.u32 %v2273, 4294901760
        %v2275 = vsub.f32 %v2273, %v2274
        %v2276 = vand.u32 %v2275, 4294901760
        %2277 = vmatmul.mubr.f32.gmra.mrb[0].mxu0 %v2276
        %v2278 = vpop.f32.mrb[0].mxu0
        %v2279 = vadd.f32 %v2032, %v2278
        %v2280 = vpop.f32.mrb[0].mxu0
        %v2281 = vand.u32 %v374, 4294901760
        %v2282 = vsub.f32 %v374, %v2281
        %v2283 = vand.u32 %v2282, 4294901760
        %v2284 = vsub.f32 %v2282, %v2283
        %v2285 = vand.u32 %v2284, 4294901760
        %2286 = vmatprep.mubr.f32.mxu0 %v2285
        %v2287 = vand.u32 %v246, 4294901760
        %v2288 = vsub.f32 %v246, %v2287
        %v2289 = vand.u32 %v2288, 4294901760
        %v2290 = vsub.f32 %v2288, %v2289
        %v2291 = vand.u32 %v2290, 4294901760
        %2292 = vmatmul.mubr.f32.gmra.mrb[0].mxu0 %v2291
        %v2293 = vpop.f32.mrb[0].mxu0
        %v2294 = vadd.f32 %v2039, %v2293
        %v2295 = vpop.f32.mrb[0].mxu0
        %v2296 = vand.u32 %v377, 4294901760
        %v2297 = vsub.f32 %v377, %v2296
        %v2298 = vand.u32 %v2297, 4294901760
        %v2299 = vsub.f32 %v2297, %v2298
        %v2300 = vand.u32 %v2299, 4294901760
        %2301 = vmatprep.mubr.f32.mxu0 %v2300
        %v2302 = vand.u32 %v250, 4294901760
        %v2303 = vsub.f32 %v250, %v2302
        %v2304 = vand.u32 %v2303, 4294901760
        %v2305 = vsub.f32 %v2303, %v2304
        %v2306 = vand.u32 %v2305, 4294901760
        %2307 = vmatmul.mubr.f32.gmra.mrb[0].mxu0 %v2306
        %v2308 = vpop.f32.mrb[0].mxu0
        %v2309 = vadd.f32 %v2046, %v2308
        %v2310 = vpop.f32.mrb[0].mxu0
        %v2311 = vand.u32 %v380, 4294901760
        %v2312 = vsub.f32 %v380, %v2311
        %v2313 = vand.u32 %v2312, 4294901760
        %v2314 = vsub.f32 %v2312, %v2313
        %v2315 = vand.u32 %v2314, 4294901760
        %2316 = vmatprep.mubr.f32.mxu0 %v2315
        %v2317 = vand.u32 %v254, 4294901760
        %v2318 = vsub.f32 %v254, %v2317
        %v2319 = vand.u32 %v2318, 4294901760
        %v2320 = vsub.f32 %v2318, %v2319
        %v2321 = vand.u32 %v2320, 4294901760
        %2322 = vmatmul.mubr.f32.gmra.mrb[0].mxu0 %v2321
        %v2323 = vpop.f32.mrb[0].mxu0
        %v2324 = vadd.f32 %v2053, %v2323
        %v2325 = vpop.f32.mrb[0].mxu0
        %v2326 = vand.u32 %v383, 4294901760
        %v2327 = vsub.f32 %v383, %v2326
        %v2328 = vand.u32 %v2327, 4294901760
        %v2329 = vsub.f32 %v2327, %v2328
        %v2330 = vand.u32 %v2329, 4294901760
        %2331 = vmatprep.mubr.f32.mxu0 %v2330
        %v2332 = vand.u32 %v258, 4294901760
        %v2333 = vsub.f32 %v258, %v2332
        %v2334 = vand.u32 %v2333, 4294901760
        %v2335 = vsub.f32 %v2333, %v2334
        %v2336 = vand.u32 %v2335, 4294901760
        %2337 = vmatmul.mubr.f32.gmra.mrb[0].mxu0 %v2336
        %v2338 = vpop.f32.mrb[0].mxu0
        %v2339 = vadd.f32 %v2060, %v2338
        %v2340 = vpop.f32.mrb[0].mxu0
        %v2341 = vand.u32 %v386, 4294901760
        %v2342 = vsub.f32 %v386, %v2341
        %v2343 = vand.u32 %v2342, 4294901760
        %v2344 = vsub.f32 %v2342, %v2343
        %v2345 = vand.u32 %v2344, 4294901760
        %2346 = vmatprep.mubr.f32.mxu0 %v2345
        %v2347 = vand.u32 %v262, 4294901760
        %v2348 = vsub.f32 %v262, %v2347
        %v2349 = vand.u32 %v2348, 4294901760
        %v2350 = vsub.f32 %v2348, %v2349
        %v2351 = vand.u32 %v2350, 4294901760
        %2352 = vmatmul.mubr.f32.gmra.mrb[0].mxu0 %v2351
        %v2353 = vpop.f32.mrb[0].mxu0
        %v2354 = vadd.f32 %v2067, %v2353
        %v2355 = vpop.f32.mrb[0].mxu0
        %v2356 = vand.u32 %v389, 4294901760
        %v2357 = vsub.f32 %v389, %v2356
        %v2358 = vand.u32 %v2357, 4294901760
        %v2359 = vsub.f32 %v2357, %v2358
        %v2360 = vand.u32 %v2359, 4294901760
        %2361 = vmatprep.mubr.f32.mxu0 %v2360
        %v2362 = vand.u32 %v266, 4294901760
        %v2363 = vsub.f32 %v266, %v2362
        %v2364 = vand.u32 %v2363, 4294901760
        %v2365 = vsub.f32 %v2363, %v2364
        %v2366 = vand.u32 %v2365, 4294901760
        %2367 = vmatmul.mubr.f32.gmra.mrb[0].mxu0 %v2366
        %v2368 = vpop.f32.mrb[0].mxu0
        %v2369 = vadd.f32 %v2074, %v2368
        %v2370 = vpop.f32.mrb[0].mxu0
        %v2371 = vand.u32 %v392, 4294901760
        %v2372 = vsub.f32 %v392, %v2371
        %v2373 = vand.u32 %v2372, 4294901760
        %v2374 = vsub.f32 %v2372, %v2373
        %v2375 = vand.u32 %v2374, 4294901760
        %2376 = vmatprep.mubr.f32.mxu0 %v2375
        %v2377 = vand.u32 %v270, 4294901760
        %v2378 = vsub.f32 %v270, %v2377
        %v2379 = vand.u32 %v2378, 4294901760
        %v2380 = vsub.f32 %v2378, %v2379
        %v2381 = vand.u32 %v2380, 4294901760
        %2382 = vmatmul.mubr.f32.gmra.mrb[0].mxu0 %v2381
        %v2383 = vpop.f32.mrb[0].mxu0
        %v2384 = vadd.f32 %v2081, %v2383
        %v2385 = vpop.f32.mrb[0].mxu0
        %v2386 = vand.u32 %v395, 4294901760
        %v2387 = vsub.f32 %v395, %v2386
        %v2388 = vand.u32 %v2387, 4294901760
        %v2389 = vsub.f32 %v2387, %v2388
        %v2390 = vand.u32 %v2389, 4294901760
        %2391 = vmatprep.mubr.f32.mxu0 %v2390
        %v2392 = vand.u32 %v274, 4294901760
        %v2393 = vsub.f32 %v274, %v2392
        %v2394 = vand.u32 %v2393, 4294901760
        %v2395 = vsub.f32 %v2393, %v2394
        %v2396 = vand.u32 %v2395, 4294901760
        %2397 = vmatmul.mubr.f32.gmra.mrb[0].mxu0 %v2396
        %v2398 = vpop.f32.mrb[0].mxu0
        %v2399 = vadd.f32 %v2088, %v2398
        %v2400 = vpop.f32.mrb[0].mxu0
        %v2401 = vand.u32 %v398, 4294901760
        %v2402 = vsub.f32 %v398, %v2401
        %v2403 = vand.u32 %v2402, 4294901760
        %v2404 = vsub.f32 %v2402, %v2403
        %v2405 = vand.u32 %v2404, 4294901760
        %2406 = vmatprep.mubr.f32.mxu0 %v2405
        %v2407 = vand.u32 %v278, 4294901760
        %v2408 = vsub.f32 %v278, %v2407
        %v2409 = vand.u32 %v2408, 4294901760
        %v2410 = vsub.f32 %v2408, %v2409
        %v2411 = vand.u32 %v2410, 4294901760
        %2412 = vmatmul.mubr.f32.gmra.mrb[0].mxu0 %v2411
        %v2413 = vpop.f32.mrb[0].mxu0
        %v2414 = vadd.f32 %v2095, %v2413
        %v2415 = vpop.f32.mrb[0].mxu0
        %v2416 = vand.u32 %v401, 4294901760
        %v2417 = vsub.f32 %v401, %v2416
        %v2418 = vand.u32 %v2417, 4294901760
        %v2419 = vsub.f32 %v2417, %v2418
        %v2420 = vand.u32 %v2419, 4294901760
        %2421 = vmatprep.mubr.f32.mxu0 %v2420
        %v2422 = vand.u32 %v282, 4294901760
        %v2423 = vsub.f32 %v282, %v2422
        %v2424 = vand.u32 %v2423, 4294901760
        %v2425 = vsub.f32 %v2423, %v2424
        %v2426 = vand.u32 %v2425, 4294901760
        %2427 = vmatmul.mubr.f32.gmra.mrb[0].mxu0 %v2426
        %v2428 = vpop.f32.mrb[0].mxu0
        %v2429 = vadd.f32 %v2102, %v2428
        %v2430 = vpop.f32.mrb[0].mxu0
        %v2431 = vand.u32 %v404, 4294901760
        %v2432 = vsub.f32 %v404, %v2431
        %v2433 = vand.u32 %v2432, 4294901760
        %v2434 = vsub.f32 %v2432, %v2433
        %v2435 = vand.u32 %v2434, 4294901760
        %2436 = vmatprep.mubr.f32.mxu0 %v2435
        %v2437 = vand.u32 %v286, 4294901760
        %v2438 = vsub.f32 %v286, %v2437
        %v2439 = vand.u32 %v2438, 4294901760
        %v2440 = vsub.f32 %v2438, %v2439
        %v2441 = vand.u32 %v2440, 4294901760
        %2442 = vmatmul.mubr.f32.gmra.mrb[0].mxu0 %v2441
        %v2443 = vpop.f32.mrb[0].mxu0
        %v2444 = vadd.f32 %v2109, %v2443
        %v2445 = vpop.f32.mrb[0].mxu0
        %2446 = vdwg.mxu0
        %2447 = vmatprep.subr.mxu0 0.0
        %v2448 = vand.u32 %v320, 4294901760
        %v2449 = vsub.f32 %v320, %v2448
        %v2450 = vand.u32 %v2449, 4294901760
        %v2451 = vsub.f32 %v2449, %v2450
        %v2452 = vand.u32 %v2451, 4294901760
        %2453 = vmatpush1.msra.mxu0 %v2452
        %2454 = vmatprep.subr.mxu0 0.0
        %v2455 = vand.u32 %v321, 4294901760
        %v2456 = vsub.f32 %v321, %v2455
        %v2457 = vand.u32 %v2456, 4294901760
        %v2458 = vsub.f32 %v2456, %v2457
        %v2459 = vand.u32 %v2458, 4294901760
        %2460 = vmatpush1.msra.mxu0 %v2459
        %2461 = vmatprep.subr.mxu0 0.0
        %v2462 = vand.u32 %v322, 4294901760
        %v2463 = vsub.f32 %v322, %v2462
        %v2464 = vand.u32 %v2463, 4294901760
        %v2465 = vsub.f32 %v2463, %v2464
        %v2466 = vand.u32 %v2465, 4294901760
        %2467 = vmatpush1.msra.mxu0 %v2466
        %2468 = vmatprep.subr.mxu0 0.0
        %v2469 = vand.u32 %v323, 4294901760
        %v2470 = vsub.f32 %v323, %v2469
        %v2471 = vand.u32 %v2470, 4294901760
        %v2472 = vsub.f32 %v2470, %v2471
        %v2473 = vand.u32 %v2472, 4294901760
        %2474 = vmatpush1.msra.mxu0 %v2473
        %2475 = vmatprep.subr.mxu0 0.0
        %v2476 = vand.u32 %v324, 4294901760
        %v2477 = vsub.f32 %v324, %v2476
        %v2478 = vand.u32 %v2477, 4294901760
        %v2479 = vsub.f32 %v2477, %v2478
        %v2480 = vand.u32 %v2479, 4294901760
        %2481 = vmatpush1.msra.mxu0 %v2480
        %2482 = vmatprep.subr.mxu0 0.0
        %v2483 = vand.u32 %v325, 4294901760
        %v2484 = vsub.f32 %v325, %v2483
        %v2485 = vand.u32 %v2484, 4294901760
        %v2486 = vsub.f32 %v2484, %v2485
        %v2487 = vand.u32 %v2486, 4294901760
        %2488 = vmatpush1.msra.mxu0 %v2487
        %2489 = vmatprep.subr.mxu0 0.0
        %v2490 = vand.u32 %v326, 4294901760
        %v2491 = vsub.f32 %v326, %v2490
        %v2492 = vand.u32 %v2491, 4294901760
        %v2493 = vsub.f32 %v2491, %v2492
        %v2494 = vand.u32 %v2493, 4294901760
        %2495 = vmatpush1.msra.mxu0 %v2494
        %2496 = vmatprep.subr.mxu0 0.0
        %v2497 = vand.u32 %v327, 4294901760
        %v2498 = vsub.f32 %v327, %v2497
        %v2499 = vand.u32 %v2498, 4294901760
        %v2500 = vsub.f32 %v2498, %v2499
        %v2501 = vand.u32 %v2500, 4294901760
        %2502 = vmatpush1.msra.mxu0 %v2501
        %2503 = vmatprep.subr.mxu0 0.0
        %v2504 = vand.u32 %v328, 4294901760
        %v2505 = vsub.f32 %v328, %v2504
        %v2506 = vand.u32 %v2505, 4294901760
        %v2507 = vsub.f32 %v2505, %v2506
        %v2508 = vand.u32 %v2507, 4294901760
        %2509 = vmatpush1.msra.mxu0 %v2508
        %2510 = vmatprep.subr.mxu0 0.0
        %v2511 = vand.u32 %v329, 4294901760
        %v2512 = vsub.f32 %v329, %v2511
        %v2513 = vand.u32 %v2512, 4294901760
        %v2514 = vsub.f32 %v2512, %v2513
        %v2515 = vand.u32 %v2514, 4294901760
        %2516 = vmatpush1.msra.mxu0 %v2515
        %2517 = vmatprep.subr.mxu0 0.0
        %v2518 = vand.u32 %v330, 4294901760
        %v2519 = vsub.f32 %v330, %v2518
        %v2520 = vand.u32 %v2519, 4294901760
        %v2521 = vsub.f32 %v2519, %v2520
        %v2522 = vand.u32 %v2521, 4294901760
        %2523 = vmatpush1.msra.mxu0 %v2522
        %2524 = vmatprep.subr.mxu0 0.0
        %v2525 = vand.u32 %v331, 4294901760
        %v2526 = vsub.f32 %v331, %v2525
        %v2527 = vand.u32 %v2526, 4294901760
        %v2528 = vsub.f32 %v2526, %v2527
        %v2529 = vand.u32 %v2528, 4294901760
        %2530 = vmatpush1.msra.mxu0 %v2529
        %2531 = vmatprep.subr.mxu0 0.0
        %v2532 = vand.u32 %v332, 4294901760
        %v2533 = vsub.f32 %v332, %v2532
        %v2534 = vand.u32 %v2533, 4294901760
        %v2535 = vsub.f32 %v2533, %v2534
        %v2536 = vand.u32 %v2535, 4294901760
        %2537 = vmatpush1.msra.mxu0 %v2536
        %2538 = vmatprep.subr.mxu0 0.0
        %v2539 = vand.u32 %v333, 4294901760
        %v2540 = vsub.f32 %v333, %v2539
        %v2541 = vand.u32 %v2540, 4294901760
        %v2542 = vsub.f32 %v2540, %v2541
        %v2543 = vand.u32 %v2542, 4294901760
        %2544 = vmatpush1.msra.mxu0 %v2543
        %2545 = vmatprep.subr.mxu0 0.0
        %v2546 = vand.u32 %v334, 4294901760
        %v2547 = vsub.f32 %v334, %v2546
        %v2548 = vand.u32 %v2547, 4294901760
        %v2549 = vsub.f32 %v2547, %v2548
        %v2550 = vand.u32 %v2549, 4294901760
        %2551 = vmatpush1.msra.mxu0 %v2550
        %2552 = vmatprep.subr.mxu0 0.0
        %v2553 = vand.u32 %v335, 4294901760
        %v2554 = vsub.f32 %v335, %v2553
        %v2555 = vand.u32 %v2554, 4294901760
        %v2556 = vsub.f32 %v2554, %v2555
        %v2557 = vand.u32 %v2556, 4294901760
        %2558 = vmatpush1.msra.mxu0 %v2557
        %2559 = vmatprep.subr.mxu0 0.0
        %v2560 = vand.u32 %v336, 4294901760
        %v2561 = vsub.f32 %v336, %v2560
        %v2562 = vand.u32 %v2561, 4294901760
        %v2563 = vsub.f32 %v2561, %v2562
        %v2564 = vand.u32 %v2563, 4294901760
        %2565 = vmatpush1.msra.mxu0 %v2564
        %2566 = vmatprep.subr.mxu0 0.0
        %v2567 = vand.u32 %v337, 4294901760
        %v2568 = vsub.f32 %v337, %v2567
        %v2569 = vand.u32 %v2568, 4294901760
        %v2570 = vsub.f32 %v2568, %v2569
        %v2571 = vand.u32 %v2570, 4294901760
        %2572 = vmatpush1.msra.mxu0 %v2571
        %2573 = vmatprep.subr.mxu0 0.0
        %v2574 = vand.u32 %v338, 4294901760
        %v2575 = vsub.f32 %v338, %v2574
        %v2576 = vand.u32 %v2575, 4294901760
        %v2577 = vsub.f32 %v2575, %v2576
        %v2578 = vand.u32 %v2577, 4294901760
        %2579 = vmatpush1.msra.mxu0 %v2578
        %2580 = vmatprep.subr.mxu0 0.0
        %v2581 = vand.u32 %v339, 4294901760
        %v2582 = vsub.f32 %v339, %v2581
        %v2583 = vand.u32 %v2582, 4294901760
        %v2584 = vsub.f32 %v2582, %v2583
        %v2585 = vand.u32 %v2584, 4294901760
        %2586 = vmatpush1.msra.mxu0 %v2585
        %2587 = vmatprep.subr.mxu0 0.0
        %v2588 = vand.u32 %v340, 4294901760
        %v2589 = vsub.f32 %v340, %v2588
        %v2590 = vand.u32 %v2589, 4294901760
        %v2591 = vsub.f32 %v2589, %v2590
        %v2592 = vand.u32 %v2591, 4294901760
        %2593 = vmatpush1.msra.mxu0 %v2592
        %2594 = vmatprep.subr.mxu0 0.0
        %v2595 = vand.u32 %v341, 4294901760
        %v2596 = vsub.f32 %v341, %v2595
        %v2597 = vand.u32 %v2596, 4294901760
        %v2598 = vsub.f32 %v2596, %v2597
        %v2599 = vand.u32 %v2598, 4294901760
        %2600 = vmatpush1.msra.mxu0 %v2599
        %2601 = vmatprep.subr.mxu0 0.0
        %v2602 = vand.u32 %v342, 4294901760
        %v2603 = vsub.f32 %v342, %v2602
        %v2604 = vand.u32 %v2603, 4294901760
        %v2605 = vsub.f32 %v2603, %v2604
        %v2606 = vand.u32 %v2605, 4294901760
        %2607 = vmatpush1.msra.mxu0 %v2606
        %2608 = vmatprep.subr.mxu0 0.0
        %v2609 = vand.u32 %v343, 4294901760
        %v2610 = vsub.f32 %v343, %v2609
        %v2611 = vand.u32 %v2610, 4294901760
        %v2612 = vsub.f32 %v2610, %v2611
        %v2613 = vand.u32 %v2612, 4294901760
        %2614 = vmatpush1.msra.mxu0 %v2613
        %2615 = vmatprep.subr.mxu0 0.0
        %v2616 = vand.u32 %v344, 4294901760
        %v2617 = vsub.f32 %v344, %v2616
        %v2618 = vand.u32 %v2617, 4294901760
        %v2619 = vsub.f32 %v2617, %v2618
        %v2620 = vand.u32 %v2619, 4294901760
        %2621 = vmatpush1.msra.mxu0 %v2620
        %2622 = vmatprep.subr.mxu0 0.0
        %v2623 = vand.u32 %v345, 4294901760
        %v2624 = vsub.f32 %v345, %v2623
        %v2625 = vand.u32 %v2624, 4294901760
        %v2626 = vsub.f32 %v2624, %v2625
        %v2627 = vand.u32 %v2626, 4294901760
        %2628 = vmatpush1.msra.mxu0 %v2627
        %2629 = vmatprep.subr.mxu0 0.0
        %v2630 = vand.u32 %v346, 4294901760
        %v2631 = vsub.f32 %v346, %v2630
        %v2632 = vand.u32 %v2631, 4294901760
        %v2633 = vsub.f32 %v2631, %v2632
        %v2634 = vand.u32 %v2633, 4294901760
        %2635 = vmatpush1.msra.mxu0 %v2634
        %2636 = vmatprep.subr.mxu0 0.0
        %v2637 = vand.u32 %v347, 4294901760
        %v2638 = vsub.f32 %v347, %v2637
        %v2639 = vand.u32 %v2638, 4294901760
        %v2640 = vsub.f32 %v2638, %v2639
        %v2641 = vand.u32 %v2640, 4294901760
        %2642 = vmatpush1.msra.mxu0 %v2641
        %2643 = vmatprep.subr.mxu0 0.0
        %v2644 = vand.u32 %v348, 4294901760
        %v2645 = vsub.f32 %v348, %v2644
        %v2646 = vand.u32 %v2645, 4294901760
        %v2647 = vsub.f32 %v2645, %v2646
        %v2648 = vand.u32 %v2647, 4294901760
        %2649 = vmatpush1.msra.mxu0 %v2648
        %2650 = vmatprep.subr.mxu0 0.0
        %v2651 = vand.u32 %v408, 4294901760
        %v2652 = vsub.f32 %v408, %v2651
        %v2653 = vand.u32 %v2652, 4294901760
        %v2654 = vsub.f32 %v2652, %v2653
        %v2655 = vand.u32 %v2654, 4294901760
        %2656 = vmatpush1.msra.mxu0 %v2655
        %2657 = vmatprep.subr.mxu0 0.0
        %2658 = vmatpush1.msra.mxu0 0.0
        %2659 = vmatprep.subr.mxu0 0.0
        %2660 = vmatpush1.msra.mxu0 0.0
        %v2661 = vand.u32 %v359, 4294901760
        %2662 = vmatprep.mubr.f32.mxu0 %v2661
        %v2663 = vand.u32 %v226, 4294901760
        %2664 = vmatmul.mubr.f32.gmra.mrb[0].mxu0 %v2663
        %v2665 = vpop.f32.mrb[0].mxu0
        %v2666 = vadd.f32 %v2219, %v2665
        %v2667 = vpop.f32.mrb[0].mxu0
        %v2668 = vand.u32 %v362, 4294901760
        %2669 = vmatprep.mubr.f32.mxu0 %v2668
        %v2670 = vand.u32 %v230, 4294901760
        %2671 = vmatmul.mubr.f32.gmra.mrb[0].mxu0 %v2670
        %v2672 = vpop.f32.mrb[0].mxu0
        %v2673 = vadd.f32 %v2234, %v2672
        %v2674 = vpop.f32.mrb[0].mxu0
        %v2675 = vand.u32 %v365, 4294901760
        %2676 = vmatprep.mubr.f32.mxu0 %v2675
        %v2677 = vand.u32 %v234, 4294901760
        %2678 = vmatmul.mubr.f32.gmra.mrb[0].mxu0 %v2677
        %v2679 = vpop.f32.mrb[0].mxu0
        %v2680 = vadd.f32 %v2249, %v2679
        %v2681 = vpop.f32.mrb[0].mxu0
        %v2682 = vand.u32 %v368, 4294901760
        %2683 = vmatprep.mubr.f32.mxu0 %v2682
        %v2684 = vand.u32 %v238, 4294901760
        %2685 = vmatmul.mubr.f32.gmra.mrb[0].mxu0 %v2684
        %v2686 = vpop.f32.mrb[0].mxu0
        %v2687 = vadd.f32 %v2264, %v2686
        %v2688 = vpop.f32.mrb[0].mxu0
        %v2689 = vand.u32 %v371, 4294901760
        %2690 = vmatprep.mubr.f32.mxu0 %v2689
        %v2691 = vand.u32 %v242, 4294901760
        %2692 = vmatmul.mubr.f32.gmra.mrb[0].mxu0 %v2691
        %v2693 = vpop.f32.mrb[0].mxu0
        %v2694 = vadd.f32 %v2279, %v2693
        %v2695 = vpop.f32.mrb[0].mxu0
        %v2696 = vand.u32 %v374, 4294901760
        %2697 = vmatprep.mubr.f32.mxu0 %v2696
        %v2698 = vand.u32 %v246, 4294901760
        %2699 = vmatmul.mubr.f32.gmra.mrb[0].mxu0 %v2698
        %v2700 = vpop.f32.mrb[0].mxu0
        %v2701 = vadd.f32 %v2294, %v2700
        %v2702 = vpop.f32.mrb[0].mxu0
        %v2703 = vand.u32 %v377, 4294901760
        %2704 = vmatprep.mubr.f32.mxu0 %v2703
        %v2705 = vand.u32 %v250, 4294901760
        %2706 = vmatmul.mubr.f32.gmra.mrb[0].mxu0 %v2705
        %v2707 = vpop.f32.mrb[0].mxu0
        %v2708 = vadd.f32 %v2309, %v2707
        %v2709 = vpop.f32.mrb[0].mxu0
        %v2710 = vand.u32 %v380, 4294901760
        %2711 = vmatprep.mubr.f32.mxu0 %v2710
        %v2712 = vand.u32 %v254, 4294901760
        %2713 = vmatmul.mubr.f32.gmra.mrb[0].mxu0 %v2712
        %v2714 = vpop.f32.mrb[0].mxu0
        %v2715 = vadd.f32 %v2324, %v2714
        %v2716 = vpop.f32.mrb[0].mxu0
        %v2717 = vand.u32 %v383, 4294901760
        %2718 = vmatprep.mubr.f32.mxu0 %v2717
        %v2719 = vand.u32 %v258, 4294901760
        %2720 = vmatmul.mubr.f32.gmra.mrb[0].mxu0 %v2719
        %v2721 = vpop.f32.mrb[0].mxu0
        %v2722 = vadd.f32 %v2339, %v2721
        %v2723 = vpop.f32.mrb[0].mxu0
        %v2724 = vand.u32 %v386, 4294901760
        %2725 = vmatprep.mubr.f32.mxu0 %v2724
        %v2726 = vand.u32 %v262, 4294901760
        %2727 = vmatmul.mubr.f32.gmra.mrb[0].mxu0 %v2726
        %v2728 = vpop.f32.mrb[0].mxu0
        %v2729 = vadd.f32 %v2354, %v2728
        %v2730 = vpop.f32.mrb[0].mxu0
        %v2731 = vand.u32 %v389, 4294901760
        %2732 = vmatprep.mubr.f32.mxu0 %v2731
        %v2733 = vand.u32 %v266, 4294901760
        %2734 = vmatmul.mubr.f32.gmra.mrb[0].mxu0 %v2733
        %v2735 = vpop.f32.mrb[0].mxu0
        %v2736 = vadd.f32 %v2369, %v2735
        %v2737 = vpop.f32.mrb[0].mxu0
        %v2738 = vand.u32 %v392, 4294901760
        %2739 = vmatprep.mubr.f32.mxu0 %v2738
        %v2740 = vand.u32 %v270, 4294901760
        %2741 = vmatmul.mubr.f32.gmra.mrb[0].mxu0 %v2740
        %v2742 = vpop.f32.mrb[0].mxu0
        %v2743 = vadd.f32 %v2384, %v2742
        %v2744 = vpop.f32.mrb[0].mxu0
        %v2745 = vand.u32 %v395, 4294901760
        %2746 = vmatprep.mubr.f32.mxu0 %v2745
        %v2747 = vand.u32 %v274, 4294901760
        %2748 = vmatmul.mubr.f32.gmra.mrb[0].mxu0 %v2747
        %v2749 = vpop.f32.mrb[0].mxu0
        %v2750 = vadd.f32 %v2399, %v2749
        %v2751 = vpop.f32.mrb[0].mxu0
        %v2752 = vand.u32 %v398, 4294901760
        %2753 = vmatprep.mubr.f32.mxu0 %v2752
        %v2754 = vand.u32 %v278, 4294901760
        %2755 = vmatmul.mubr.f32.gmra.mrb[0].mxu0 %v2754
        %v2756 = vpop.f32.mrb[0].mxu0
        %v2757 = vadd.f32 %v2414, %v2756
        %v2758 = vpop.f32.mrb[0].mxu0
        %v2759 = vand.u32 %v401, 4294901760
        %2760 = vmatprep.mubr.f32.mxu0 %v2759
        %v2761 = vand.u32 %v282, 4294901760
        %2762 = vmatmul.mubr.f32.gmra.mrb[0].mxu0 %v2761
        %v2763 = vpop.f32.mrb[0].mxu0
        %v2764 = vadd.f32 %v2429, %v2763
        %v2765 = vpop.f32.mrb[0].mxu0
        %v2766 = vand.u32 %v404, 4294901760
        %2767 = vmatprep.mubr.f32.mxu0 %v2766
        %v2768 = vand.u32 %v286, 4294901760
        %2769 = vmatmul.mubr.f32.gmra.mrb[0].mxu0 %v2768
        %v2770 = vpop.f32.mrb[0].mxu0
        %v2771 = vadd.f32 %v2444, %v2770
        %v2772 = vpop.f32.mrb[0].mxu0
        %2773 = vdwg.mxu0
        %2774 = vmatprep.subr.mxu0 0.0
        %v2775 = vand.u32 %v320, 4294901760
        %v2776 = vsub.f32 %v320, %v2775
        %2777 = vmatpush1.msra.mxu0 %v2776
        %2778 = vmatprep.subr.mxu0 0.0
        %v2779 = vand.u32 %v321, 4294901760
        %v2780 = vsub.f32 %v321, %v2779
        %2781 = vmatpush1.msra.mxu0 %v2780
        %2782 = vmatprep.subr.mxu0 0.0
        %v2783 = vand.u32 %v322, 4294901760
        %v2784 = vsub.f32 %v322, %v2783
        %2785 = vmatpush1.msra.mxu0 %v2784
        %2786 = vmatprep.subr.mxu0 0.0
        %v2787 = vand.u32 %v323, 4294901760
        %v2788 = vsub.f32 %v323, %v2787
        %2789 = vmatpush1.msra.mxu0 %v2788
        %2790 = vmatprep.subr.mxu0 0.0
        %v2791 = vand.u32 %v324, 4294901760
        %v2792 = vsub.f32 %v324, %v2791
        %2793 = vmatpush1.msra.mxu0 %v2792
        %2794 = vmatprep.subr.mxu0 0.0
        %v2795 = vand.u32 %v325, 4294901760
        %v2796 = vsub.f32 %v325, %v2795
        %2797 = vmatpush1.msra.mxu0 %v2796
        %2798 = vmatprep.subr.mxu0 0.0
        %v2799 = vand.u32 %v326, 4294901760
        %v2800 = vsub.f32 %v326, %v2799
        %2801 = vmatpush1.msra.mxu0 %v2800
        %2802 = vmatprep.subr.mxu0 0.0
        %v2803 = vand.u32 %v327, 4294901760
        %v2804 = vsub.f32 %v327, %v2803
        %2805 = vmatpush1.msra.mxu0 %v2804
        %2806 = vmatprep.subr.mxu0 0.0
        %v2807 = vand.u32 %v328, 4294901760
        %v2808 = vsub.f32 %v328, %v2807
        %2809 = vmatpush1.msra.mxu0 %v2808
        %2810 = vmatprep.subr.mxu0 0.0
        %v2811 = vand.u32 %v329, 4294901760
        %v2812 = vsub.f32 %v329, %v2811
        %2813 = vmatpush1.msra.mxu0 %v2812
        %2814 = vmatprep.subr.mxu0 0.0
        %v2815 = vand.u32 %v330, 4294901760
        %v2816 = vsub.f32 %v330, %v2815
        %2817 = vmatpush1.msra.mxu0 %v2816
        %2818 = vmatprep.subr.mxu0 0.0
        %v2819 = vand.u32 %v331, 4294901760
        %v2820 = vsub.f32 %v331, %v2819
        %2821 = vmatpush1.msra.mxu0 %v2820
        %2822 = vmatprep.subr.mxu0 0.0
        %v2823 = vand.u32 %v332, 4294901760
        %v2824 = vsub.f32 %v332, %v2823
        %2825 = vmatpush1.msra.mxu0 %v2824
        %2826 = vmatprep.subr.mxu0 0.0
        %v2827 = vand.u32 %v333, 4294901760
        %v2828 = vsub.f32 %v333, %v2827
        %2829 = vmatpush1.msra.mxu0 %v2828
        %2830 = vmatprep.subr.mxu0 0.0
        %v2831 = vand.u32 %v334, 4294901760
        %v2832 = vsub.f32 %v334, %v2831
        %2833 = vmatpush1.msra.mxu0 %v2832
        %2834 = vmatprep.subr.mxu0 0.0
        %v2835 = vand.u32 %v335, 4294901760
        %v2836 = vsub.f32 %v335, %v2835
        %2837 = vmatpush1.msra.mxu0 %v2836
        %2838 = vmatprep.subr.mxu0 0.0
        %v2839 = vand.u32 %v336, 4294901760
        %v2840 = vsub.f32 %v336, %v2839
        %2841 = vmatpush1.msra.mxu0 %v2840
        %2842 = vmatprep.subr.mxu0 0.0
        %v2843 = vand.u32 %v337, 4294901760
        %v2844 = vsub.f32 %v337, %v2843
        %2845 = vmatpush1.msra.mxu0 %v2844
        %2846 = vmatprep.subr.mxu0 0.0
        %v2847 = vand.u32 %v338, 4294901760
        %v2848 = vsub.f32 %v338, %v2847
        %2849 = vmatpush1.msra.mxu0 %v2848
        %2850 = vmatprep.subr.mxu0 0.0
        %v2851 = vand.u32 %v339, 4294901760
        %v2852 = vsub.f32 %v339, %v2851
        %2853 = vmatpush1.msra.mxu0 %v2852
        %2854 = vmatprep.subr.mxu0 0.0
        %v2855 = vand.u32 %v340, 4294901760
        %v2856 = vsub.f32 %v340, %v2855
        %2857 = vmatpush1.msra.mxu0 %v2856
        %2858 = vmatprep.subr.mxu0 0.0
        %v2859 = vand.u32 %v341, 4294901760
        %v2860 = vsub.f32 %v341, %v2859
        %2861 = vmatpush1.msra.mxu0 %v2860
        %2862 = vmatprep.subr.mxu0 0.0
        %v2863 = vand.u32 %v342, 4294901760
        %v2864 = vsub.f32 %v342, %v2863
        %2865 = vmatpush1.msra.mxu0 %v2864
        %2866 = vmatprep.subr.mxu0 0.0
        %v2867 = vand.u32 %v343, 4294901760
        %v2868 = vsub.f32 %v343, %v2867
        %2869 = vmatpush1.msra.mxu0 %v2868
        %2870 = vmatprep.subr.mxu0 0.0
        %v2871 = vand.u32 %v344, 4294901760
        %v2872 = vsub.f32 %v344, %v2871
        %2873 = vmatpush1.msra.mxu0 %v2872
        %2874 = vmatprep.subr.mxu0 0.0
        %v2875 = vand.u32 %v345, 4294901760
        %v2876 = vsub.f32 %v345, %v2875
        %2877 = vmatpush1.msra.mxu0 %v2876
        %2878 = vmatprep.subr.mxu0 0.0
        %v2879 = vand.u32 %v346, 4294901760
        %v2880 = vsub.f32 %v346, %v2879
        %2881 = vmatpush1.msra.mxu0 %v2880
        %2882 = vmatprep.subr.mxu0 0.0
        %v2883 = vand.u32 %v347, 4294901760
        %v2884 = vsub.f32 %v347, %v2883
        %2885 = vmatpush1.msra.mxu0 %v2884
        %2886 = vmatprep.subr.mxu0 0.0
        %v2887 = vand.u32 %v348, 4294901760
        %v2888 = vsub.f32 %v348, %v2887
        %2889 = vmatpush1.msra.mxu0 %v2888
        %2890 = vmatprep.subr.mxu0 0.0
        %v2891 = vand.u32 %v408, 4294901760
        %v2892 = vsub.f32 %v408, %v2891
        %2893 = vmatpush1.msra.mxu0 %v2892
        %2894 = vmatprep.subr.mxu0 0.0
        %2895 = vmatpush1.msra.mxu0 0.0
        %2896 = vmatprep.subr.mxu0 0.0
        %2897 = vmatpush1.msra.mxu0 0.0
        %v2898 = vand.u32 %v359, 4294901760
        %v2899 = vsub.f32 %v359, %v2898
        %2900 = vmatprep.mubr.f32.mxu0 %v2899
        %v2901 = vand.u32 %v226, 4294901760
        %v2902 = vsub.f32 %v226, %v2901
        %2903 = vmatmul.mubr.f32.gmra.mrb[0].mxu0 %v2902
        %v2904 = vpop.f32.mrb[0].mxu0
        %v2905 = vadd.f32 %v2666, %v2904
        %v2906 = vpop.f32.mrb[0].mxu0
        %v2907 = vand.u32 %v362, 4294901760
        %v2908 = vsub.f32 %v362, %v2907
        %2909 = vmatprep.mubr.f32.mxu0 %v2908
        %v2910 = vand.u32 %v230, 4294901760
        %v2911 = vsub.f32 %v230, %v2910
        %2912 = vmatmul.mubr.f32.gmra.mrb[0].mxu0 %v2911
        %v2913 = vpop.f32.mrb[0].mxu0
        %v2914 = vadd.f32 %v2673, %v2913
        %v2915 = vpop.f32.mrb[0].mxu0
        %v2916 = vand.u32 %v365, 4294901760
        %v2917 = vsub.f32 %v365, %v2916
        %2918 = vmatprep.mubr.f32.mxu0 %v2917
        %v2919 = vand.u32 %v234, 4294901760
        %v2920 = vsub.f32 %v234, %v2919
        %2921 = vmatmul.mubr.f32.gmra.mrb[0].mxu0 %v2920
        %v2922 = vpop.f32.mrb[0].mxu0
        %v2923 = vadd.f32 %v2680, %v2922
        %v2924 = vpop.f32.mrb[0].mxu0
        %v2925 = vand.u32 %v368, 4294901760
        %v2926 = vsub.f32 %v368, %v2925
        %2927 = vmatprep.mubr.f32.mxu0 %v2926
        %v2928 = vand.u32 %v238, 4294901760
        %v2929 = vsub.f32 %v238, %v2928
        %2930 = vmatmul.mubr.f32.gmra.mrb[0].mxu0 %v2929
        %v2931 = vpop.f32.mrb[0].mxu0
        %v2932 = vadd.f32 %v2687, %v2931
        %v2933 = vpop.f32.mrb[0].mxu0
        %v2934 = vand.u32 %v371, 4294901760
        %v2935 = vsub.f32 %v371, %v2934
        %2936 = vmatprep.mubr.f32.mxu0 %v2935
        %v2937 = vand.u32 %v242, 4294901760
        %v2938 = vsub.f32 %v242, %v2937
        %2939 = vmatmul.mubr.f32.gmra.mrb[0].mxu0 %v2938
        %v2940 = vpop.f32.mrb[0].mxu0
        %v2941 = vadd.f32 %v2694, %v2940
        %v2942 = vpop.f32.mrb[0].mxu0
        %v2943 = vand.u32 %v374, 4294901760
        %v2944 = vsub.f32 %v374, %v2943
        %2945 = vmatprep.mubr.f32.mxu0 %v2944
        %v2946 = vand.u32 %v246, 4294901760
        %v2947 = vsub.f32 %v246, %v2946
        %2948 = vmatmul.mubr.f32.gmra.mrb[0].mxu0 %v2947
        %v2949 = vpop.f32.mrb[0].mxu0
        %v2950 = vadd.f32 %v2701, %v2949
        %v2951 = vpop.f32.mrb[0].mxu0
        %v2952 = vand.u32 %v377, 4294901760
        %v2953 = vsub.f32 %v377, %v2952
        %2954 = vmatprep.mubr.f32.mxu0 %v2953
        %v2955 = vand.u32 %v250, 4294901760
        %v2956 = vsub.f32 %v250, %v2955
        %2957 = vmatmul.mubr.f32.gmra.mrb[0].mxu0 %v2956
        %v2958 = vpop.f32.mrb[0].mxu0
        %v2959 = vadd.f32 %v2708, %v2958
        %v2960 = vpop.f32.mrb[0].mxu0
        %v2961 = vand.u32 %v380, 4294901760
        %v2962 = vsub.f32 %v380, %v2961
        %2963 = vmatprep.mubr.f32.mxu0 %v2962
        %v2964 = vand.u32 %v254, 4294901760
        %v2965 = vsub.f32 %v254, %v2964
        %2966 = vmatmul.mubr.f32.gmra.mrb[0].mxu0 %v2965
        %v2967 = vpop.f32.mrb[0].mxu0
        %v2968 = vadd.f32 %v2715, %v2967
        %v2969 = vpop.f32.mrb[0].mxu0
        %v2970 = vand.u32 %v383, 4294901760
        %v2971 = vsub.f32 %v383, %v2970
        %2972 = vmatprep.mubr.f32.mxu0 %v2971
        %v2973 = vand.u32 %v258, 4294901760
        %v2974 = vsub.f32 %v258, %v2973
        %2975 = vmatmul.mubr.f32.gmra.mrb[0].mxu0 %v2974
        %v2976 = vpop.f32.mrb[0].mxu0
        %v2977 = vadd.f32 %v2722, %v2976
        %v2978 = vpop.f32.mrb[0].mxu0
        %v2979 = vand.u32 %v386, 4294901760
        %v2980 = vsub.f32 %v386, %v2979
        %2981 = vmatprep.mubr.f32.mxu0 %v2980
        %v2982 = vand.u32 %v262, 4294901760
        %v2983 = vsub.f32 %v262, %v2982
        %2984 = vmatmul.mubr.f32.gmra.mrb[0].mxu0 %v2983
        %v2985 = vpop.f32.mrb[0].mxu0
        %v2986 = vadd.f32 %v2729, %v2985
        %v2987 = vpop.f32.mrb[0].mxu0
        %v2988 = vand.u32 %v389, 4294901760
        %v2989 = vsub.f32 %v389, %v2988
        %2990 = vmatprep.mubr.f32.mxu0 %v2989
        %v2991 = vand.u32 %v266, 4294901760
        %v2992 = vsub.f32 %v266, %v2991
        %2993 = vmatmul.mubr.f32.gmra.mrb[0].mxu0 %v2992
        %v2994 = vpop.f32.mrb[0].mxu0
        %v2995 = vadd.f32 %v2736, %v2994
        %v2996 = vpop.f32.mrb[0].mxu0
        %v2997 = vand.u32 %v392, 4294901760
        %v2998 = vsub.f32 %v392, %v2997
        %2999 = vmatprep.mubr.f32.mxu0 %v2998
        %v3000 = vand.u32 %v270, 4294901760
        %v3001 = vsub.f32 %v270, %v3000
        %3002 = vmatmul.mubr.f32.gmra.mrb[0].mxu0 %v3001
        %v3003 = vpop.f32.mrb[0].mxu0
        %v3004 = vadd.f32 %v2743, %v3003
        %v3005 = vpop.f32.mrb[0].mxu0
        %v3006 = vand.u32 %v395, 4294901760
        %v3007 = vsub.f32 %v395, %v3006
        %3008 = vmatprep.mubr.f32.mxu0 %v3007
        %v3009 = vand.u32 %v274, 4294901760
        %v3010 = vsub.f32 %v274, %v3009
        %3011 = vmatmul.mubr.f32.gmra.mrb[0].mxu0 %v3010
        %v3012 = vpop.f32.mrb[0].mxu0
        %v3013 = vadd.f32 %v2750, %v3012
        %v3014 = vpop.f32.mrb[0].mxu0
        %v3015 = vand.u32 %v398, 4294901760
        %v3016 = vsub.f32 %v398, %v3015
        %3017 = vmatprep.mubr.f32.mxu0 %v3016
        %v3018 = vand.u32 %v278, 4294901760
        %v3019 = vsub.f32 %v278, %v3018
        %3020 = vmatmul.mubr.f32.gmra.mrb[0].mxu0 %v3019
        %v3021 = vpop.f32.mrb[0].mxu0
        %v3022 = vadd.f32 %v2757, %v3021
        %v3023 = vpop.f32.mrb[0].mxu0
        %v3024 = vand.u32 %v401, 4294901760
        %v3025 = vsub.f32 %v401, %v3024
        %3026 = vmatprep.mubr.f32.mxu0 %v3025
        %v3027 = vand.u32 %v282, 4294901760
        %v3028 = vsub.f32 %v282, %v3027
        %3029 = vmatmul.mubr.f32.gmra.mrb[0].mxu0 %v3028
        %v3030 = vpop.f32.mrb[0].mxu0
        %v3031 = vadd.f32 %v2764, %v3030
        %v3032 = vpop.f32.mrb[0].mxu0
        %v3033 = vand.u32 %v404, 4294901760
        %v3034 = vsub.f32 %v404, %v3033
        %3035 = vmatprep.mubr.f32.mxu0 %v3034
        %v3036 = vand.u32 %v286, 4294901760
        %v3037 = vsub.f32 %v286, %v3036
        %3038 = vmatmul.mubr.f32.gmra.mrb[0].mxu0 %v3037
        %v3039 = vpop.f32.mrb[0].mxu0
        %v3040 = vadd.f32 %v2771, %v3039
        %v3041 = vpop.f32.mrb[0].mxu0
        %3042 = vdwg.mxu0
        %3043 = vmatprep.subr.mxu0 0.0
        %v3044 = vand.u32 %v320, 4294901760
        %3045 = vmatpush1.msra.mxu0 %v3044
        %3046 = vmatprep.subr.mxu0 0.0
        %v3047 = vand.u32 %v321, 4294901760
        %3048 = vmatpush1.msra.mxu0 %v3047
        %3049 = vmatprep.subr.mxu0 0.0
        %v3050 = vand.u32 %v322, 4294901760
        %3051 = vmatpush1.msra.mxu0 %v3050
        %3052 = vmatprep.subr.mxu0 0.0
        %v3053 = vand.u32 %v323, 4294901760
        %3054 = vmatpush1.msra.mxu0 %v3053
        %3055 = vmatprep.subr.mxu0 0.0
        %v3056 = vand.u32 %v324, 4294901760
        %3057 = vmatpush1.msra.mxu0 %v3056
        %3058 = vmatprep.subr.mxu0 0.0
        %v3059 = vand.u32 %v325, 4294901760
        %3060 = vmatpush1.msra.mxu0 %v3059
        %3061 = vmatprep.subr.mxu0 0.0
        %v3062 = vand.u32 %v326, 4294901760
        %3063 = vmatpush1.msra.mxu0 %v3062
        %3064 = vmatprep.subr.mxu0 0.0
        %v3065 = vand.u32 %v327, 4294901760
        %3066 = vmatpush1.msra.mxu0 %v3065
        %3067 = vmatprep.subr.mxu0 0.0
        %v3068 = vand.u32 %v328, 4294901760
        %3069 = vmatpush1.msra.mxu0 %v3068
        %3070 = vmatprep.subr.mxu0 0.0
        %v3071 = vand.u32 %v329, 4294901760
        %3072 = vmatpush1.msra.mxu0 %v3071
        %3073 = vmatprep.subr.mxu0 0.0
        %v3074 = vand.u32 %v330, 4294901760
        %3075 = vmatpush1.msra.mxu0 %v3074
        %3076 = vmatprep.subr.mxu0 0.0
        %v3077 = vand.u32 %v331, 4294901760
        %3078 = vmatpush1.msra.mxu0 %v3077
        %3079 = vmatprep.subr.mxu0 0.0
        %v3080 = vand.u32 %v332, 4294901760
        %3081 = vmatpush1.msra.mxu0 %v3080
        %3082 = vmatprep.subr.mxu0 0.0
        %v3083 = vand.u32 %v333, 4294901760
        %3084 = vmatpush1.msra.mxu0 %v3083
        %3085 = vmatprep.subr.mxu0 0.0
        %v3086 = vand.u32 %v334, 4294901760
        %3087 = vmatpush1.msra.mxu0 %v3086
        %3088 = vmatprep.subr.mxu0 0.0
        %v3089 = vand.u32 %v335, 4294901760
        %3090 = vmatpush1.msra.mxu0 %v3089
        %3091 = vmatprep.subr.mxu0 0.0
        %v3092 = vand.u32 %v336, 4294901760
        %3093 = vmatpush1.msra.mxu0 %v3092
        %3094 = vmatprep.subr.mxu0 0.0
        %v3095 = vand.u32 %v337, 4294901760
        %3096 = vmatpush1.msra.mxu0 %v3095
        %3097 = vmatprep.subr.mxu0 0.0
        %v3098 = vand.u32 %v338, 4294901760
        %3099 = vmatpush1.msra.mxu0 %v3098
        %3100 = vmatprep.subr.mxu0 0.0
        %v3101 = vand.u32 %v339, 4294901760
        %3102 = vmatpush1.msra.mxu0 %v3101
        %3103 = vmatprep.subr.mxu0 0.0
        %v3104 = vand.u32 %v340, 4294901760
        %3105 = vmatpush1.msra.mxu0 %v3104
        %3106 = vmatprep.subr.mxu0 0.0
        %v3107 = vand.u32 %v341, 4294901760
        %3108 = vmatpush1.msra.mxu0 %v3107
        %3109 = vmatprep.subr.mxu0 0.0
        %v3110 = vand.u32 %v342, 4294901760
        %3111 = vmatpush1.msra.mxu0 %v3110
        %3112 = vmatprep.subr.mxu0 0.0
        %v3113 = vand.u32 %v343, 4294901760
        %3114 = vmatpush1.msra.mxu0 %v3113
        %3115 = vmatprep.subr.mxu0 0.0
        %v3116 = vand.u32 %v344, 4294901760
        %3117 = vmatpush1.msra.mxu0 %v3116
        %3118 = vmatprep.subr.mxu0 0.0
        %v3119 = vand.u32 %v345, 4294901760
        %3120 = vmatpush1.msra.mxu0 %v3119
        %3121 = vmatprep.subr.mxu0 0.0
        %v3122 = vand.u32 %v346, 4294901760
        %3123 = vmatpush1.msra.mxu0 %v3122
        %3124 = vmatprep.subr.mxu0 0.0
        %v3125 = vand.u32 %v347, 4294901760
        %3126 = vmatpush1.msra.mxu0 %v3125
        %3127 = vmatprep.subr.mxu0 0.0
        %v3128 = vand.u32 %v348, 4294901760
        %3129 = vmatpush1.msra.mxu0 %v3128
        %3130 = vmatprep.subr.mxu0 0.0
        %v3131 = vand.u32 %v408, 4294901760
        %3132 = vmatpush1.msra.mxu0 %v3131
        %3133 = vmatprep.subr.mxu0 0.0
        %3134 = vmatpush1.msra.mxu0 0.0
        %3135 = vmatprep.subr.mxu0 0.0
        %3136 = vmatpush1.msra.mxu0 0.0
        %v3137 = vand.u32 %v359, 4294901760
        %v3138 = vsub.f32 %v359, %v3137
        %v3139 = vand.u32 %v3138, 4294901760
        %3140 = vmatprep.mubr.f32.mxu0 %v3139
        %v3141 = vand.u32 %v226, 4294901760
        %v3142 = vsub.f32 %v226, %v3141
        %v3143 = vand.u32 %v3142, 4294901760
        %3144 = vmatmul.mubr.f32.gmra.mrb[0].mxu0 %v3143
        %v3145 = vpop.f32.mrb[0].mxu0
        %v3146 = vadd.f32 %v2905, %v3145
        %v3147 = vpop.f32.mrb[0].mxu0
        %v3148 = vand.u32 %v362, 4294901760
        %v3149 = vsub.f32 %v362, %v3148
        %v3150 = vand.u32 %v3149, 4294901760
        %3151 = vmatprep.mubr.f32.mxu0 %v3150
        %v3152 = vand.u32 %v230, 4294901760
        %v3153 = vsub.f32 %v230, %v3152
        %v3154 = vand.u32 %v3153, 4294901760
        %3155 = vmatmul.mubr.f32.gmra.mrb[0].mxu0 %v3154
        %v3156 = vpop.f32.mrb[0].mxu0
        %v3157 = vadd.f32 %v2914, %v3156
        %v3158 = vpop.f32.mrb[0].mxu0
        %v3159 = vand.u32 %v365, 4294901760
        %v3160 = vsub.f32 %v365, %v3159
        %v3161 = vand.u32 %v3160, 4294901760
        %3162 = vmatprep.mubr.f32.mxu0 %v3161
        %v3163 = vand.u32 %v234, 4294901760
        %v3164 = vsub.f32 %v234, %v3163
        %v3165 = vand.u32 %v3164, 4294901760
        %3166 = vmatmul.mubr.f32.gmra.mrb[0].mxu0 %v3165
        %v3167 = vpop.f32.mrb[0].mxu0
        %v3168 = vadd.f32 %v2923, %v3167
        %v3169 = vpop.f32.mrb[0].mxu0
        %v3170 = vand.u32 %v368, 4294901760
        %v3171 = vsub.f32 %v368, %v3170
        %v3172 = vand.u32 %v3171, 4294901760
        %3173 = vmatprep.mubr.f32.mxu0 %v3172
        %v3174 = vand.u32 %v238, 4294901760
        %v3175 = vsub.f32 %v238, %v3174
        %v3176 = vand.u32 %v3175, 4294901760
        %3177 = vmatmul.mubr.f32.gmra.mrb[0].mxu0 %v3176
        %v3178 = vpop.f32.mrb[0].mxu0
        %v3179 = vadd.f32 %v2932, %v3178
        %v3180 = vpop.f32.mrb[0].mxu0
        %v3181 = vand.u32 %v371, 4294901760
        %v3182 = vsub.f32 %v371, %v3181
        %v3183 = vand.u32 %v3182, 4294901760
        %3184 = vmatprep.mubr.f32.mxu0 %v3183
        %v3185 = vand.u32 %v242, 4294901760
        %v3186 = vsub.f32 %v242, %v3185
        %v3187 = vand.u32 %v3186, 4294901760
        %3188 = vmatmul.mubr.f32.gmra.mrb[0].mxu0 %v3187
        %v3189 = vpop.f32.mrb[0].mxu0
        %v3190 = vadd.f32 %v2941, %v3189
        %v3191 = vpop.f32.mrb[0].mxu0
        %v3192 = vand.u32 %v374, 4294901760
        %v3193 = vsub.f32 %v374, %v3192
        %v3194 = vand.u32 %v3193, 4294901760
        %3195 = vmatprep.mubr.f32.mxu0 %v3194
        %v3196 = vand.u32 %v246, 4294901760
        %v3197 = vsub.f32 %v246, %v3196
        %v3198 = vand.u32 %v3197, 4294901760
        %3199 = vmatmul.mubr.f32.gmra.mrb[0].mxu0 %v3198
        %v3200 = vpop.f32.mrb[0].mxu0
        %v3201 = vadd.f32 %v2950, %v3200
        %v3202 = vpop.f32.mrb[0].mxu0
        %v3203 = vand.u32 %v377, 4294901760
        %v3204 = vsub.f32 %v377, %v3203
        %v3205 = vand.u32 %v3204, 4294901760
        %3206 = vmatprep.mubr.f32.mxu0 %v3205
        %v3207 = vand.u32 %v250, 4294901760
        %v3208 = vsub.f32 %v250, %v3207
        %v3209 = vand.u32 %v3208, 4294901760
        %3210 = vmatmul.mubr.f32.gmra.mrb[0].mxu0 %v3209
        %v3211 = vpop.f32.mrb[0].mxu0
        %v3212 = vadd.f32 %v2959, %v3211
        %v3213 = vpop.f32.mrb[0].mxu0
        %v3214 = vand.u32 %v380, 4294901760
        %v3215 = vsub.f32 %v380, %v3214
        %v3216 = vand.u32 %v3215, 4294901760
        %3217 = vmatprep.mubr.f32.mxu0 %v3216
        %v3218 = vand.u32 %v254, 4294901760
        %v3219 = vsub.f32 %v254, %v3218
        %v3220 = vand.u32 %v3219, 4294901760
        %3221 = vmatmul.mubr.f32.gmra.mrb[0].mxu0 %v3220
        %v3222 = vpop.f32.mrb[0].mxu0
        %v3223 = vadd.f32 %v2968, %v3222
        %v3224 = vpop.f32.mrb[0].mxu0
        %v3225 = vand.u32 %v383, 4294901760
        %v3226 = vsub.f32 %v383, %v3225
        %v3227 = vand.u32 %v3226, 4294901760
        %3228 = vmatprep.mubr.f32.mxu0 %v3227
        %v3229 = vand.u32 %v258, 4294901760
        %v3230 = vsub.f32 %v258, %v3229
        %v3231 = vand.u32 %v3230, 4294901760
        %3232 = vmatmul.mubr.f32.gmra.mrb[0].mxu0 %v3231
        %v3233 = vpop.f32.mrb[0].mxu0
        %v3234 = vadd.f32 %v2977, %v3233
        %v3235 = vpop.f32.mrb[0].mxu0
        %v3236 = vand.u32 %v386, 4294901760
        %v3237 = vsub.f32 %v386, %v3236
        %v3238 = vand.u32 %v3237, 4294901760
        %3239 = vmatprep.mubr.f32.mxu0 %v3238
        %v3240 = vand.u32 %v262, 4294901760
        %v3241 = vsub.f32 %v262, %v3240
        %v3242 = vand.u32 %v3241, 4294901760
        %3243 = vmatmul.mubr.f32.gmra.mrb[0].mxu0 %v3242
        %v3244 = vpop.f32.mrb[0].mxu0
        %v3245 = vadd.f32 %v2986, %v3244
        %v3246 = vpop.f32.mrb[0].mxu0
        %v3247 = vand.u32 %v389, 4294901760
        %v3248 = vsub.f32 %v389, %v3247
        %v3249 = vand.u32 %v3248, 4294901760
        %3250 = vmatprep.mubr.f32.mxu0 %v3249
        %v3251 = vand.u32 %v266, 4294901760
        %v3252 = vsub.f32 %v266, %v3251
        %v3253 = vand.u32 %v3252, 4294901760
        %3254 = vmatmul.mubr.f32.gmra.mrb[0].mxu0 %v3253
        %v3255 = vpop.f32.mrb[0].mxu0
        %v3256 = vadd.f32 %v2995, %v3255
        %v3257 = vpop.f32.mrb[0].mxu0
        %v3258 = vand.u32 %v392, 4294901760
        %v3259 = vsub.f32 %v392, %v3258
        %v3260 = vand.u32 %v3259, 4294901760
        %3261 = vmatprep.mubr.f32.mxu0 %v3260
        %v3262 = vand.u32 %v270, 4294901760
        %v3263 = vsub.f32 %v270, %v3262
        %v3264 = vand.u32 %v3263, 4294901760
        %3265 = vmatmul.mubr.f32.gmra.mrb[0].mxu0 %v3264
        %v3266 = vpop.f32.mrb[0].mxu0
        %v3267 = vadd.f32 %v3004, %v3266
        %v3268 = vpop.f32.mrb[0].mxu0
        %v3269 = vand.u32 %v395, 4294901760
        %v3270 = vsub.f32 %v395, %v3269
        %v3271 = vand.u32 %v3270, 4294901760
        %3272 = vmatprep.mubr.f32.mxu0 %v3271
        %v3273 = vand.u32 %v274, 4294901760
        %v3274 = vsub.f32 %v274, %v3273
        %v3275 = vand.u32 %v3274, 4294901760
        %3276 = vmatmul.mubr.f32.gmra.mrb[0].mxu0 %v3275
        %v3277 = vpop.f32.mrb[0].mxu0
        %v3278 = vadd.f32 %v3013, %v3277
        %v3279 = vpop.f32.mrb[0].mxu0
        %v3280 = vand.u32 %v398, 4294901760
        %v3281 = vsub.f32 %v398, %v3280
        %v3282 = vand.u32 %v3281, 4294901760
        %3283 = vmatprep.mubr.f32.mxu0 %v3282
        %v3284 = vand.u32 %v278, 4294901760
        %v3285 = vsub.f32 %v278, %v3284
        %v3286 = vand.u32 %v3285, 4294901760
        %3287 = vmatmul.mubr.f32.gmra.mrb[0].mxu0 %v3286
        %v3288 = vpop.f32.mrb[0].mxu0
        %v3289 = vadd.f32 %v3022, %v3288
        %v3290 = vpop.f32.mrb[0].mxu0
        %v3291 = vand.u32 %v401, 4294901760
        %v3292 = vsub.f32 %v401, %v3291
        %v3293 = vand.u32 %v3292, 4294901760
        %3294 = vmatprep.mubr.f32.mxu0 %v3293
        %v3295 = vand.u32 %v282, 4294901760
        %v3296 = vsub.f32 %v282, %v3295
        %v3297 = vand.u32 %v3296, 4294901760
        %3298 = vmatmul.mubr.f32.gmra.mrb[0].mxu0 %v3297
        %v3299 = vpop.f32.mrb[0].mxu0
        %v3300 = vadd.f32 %v3031, %v3299
        %v3301 = vpop.f32.mrb[0].mxu0
        %v3302 = vand.u32 %v404, 4294901760
        %v3303 = vsub.f32 %v404, %v3302
        %v3304 = vand.u32 %v3303, 4294901760
        %3305 = vmatprep.mubr.f32.mxu0 %v3304
        %v3306 = vand.u32 %v286, 4294901760
        %v3307 = vsub.f32 %v286, %v3306
        %v3308 = vand.u32 %v3307, 4294901760
        %3309 = vmatmul.mubr.f32.gmra.mrb[0].mxu0 %v3308
        %v3310 = vpop.f32.mrb[0].mxu0
        %v3311 = vadd.f32 %v3040, %v3310
        %v3312 = vpop.f32.mrb[0].mxu0
        %3313 = vdwg.mxu0
        %3314 = vmatprep.subr.mxu0 0.0
        %v3315 = vand.u32 %v320, 4294901760
        %v3316 = vsub.f32 %v320, %v3315
        %v3317 = vand.u32 %v3316, 4294901760
        %3318 = vmatpush1.msra.mxu0 %v3317
        %3319 = vmatprep.subr.mxu0 0.0
        %v3320 = vand.u32 %v321, 4294901760
        %v3321 = vsub.f32 %v321, %v3320
        %v3322 = vand.u32 %v3321, 4294901760
        %3323 = vmatpush1.msra.mxu0 %v3322
        %3324 = vmatprep.subr.mxu0 0.0
        %v3325 = vand.u32 %v322, 4294901760
        %v3326 = vsub.f32 %v322, %v3325
        %v3327 = vand.u32 %v3326, 4294901760
        %3328 = vmatpush1.msra.mxu0 %v3327
        %3329 = vmatprep.subr.mxu0 0.0
        %v3330 = vand.u32 %v323, 4294901760
        %v3331 = vsub.f32 %v323, %v3330
        %v3332 = vand.u32 %v3331, 4294901760
        %3333 = vmatpush1.msra.mxu0 %v3332
        %3334 = vmatprep.subr.mxu0 0.0
        %v3335 = vand.u32 %v324, 4294901760
        %v3336 = vsub.f32 %v324, %v3335
        %v3337 = vand.u32 %v3336, 4294901760
        %3338 = vmatpush1.msra.mxu0 %v3337
        %3339 = vmatprep.subr.mxu0 0.0
        %v3340 = vand.u32 %v325, 4294901760
        %v3341 = vsub.f32 %v325, %v3340
        %v3342 = vand.u32 %v3341, 4294901760
        %3343 = vmatpush1.msra.mxu0 %v3342
        %3344 = vmatprep.subr.mxu0 0.0
        %v3345 = vand.u32 %v326, 4294901760
        %v3346 = vsub.f32 %v326, %v3345
        %v3347 = vand.u32 %v3346, 4294901760
        %3348 = vmatpush1.msra.mxu0 %v3347
        %3349 = vmatprep.subr.mxu0 0.0
        %v3350 = vand.u32 %v327, 4294901760
        %v3351 = vsub.f32 %v327, %v3350
        %v3352 = vand.u32 %v3351, 4294901760
        %3353 = vmatpush1.msra.mxu0 %v3352
        %3354 = vmatprep.subr.mxu0 0.0
        %v3355 = vand.u32 %v328, 4294901760
        %v3356 = vsub.f32 %v328, %v3355
        %v3357 = vand.u32 %v3356, 4294901760
        %3358 = vmatpush1.msra.mxu0 %v3357
        %3359 = vmatprep.subr.mxu0 0.0
        %v3360 = vand.u32 %v329, 4294901760
        %v3361 = vsub.f32 %v329, %v3360
        %v3362 = vand.u32 %v3361, 4294901760
        %3363 = vmatpush1.msra.mxu0 %v3362
        %3364 = vmatprep.subr.mxu0 0.0
        %v3365 = vand.u32 %v330, 4294901760
        %v3366 = vsub.f32 %v330, %v3365
        %v3367 = vand.u32 %v3366, 4294901760
        %3368 = vmatpush1.msra.mxu0 %v3367
        %3369 = vmatprep.subr.mxu0 0.0
        %v3370 = vand.u32 %v331, 4294901760
        %v3371 = vsub.f32 %v331, %v3370
        %v3372 = vand.u32 %v3371, 4294901760
        %3373 = vmatpush1.msra.mxu0 %v3372
        %3374 = vmatprep.subr.mxu0 0.0
        %v3375 = vand.u32 %v332, 4294901760
        %v3376 = vsub.f32 %v332, %v3375
        %v3377 = vand.u32 %v3376, 4294901760
        %3378 = vmatpush1.msra.mxu0 %v3377
        %3379 = vmatprep.subr.mxu0 0.0
        %v3380 = vand.u32 %v333, 4294901760
        %v3381 = vsub.f32 %v333, %v3380
        %v3382 = vand.u32 %v3381, 4294901760
        %3383 = vmatpush1.msra.mxu0 %v3382
        %3384 = vmatprep.subr.mxu0 0.0
        %v3385 = vand.u32 %v334, 4294901760
        %v3386 = vsub.f32 %v334, %v3385
        %v3387 = vand.u32 %v3386, 4294901760
        %3388 = vmatpush1.msra.mxu0 %v3387
        %3389 = vmatprep.subr.mxu0 0.0
        %v3390 = vand.u32 %v335, 4294901760
        %v3391 = vsub.f32 %v335, %v3390
        %v3392 = vand.u32 %v3391, 4294901760
        %3393 = vmatpush1.msra.mxu0 %v3392
        %3394 = vmatprep.subr.mxu0 0.0
        %v3395 = vand.u32 %v336, 4294901760
        %v3396 = vsub.f32 %v336, %v3395
        %v3397 = vand.u32 %v3396, 4294901760
        %3398 = vmatpush1.msra.mxu0 %v3397
        %3399 = vmatprep.subr.mxu0 0.0
        %v3400 = vand.u32 %v337, 4294901760
        %v3401 = vsub.f32 %v337, %v3400
        %v3402 = vand.u32 %v3401, 4294901760
        %3403 = vmatpush1.msra.mxu0 %v3402
        %3404 = vmatprep.subr.mxu0 0.0
        %v3405 = vand.u32 %v338, 4294901760
        %v3406 = vsub.f32 %v338, %v3405
        %v3407 = vand.u32 %v3406, 4294901760
        %3408 = vmatpush1.msra.mxu0 %v3407
        %3409 = vmatprep.subr.mxu0 0.0
        %v3410 = vand.u32 %v339, 4294901760
        %v3411 = vsub.f32 %v339, %v3410
        %v3412 = vand.u32 %v3411, 4294901760
        %3413 = vmatpush1.msra.mxu0 %v3412
        %3414 = vmatprep.subr.mxu0 0.0
        %v3415 = vand.u32 %v340, 4294901760
        %v3416 = vsub.f32 %v340, %v3415
        %v3417 = vand.u32 %v3416, 4294901760
        %3418 = vmatpush1.msra.mxu0 %v3417
        %3419 = vmatprep.subr.mxu0 0.0
        %v3420 = vand.u32 %v341, 4294901760
        %v3421 = vsub.f32 %v341, %v3420
        %v3422 = vand.u32 %v3421, 4294901760
        %3423 = vmatpush1.msra.mxu0 %v3422
        %3424 = vmatprep.subr.mxu0 0.0
        %v3425 = vand.u32 %v342, 4294901760
        %v3426 = vsub.f32 %v342, %v3425
        %v3427 = vand.u32 %v3426, 4294901760
        %3428 = vmatpush1.msra.mxu0 %v3427
        %3429 = vmatprep.subr.mxu0 0.0
        %v3430 = vand.u32 %v343, 4294901760
        %v3431 = vsub.f32 %v343, %v3430
        %v3432 = vand.u32 %v3431, 4294901760
        %3433 = vmatpush1.msra.mxu0 %v3432
        %3434 = vmatprep.subr.mxu0 0.0
        %v3435 = vand.u32 %v344, 4294901760
        %v3436 = vsub.f32 %v344, %v3435
        %v3437 = vand.u32 %v3436, 4294901760
        %3438 = vmatpush1.msra.mxu0 %v3437
        %3439 = vmatprep.subr.mxu0 0.0
        %v3440 = vand.u32 %v345, 4294901760
        %v3441 = vsub.f32 %v345, %v3440
        %v3442 = vand.u32 %v3441, 4294901760
        %3443 = vmatpush1.msra.mxu0 %v3442
        %3444 = vmatprep.subr.mxu0 0.0
        %v3445 = vand.u32 %v346, 4294901760
        %v3446 = vsub.f32 %v346, %v3445
        %v3447 = vand.u32 %v3446, 4294901760
        %3448 = vmatpush1.msra.mxu0 %v3447
        %3449 = vmatprep.subr.mxu0 0.0
        %v3450 = vand.u32 %v347, 4294901760
        %v3451 = vsub.f32 %v347, %v3450
        %v3452 = vand.u32 %v3451, 4294901760
        %3453 = vmatpush1.msra.mxu0 %v3452
        %3454 = vmatprep.subr.mxu0 0.0
        %v3455 = vand.u32 %v348, 4294901760
        %v3456 = vsub.f32 %v348, %v3455
        %v3457 = vand.u32 %v3456, 4294901760
        %3458 = vmatpush1.msra.mxu0 %v3457
        %3459 = vmatprep.subr.mxu0 0.0
        %v3460 = vand.u32 %v408, 4294901760
        %v3461 = vsub.f32 %v408, %v3460
        %v3462 = vand.u32 %v3461, 4294901760
        %3463 = vmatpush1.msra.mxu0 %v3462
        %3464 = vmatprep.subr.mxu0 0.0
        %3465 = vmatpush1.msra.mxu0 0.0
        %3466 = vmatprep.subr.mxu0 0.0
        %3467 = vmatpush1.msra.mxu0 0.0
        %v3468 = vand.u32 %v359, 4294901760
        %3469 = vmatprep.mubr.f32.mxu0 %v3468
        %v3470 = vand.u32 %v226, 4294901760
        %3471 = vmatmul.mubr.f32.gmra.mrb[0].mxu0 %v3470
        %v3472 = vpop.f32.mrb[0].mxu0
        %v3473 = vadd.f32 %v3146, %v3472
        %v3474 = vpop.f32.mrb[0].mxu0
        %v3475 = vand.u32 %v362, 4294901760
        %3476 = vmatprep.mubr.f32.mxu0 %v3475
        %v3477 = vand.u32 %v230, 4294901760
        %3478 = vmatmul.mubr.f32.gmra.mrb[0].mxu0 %v3477
        %v3479 = vpop.f32.mrb[0].mxu0
        %v3480 = vadd.f32 %v3157, %v3479
        %v3481 = vpop.f32.mrb[0].mxu0
        %v3482 = vand.u32 %v365, 4294901760
        %3483 = vmatprep.mubr.f32.mxu0 %v3482
        %v3484 = vand.u32 %v234, 4294901760
        %3485 = vmatmul.mubr.f32.gmra.mrb[0].mxu0 %v3484
        %v3486 = vpop.f32.mrb[0].mxu0
        %v3487 = vadd.f32 %v3168, %v3486
        %v3488 = vpop.f32.mrb[0].mxu0
        %v3489 = vand.u32 %v368, 4294901760
        %3490 = vmatprep.mubr.f32.mxu0 %v3489
        %v3491 = vand.u32 %v238, 4294901760
        %3492 = vmatmul.mubr.f32.gmra.mrb[0].mxu0 %v3491
        %v3493 = vpop.f32.mrb[0].mxu0
        %v3494 = vadd.f32 %v3179, %v3493
        %v3495 = vpop.f32.mrb[0].mxu0
        %v3496 = vand.u32 %v371, 4294901760
        %3497 = vmatprep.mubr.f32.mxu0 %v3496
        %v3498 = vand.u32 %v242, 4294901760
        %3499 = vmatmul.mubr.f32.gmra.mrb[0].mxu0 %v3498
        %v3500 = vpop.f32.mrb[0].mxu0
        %v3501 = vadd.f32 %v3190, %v3500
        %v3502 = vpop.f32.mrb[0].mxu0
        %v3503 = vand.u32 %v374, 4294901760
        %3504 = vmatprep.mubr.f32.mxu0 %v3503
        %v3505 = vand.u32 %v246, 4294901760
        %3506 = vmatmul.mubr.f32.gmra.mrb[0].mxu0 %v3505
        %v3507 = vpop.f32.mrb[0].mxu0
        %v3508 = vadd.f32 %v3201, %v3507
        %v3509 = vpop.f32.mrb[0].mxu0
        %v3510 = vand.u32 %v377, 4294901760
        %3511 = vmatprep.mubr.f32.mxu0 %v3510
        %v3512 = vand.u32 %v250, 4294901760
        %3513 = vmatmul.mubr.f32.gmra.mrb[0].mxu0 %v3512
        %v3514 = vpop.f32.mrb[0].mxu0
        %v3515 = vadd.f32 %v3212, %v3514
        %v3516 = vpop.f32.mrb[0].mxu0
        %v3517 = vand.u32 %v380, 4294901760
        %3518 = vmatprep.mubr.f32.mxu0 %v3517
        %v3519 = vand.u32 %v254, 4294901760
        %3520 = vmatmul.mubr.f32.gmra.mrb[0].mxu0 %v3519
        %v3521 = vpop.f32.mrb[0].mxu0
        %v3522 = vadd.f32 %v3223, %v3521
        %v3523 = vpop.f32.mrb[0].mxu0
        %v3524 = vand.u32 %v383, 4294901760
        %3525 = vmatprep.mubr.f32.mxu0 %v3524
        %v3526 = vand.u32 %v258, 4294901760
        %3527 = vmatmul.mubr.f32.gmra.mrb[0].mxu0 %v3526
        %v3528 = vpop.f32.mrb[0].mxu0
        %v3529 = vadd.f32 %v3234, %v3528
        %v3530 = vpop.f32.mrb[0].mxu0
        %v3531 = vand.u32 %v386, 4294901760
        %3532 = vmatprep.mubr.f32.mxu0 %v3531
        %v3533 = vand.u32 %v262, 4294901760
        %3534 = vmatmul.mubr.f32.gmra.mrb[0].mxu0 %v3533
        %v3535 = vpop.f32.mrb[0].mxu0
        %v3536 = vadd.f32 %v3245, %v3535
        %v3537 = vpop.f32.mrb[0].mxu0
        %v3538 = vand.u32 %v389, 4294901760
        %3539 = vmatprep.mubr.f32.mxu0 %v3538
        %v3540 = vand.u32 %v266, 4294901760
        %3541 = vmatmul.mubr.f32.gmra.mrb[0].mxu0 %v3540
        %v3542 = vpop.f32.mrb[0].mxu0
        %v3543 = vadd.f32 %v3256, %v3542
        %v3544 = vpop.f32.mrb[0].mxu0
        %v3545 = vand.u32 %v392, 4294901760
        %3546 = vmatprep.mubr.f32.mxu0 %v3545
        %v3547 = vand.u32 %v270, 4294901760
        %3548 = vmatmul.mubr.f32.gmra.mrb[0].mxu0 %v3547
        %v3549 = vpop.f32.mrb[0].mxu0
        %v3550 = vadd.f32 %v3267, %v3549
        %v3551 = vpop.f32.mrb[0].mxu0
        %v3552 = vand.u32 %v395, 4294901760
        %3553 = vmatprep.mubr.f32.mxu0 %v3552
        %v3554 = vand.u32 %v274, 4294901760
        %3555 = vmatmul.mubr.f32.gmra.mrb[0].mxu0 %v3554
        %v3556 = vpop.f32.mrb[0].mxu0
        %v3557 = vadd.f32 %v3278, %v3556
        %v3558 = vpop.f32.mrb[0].mxu0
        %v3559 = vand.u32 %v398, 4294901760
        %3560 = vmatprep.mubr.f32.mxu0 %v3559
        %v3561 = vand.u32 %v278, 4294901760
        %3562 = vmatmul.mubr.f32.gmra.mrb[0].mxu0 %v3561
        %v3563 = vpop.f32.mrb[0].mxu0
        %v3564 = vadd.f32 %v3289, %v3563
        %v3565 = vpop.f32.mrb[0].mxu0
        %v3566 = vand.u32 %v401, 4294901760
        %3567 = vmatprep.mubr.f32.mxu0 %v3566
        %v3568 = vand.u32 %v282, 4294901760
        %3569 = vmatmul.mubr.f32.gmra.mrb[0].mxu0 %v3568
        %v3570 = vpop.f32.mrb[0].mxu0
        %v3571 = vadd.f32 %v3300, %v3570
        %v3572 = vpop.f32.mrb[0].mxu0
        %v3573 = vand.u32 %v404, 4294901760
        %3574 = vmatprep.mubr.f32.mxu0 %v3573
        %v3575 = vand.u32 %v286, 4294901760
        %3576 = vmatmul.mubr.f32.gmra.mrb[0].mxu0 %v3575
        %v3577 = vpop.f32.mrb[0].mxu0
        %v3578 = vadd.f32 %v3311, %v3577
        %v3579 = vpop.f32.mrb[0].mxu0
        %3580 = vdwg.mxu0
        %3581 = vmatprep.subr.mxu0 0.0
        %v3582 = vand.u32 %v320, 4294901760
        %3583 = vmatpush1.msra.mxu0 %v3582
        %3584 = vmatprep.subr.mxu0 0.0
        %v3585 = vand.u32 %v321, 4294901760
        %3586 = vmatpush1.msra.mxu0 %v3585
        %3587 = vmatprep.subr.mxu0 0.0
        %v3588 = vand.u32 %v322, 4294901760
        %3589 = vmatpush1.msra.mxu0 %v3588
        %3590 = vmatprep.subr.mxu0 0.0
        %v3591 = vand.u32 %v323, 4294901760
        %3592 = vmatpush1.msra.mxu0 %v3591
        %3593 = vmatprep.subr.mxu0 0.0
        %v3594 = vand.u32 %v324, 4294901760
        %3595 = vmatpush1.msra.mxu0 %v3594
        %3596 = vmatprep.subr.mxu0 0.0
        %v3597 = vand.u32 %v325, 4294901760
        %3598 = vmatpush1.msra.mxu0 %v3597
        %3599 = vmatprep.subr.mxu0 0.0
        %v3600 = vand.u32 %v326, 4294901760
        %3601 = vmatpush1.msra.mxu0 %v3600
        %3602 = vmatprep.subr.mxu0 0.0
        %v3603 = vand.u32 %v327, 4294901760
        %3604 = vmatpush1.msra.mxu0 %v3603
        %3605 = vmatprep.subr.mxu0 0.0
        %v3606 = vand.u32 %v328, 4294901760
        %3607 = vmatpush1.msra.mxu0 %v3606
        %3608 = vmatprep.subr.mxu0 0.0
        %v3609 = vand.u32 %v329, 4294901760
        %3610 = vmatpush1.msra.mxu0 %v3609
        %3611 = vmatprep.subr.mxu0 0.0
        %v3612 = vand.u32 %v330, 4294901760
        %3613 = vmatpush1.msra.mxu0 %v3612
        %3614 = vmatprep.subr.mxu0 0.0
        %v3615 = vand.u32 %v331, 4294901760
        %3616 = vmatpush1.msra.mxu0 %v3615
        %3617 = vmatprep.subr.mxu0 0.0
        %v3618 = vand.u32 %v332, 4294901760
        %3619 = vmatpush1.msra.mxu0 %v3618
        %3620 = vmatprep.subr.mxu0 0.0
        %v3621 = vand.u32 %v333, 4294901760
        %3622 = vmatpush1.msra.mxu0 %v3621
        %3623 = vmatprep.subr.mxu0 0.0
        %v3624 = vand.u32 %v334, 4294901760
        %3625 = vmatpush1.msra.mxu0 %v3624
        %3626 = vmatprep.subr.mxu0 0.0
        %v3627 = vand.u32 %v335, 4294901760
        %3628 = vmatpush1.msra.mxu0 %v3627
        %3629 = vmatprep.subr.mxu0 0.0
        %v3630 = vand.u32 %v336, 4294901760
        %3631 = vmatpush1.msra.mxu0 %v3630
        %3632 = vmatprep.subr.mxu0 0.0
        %v3633 = vand.u32 %v337, 4294901760
        %3634 = vmatpush1.msra.mxu0 %v3633
        %3635 = vmatprep.subr.mxu0 0.0
        %v3636 = vand.u32 %v338, 4294901760
        %3637 = vmatpush1.msra.mxu0 %v3636
        %3638 = vmatprep.subr.mxu0 0.0
        %v3639 = vand.u32 %v339, 4294901760
        %3640 = vmatpush1.msra.mxu0 %v3639
        %3641 = vmatprep.subr.mxu0 0.0
        %v3642 = vand.u32 %v340, 4294901760
        %3643 = vmatpush1.msra.mxu0 %v3642
        %3644 = vmatprep.subr.mxu0 0.0
        %v3645 = vand.u32 %v341, 4294901760
        %3646 = vmatpush1.msra.mxu0 %v3645
        %3647 = vmatprep.subr.mxu0 0.0
        %v3648 = vand.u32 %v342, 4294901760
        %3649 = vmatpush1.msra.mxu0 %v3648
        %3650 = vmatprep.subr.mxu0 0.0
        %v3651 = vand.u32 %v343, 4294901760
        %3652 = vmatpush1.msra.mxu0 %v3651
        %3653 = vmatprep.subr.mxu0 0.0
        %v3654 = vand.u32 %v344, 4294901760
        %3655 = vmatpush1.msra.mxu0 %v3654
        %3656 = vmatprep.subr.mxu0 0.0
        %v3657 = vand.u32 %v345, 4294901760
        %3658 = vmatpush1.msra.mxu0 %v3657
        %3659 = vmatprep.subr.mxu0 0.0
        %v3660 = vand.u32 %v346, 4294901760
        %3661 = vmatpush1.msra.mxu0 %v3660
        %3662 = vmatprep.subr.mxu0 0.0
        %v3663 = vand.u32 %v347, 4294901760
        %3664 = vmatpush1.msra.mxu0 %v3663
        %3665 = vmatprep.subr.mxu0 0.0
        %v3666 = vand.u32 %v348, 4294901760
        %3667 = vmatpush1.msra.mxu0 %v3666
        %3668 = vmatprep.subr.mxu0 0.0
        %v3669 = vand.u32 %v408, 4294901760
        %3670 = vmatpush1.msra.mxu0 %v3669
        %3671 = vmatprep.subr.mxu0 0.0
        %3672 = vmatpush1.msra.mxu0 0.0
        %3673 = vmatprep.subr.mxu0 0.0
        %3674 = vmatpush1.msra.mxu0 0.0
        %v3675 = vand.u32 %v359, 4294901760
        %3676 = vmatprep.mubr.f32.mxu0 %v3675
        %v3677 = vand.u32 %v226, 4294901760
        %3678 = vmatmul.mubr.f32.gmra.mrb[0].mxu0 %v3677
        %v3679 = vpop.f32.mrb[0].mxu0
        %v3680 = vadd.f32 %v3473, %v3679
        %v3681 = vpop.f32.mrb[0].mxu0
        %v3682 = vand.u32 %v362, 4294901760
        %3683 = vmatprep.mubr.f32.mxu0 %v3682
        %v3684 = vand.u32 %v230, 4294901760
        %3685 = vmatmul.mubr.f32.gmra.mrb[0].mxu0 %v3684
        %v3686 = vpop.f32.mrb[0].mxu0
        %v3687 = vadd.f32 %v3480, %v3686
        %v3688 = vpop.f32.mrb[0].mxu0
        %v3689 = vand.u32 %v365, 4294901760
        %3690 = vmatprep.mubr.f32.mxu0 %v3689
        %v3691 = vand.u32 %v234, 4294901760
        %3692 = vmatmul.mubr.f32.gmra.mrb[0].mxu0 %v3691
        %v3693 = vpop.f32.mrb[0].mxu0
        %v3694 = vadd.f32 %v3487, %v3693
        %v3695 = vpop.f32.mrb[0].mxu0
        %v3696 = vand.u32 %v368, 4294901760
        %3697 = vmatprep.mubr.f32.mxu0 %v3696
        %v3698 = vand.u32 %v238, 4294901760
        %3699 = vmatmul.mubr.f32.gmra.mrb[0].mxu0 %v3698
        %v3700 = vpop.f32.mrb[0].mxu0
        %v3701 = vadd.f32 %v3494, %v3700
        %v3702 = vpop.f32.mrb[0].mxu0
        %v3703 = vand.u32 %v371, 4294901760
        %3704 = vmatprep.mubr.f32.mxu0 %v3703
        %v3705 = vand.u32 %v242, 4294901760
        %3706 = vmatmul.mubr.f32.gmra.mrb[0].mxu0 %v3705
        %v3707 = vpop.f32.mrb[0].mxu0
        %v3708 = vadd.f32 %v3501, %v3707
        %v3709 = vpop.f32.mrb[0].mxu0
        %v3710 = vand.u32 %v374, 4294901760
        %3711 = vmatprep.mubr.f32.mxu0 %v3710
        %v3712 = vand.u32 %v246, 4294901760
        %3713 = vmatmul.mubr.f32.gmra.mrb[0].mxu0 %v3712
        %v3714 = vpop.f32.mrb[0].mxu0
        %v3715 = vadd.f32 %v3508, %v3714
        %v3716 = vpop.f32.mrb[0].mxu0
        %v3717 = vand.u32 %v377, 4294901760
        %3718 = vmatprep.mubr.f32.mxu0 %v3717
        %v3719 = vand.u32 %v250, 4294901760
        %3720 = vmatmul.mubr.f32.gmra.mrb[0].mxu0 %v3719
        %v3721 = vpop.f32.mrb[0].mxu0
        %v3722 = vadd.f32 %v3515, %v3721
        %v3723 = vpop.f32.mrb[0].mxu0
        %v3724 = vand.u32 %v380, 4294901760
        %3725 = vmatprep.mubr.f32.mxu0 %v3724
        %v3726 = vand.u32 %v254, 4294901760
        %3727 = vmatmul.mubr.f32.gmra.mrb[0].mxu0 %v3726
        %v3728 = vpop.f32.mrb[0].mxu0
        %v3729 = vadd.f32 %v3522, %v3728
        %v3730 = vpop.f32.mrb[0].mxu0
        %v3731 = vand.u32 %v383, 4294901760
        %3732 = vmatprep.mubr.f32.mxu0 %v3731
        %v3733 = vand.u32 %v258, 4294901760
        %3734 = vmatmul.mubr.f32.gmra.mrb[0].mxu0 %v3733
        %v3735 = vpop.f32.mrb[0].mxu0
        %v3736 = vadd.f32 %v3529, %v3735
        %v3737 = vpop.f32.mrb[0].mxu0
        %v3738 = vand.u32 %v386, 4294901760
        %3739 = vmatprep.mubr.f32.mxu0 %v3738
        %v3740 = vand.u32 %v262, 4294901760
        %3741 = vmatmul.mubr.f32.gmra.mrb[0].mxu0 %v3740
        %v3742 = vpop.f32.mrb[0].mxu0
        %v3743 = vadd.f32 %v3536, %v3742
        %v3744 = vpop.f32.mrb[0].mxu0
        %v3745 = vand.u32 %v389, 4294901760
        %3746 = vmatprep.mubr.f32.mxu0 %v3745
        %v3747 = vand.u32 %v266, 4294901760
        %3748 = vmatmul.mubr.f32.gmra.mrb[0].mxu0 %v3747
        %v3749 = vpop.f32.mrb[0].mxu0
        %v3750 = vadd.f32 %v3543, %v3749
        %v3751 = vpop.f32.mrb[0].mxu0
        %v3752 = vand.u32 %v392, 4294901760
        %3753 = vmatprep.mubr.f32.mxu0 %v3752
        %v3754 = vand.u32 %v270, 4294901760
        %3755 = vmatmul.mubr.f32.gmra.mrb[0].mxu0 %v3754
        %v3756 = vpop.f32.mrb[0].mxu0
        %v3757 = vadd.f32 %v3550, %v3756
        %v3758 = vpop.f32.mrb[0].mxu0
        %v3759 = vand.u32 %v395, 4294901760
        %3760 = vmatprep.mubr.f32.mxu0 %v3759
        %v3761 = vand.u32 %v274, 4294901760
        %3762 = vmatmul.mubr.f32.gmra.mrb[0].mxu0 %v3761
        %v3763 = vpop.f32.mrb[0].mxu0
        %v3764 = vadd.f32 %v3557, %v3763
        %v3765 = vpop.f32.mrb[0].mxu0
        %v3766 = vand.u32 %v398, 4294901760
        %3767 = vmatprep.mubr.f32.mxu0 %v3766
        %v3768 = vand.u32 %v278, 4294901760
        %3769 = vmatmul.mubr.f32.gmra.mrb[0].mxu0 %v3768
        %v3770 = vpop.f32.mrb[0].mxu0
        %v3771 = vadd.f32 %v3564, %v3770
        %v3772 = vpop.f32.mrb[0].mxu0
        %v3773 = vand.u32 %v401, 4294901760
        %3774 = vmatprep.mubr.f32.mxu0 %v3773
        %v3775 = vand.u32 %v282, 4294901760
        %3776 = vmatmul.mubr.f32.gmra.mrb[0].mxu0 %v3775
        %v3777 = vpop.f32.mrb[0].mxu0
        %v3778 = vadd.f32 %v3571, %v3777
        %v3779 = vpop.f32.mrb[0].mxu0
        %v3780 = vand.u32 %v404, 4294901760
        %3781 = vmatprep.mubr.f32.mxu0 %v3780
        %v3782 = vand.u32 %v286, 4294901760
        %3783 = vmatmul.mubr.f32.gmra.mrb[0].mxu0 %v3782
        %v3784 = vpop.f32.mrb[0].mxu0
        %v3785 = vadd.f32 %v3578, %v3784
        %v3786 = vpop.f32.mrb[0].mxu0
        %3787 = vdwg.mxu0
        %v3788 = vsub.f32 0.0, %v3680
        %v3789 = vsub.f32 0.0, %v3687
        %v3790 = vsub.f32 0.0, %v3694
        %v3791 = vsub.f32 0.0, %v3701
        %v3792 = vsub.f32 0.0, %v3708
        %v3793 = vsub.f32 0.0, %v3715
        %v3794 = vsub.f32 0.0, %v3722
        %v3795 = vsub.f32 0.0, %v3729
        %v3796 = vsub.f32 0.0, %v3736
        %v3797 = vsub.f32 0.0, %v3743
        %v3798 = vsub.f32 0.0, %v3750
        %v3799 = vsub.f32 0.0, %v3757
        %v3800 = vsub.f32 0.0, %v3764
        %v3801 = vsub.f32 0.0, %v3771
        %v3802 = vsub.f32 0.0, %v3778
        %v3803 = vsub.f32 0.0, %v3785
        %v3804 = vmul.f32 %v3788, 1.442695
        %v3805 = vpow.pop %v3804
        %v3806 = vmul.f32 %v3789, 1.442695
        %v3807 = vpow.pop %v3806
        %v3808 = vmul.f32 %v3790, 1.442695
        %v3809 = vpow.pop %v3808
        %v3810 = vmul.f32 %v3791, 1.442695
        %v3811 = vpow.pop %v3810
        %v3812 = vmul.f32 %v3792, 1.442695
        %v3813 = vpow.pop %v3812
        %v3814 = vmul.f32 %v3793, 1.442695
        %v3815 = vpow.pop %v3814
        %v3816 = vmul.f32 %v3794, 1.442695
        %v3817 = vpow.pop %v3816
        %v3818 = vmul.f32 %v3795, 1.442695
        %v3819 = vpow.pop %v3818
        %v3820 = vmul.f32 %v3796, 1.442695
        %v3821 = vpow.pop %v3820
        %v3822 = vmul.f32 %v3797, 1.442695
        %v3823 = vpow.pop %v3822
        %v3824 = vmul.f32 %v3798, 1.442695
        %v3825 = vpow.pop %v3824
        %v3826 = vmul.f32 %v3799, 1.442695
        %v3827 = vpow.pop %v3826
        %v3828 = vmul.f32 %v3800, 1.442695
        %v3829 = vpow.pop %v3828
        %v3830 = vmul.f32 %v3801, 1.442695
        %v3831 = vpow.pop %v3830
        %v3832 = vmul.f32 %v3802, 1.442695
        %v3833 = vpow.pop %v3832
        %v3834 = vmul.f32 %v3803, 1.442695
        %v3835 = vpow.pop %v3834
        %v3836 = vadd.f32 %v3805, 1.0
        %v3837 = vadd.f32 %v3807, 1.0
        %v3838 = vadd.f32 %v3809, 1.0
        %v3839 = vadd.f32 %v3811, 1.0
        %v3840 = vadd.f32 %v3813, 1.0
        %v3841 = vadd.f32 %v3815, 1.0
        %v3842 = vadd.f32 %v3817, 1.0
        %v3843 = vadd.f32 %v3819, 1.0
        %v3844 = vadd.f32 %v3821, 1.0
        %v3845 = vadd.f32 %v3823, 1.0
        %v3846 = vadd.f32 %v3825, 1.0
        %v3847 = vadd.f32 %v3827, 1.0
        %v3848 = vadd.f32 %v3829, 1.0
        %v3849 = vadd.f32 %v3831, 1.0
        %v3850 = vadd.f32 %v3833, 1.0
        %v3851 = vadd.f32 %v3835, 1.0
        %v3852 = vrcp.pop %v3836
        %v3853 = vmul.f32 1.0, %v3852
        %v3854 = vrcp.pop %v3837
        %v3855 = vmul.f32 1.0, %v3854
        %v3856 = vrcp.pop %v3838
        %v3857 = vmul.f32 1.0, %v3856
        %v3858 = vrcp.pop %v3839
        %v3859 = vmul.f32 1.0, %v3858
        %v3860 = vrcp.pop %v3840
        %v3861 = vmul.f32 1.0, %v3860
        %v3862 = vrcp.pop %v3841
        %v3863 = vmul.f32 1.0, %v3862
        %v3864 = vrcp.pop %v3842
        %v3865 = vmul.f32 1.0, %v3864
        %v3866 = vrcp.pop %v3843
        %v3867 = vmul.f32 1.0, %v3866
        %v3868 = vrcp.pop %v3844
        %v3869 = vmul.f32 1.0, %v3868
        %v3870 = vrcp.pop %v3845
        %v3871 = vmul.f32 1.0, %v3870
        %v3872 = vrcp.pop %v3846
        %v3873 = vmul.f32 1.0, %v3872
        %v3874 = vrcp.pop %v3847
        %v3875 = vmul.f32 1.0, %v3874
        %v3876 = vrcp.pop %v3848
        %v3877 = vmul.f32 1.0, %v3876
        %v3878 = vrcp.pop %v3849
        %v3879 = vmul.f32 1.0, %v3878
        %v3880 = vrcp.pop %v3850
        %v3881 = vmul.f32 1.0, %v3880
        %v3882 = vrcp.pop %v3851
        %v3883 = vmul.f32 1.0, %v3882
        %vm3884 = vcmask 523264
        %3885 = vst.msk [vmem:[%s209] sm:$0xff] %vm3884, %v3853
        %3886 = vst.msk [vmem:[%s209 + $0x8] sm:$0xff] %vm3884, %v3855
        %3887 = vst.msk [vmem:[%s209 + $0x10] sm:$0xff] %vm3884, %v3857
        %3888 = vst.msk [vmem:[%s209 + $0x18] sm:$0xff] %vm3884, %v3859
        %3889 = vst.msk [vmem:[%s209 + $0x20] sm:$0xff] %vm3884, %v3861
        %3890 = vst.msk [vmem:[%s209 + $0x28] sm:$0xff] %vm3884, %v3863
        %3891 = vst.msk [vmem:[%s209 + $0x30] sm:$0xff] %vm3884, %v3865
        %3892 = vst.msk [vmem:[%s209 + $0x38] sm:$0xff] %vm3884, %v3867
        %3893 = vst.msk [vmem:[%s209 + $0x40] sm:$0xff] %vm3884, %v3869
        %3894 = vst.msk [vmem:[%s209 + $0x48] sm:$0xff] %vm3884, %v3871
        %3895 = vst.msk [vmem:[%s209 + $0x50] sm:$0xff] %vm3884, %v3873
        %3896 = vst.msk [vmem:[%s209 + $0x58] sm:$0xff] %vm3884, %v3875
        %3897 = vst.msk [vmem:[%s209 + $0x60] sm:$0xff] %vm3884, %v3877
        %3898 = vst.msk [vmem:[%s209 + $0x68] sm:$0xff] %vm3884, %v3879
        %3899 = vst.msk [vmem:[%s209 + $0x70] sm:$0xff] %vm3884, %v3881
        %3900 = vst.msk [vmem:[%s209 + $0x78] sm:$0xff] %vm3884, %v3883
        %v3901 = vld [vmem:[%s221] sm:$0xff]
        %v3902 = vld [vmem:[%s221 + $0x8] sm:$0xff]
        %v3903 = vld [vmem:[%s221 + $0x10] sm:$0xff]
        %v3904 = vld [vmem:[%s221 + $0x18] sm:$0xff]
        %v3905 = vld [vmem:[%s221 + $0x20] sm:$0xff]
        %v3906 = vld [vmem:[%s221 + $0x28] sm:$0xff]
        %v3907 = vld [vmem:[%s221 + $0x30] sm:$0xff]
        %v3908 = vld [vmem:[%s221 + $0x38] sm:$0xff]
        %v3909 = vld [vmem:[%s221 + $0x40] sm:$0xff]
        %v3910 = vld [vmem:[%s221 + $0x48] sm:$0xff]
        %v3911 = vld [vmem:[%s221 + $0x50] sm:$0xff]
        %v3912 = vld [vmem:[%s221 + $0x58] sm:$0xff]
        %v3913 = vld [vmem:[%s221 + $0x60] sm:$0xff]
        %v3914 = vld [vmem:[%s221 + $0x68] sm:$0xff]
        %v3915 = vld [vmem:[%s221 + $0x70] sm:$0xff]
        %v3916 = vld [vmem:[%s221 + $0x78] sm:$0xff]
        %v3917 = vsub.f32 0.0, %v3901
        %v3918 = vsub.f32 0.0, %v3902
        %v3919 = vsub.f32 0.0, %v3903
        %v3920 = vsub.f32 0.0, %v3904
        %v3921 = vsub.f32 0.0, %v3905
        %v3922 = vsub.f32 0.0, %v3906
        %v3923 = vsub.f32 0.0, %v3907
        %v3924 = vsub.f32 0.0, %v3908
        %v3925 = vsub.f32 0.0, %v3909
        %v3926 = vsub.f32 0.0, %v3910
        %v3927 = vsub.f32 0.0, %v3911
        %v3928 = vsub.f32 0.0, %v3912
        %v3929 = vsub.f32 0.0, %v3913
        %v3930 = vsub.f32 0.0, %v3914
        %v3931 = vsub.f32 0.0, %v3915
        %v3932 = vsub.f32 0.0, %v3916
        %v3933 = vmul.f32 %v3917, 1.442695
        %v3934 = vpow.pop %v3933
        %v3935 = vmul.f32 %v3918, 1.442695
        %v3936 = vpow.pop %v3935
        %v3937 = vmul.f32 %v3919, 1.442695
        %v3938 = vpow.pop %v3937
        %v3939 = vmul.f32 %v3920, 1.442695
        %v3940 = vpow.pop %v3939
        %v3941 = vmul.f32 %v3921, 1.442695
        %v3942 = vpow.pop %v3941
        %v3943 = vmul.f32 %v3922, 1.442695
        %v3944 = vpow.pop %v3943
        %v3945 = vmul.f32 %v3923, 1.442695
        %v3946 = vpow.pop %v3945
        %v3947 = vmul.f32 %v3924, 1.442695
        %v3948 = vpow.pop %v3947
        %v3949 = vmul.f32 %v3925, 1.442695
        %v3950 = vpow.pop %v3949
        %v3951 = vmul.f32 %v3926, 1.442695
        %v3952 = vpow.pop %v3951
        %v3953 = vmul.f32 %v3927, 1.442695
        %v3954 = vpow.pop %v3953
        %v3955 = vmul.f32 %v3928, 1.442695
        %v3956 = vpow.pop %v3955
        %v3957 = vmul.f32 %v3929, 1.442695
        %v3958 = vpow.pop %v3957
        %v3959 = vmul.f32 %v3930, 1.442695
        %v3960 = vpow.pop %v3959
        %v3961 = vmul.f32 %v3931, 1.442695
        %v3962 = vpow.pop %v3961
        %v3963 = vmul.f32 %v3932, 1.442695
        %v3964 = vpow.pop %v3963
        %v3965 = vadd.f32 %v3934, 1.0
        %v3966 = vadd.f32 %v3936, 1.0
        %v3967 = vadd.f32 %v3938, 1.0
        %v3968 = vadd.f32 %v3940, 1.0
        %v3969 = vadd.f32 %v3942, 1.0
        %v3970 = vadd.f32 %v3944, 1.0
        %v3971 = vadd.f32 %v3946, 1.0
        %v3972 = vadd.f32 %v3948, 1.0
        %v3973 = vadd.f32 %v3950, 1.0
        %v3974 = vadd.f32 %v3952, 1.0
        %v3975 = vadd.f32 %v3954, 1.0
        %v3976 = vadd.f32 %v3956, 1.0
        %v3977 = vadd.f32 %v3958, 1.0
        %v3978 = vadd.f32 %v3960, 1.0
        %v3979 = vadd.f32 %v3962, 1.0
        %v3980 = vadd.f32 %v3964, 1.0
        %v3981 = vrcp.pop %v3965
        %v3982 = vmul.f32 1.0, %v3981
        %v3983 = vrcp.pop %v3966
        %v3984 = vmul.f32 1.0, %v3983
        %v3985 = vrcp.pop %v3967
        %v3986 = vmul.f32 1.0, %v3985
        %v3987 = vrcp.pop %v3968
        %v3988 = vmul.f32 1.0, %v3987
        %v3989 = vrcp.pop %v3969
        %v3990 = vmul.f32 1.0, %v3989
        %v3991 = vrcp.pop %v3970
        %v3992 = vmul.f32 1.0, %v3991
        %v3993 = vrcp.pop %v3971
        %v3994 = vmul.f32 1.0, %v3993
        %v3995 = vrcp.pop %v3972
        %v3996 = vmul.f32 1.0, %v3995
        %v3997 = vrcp.pop %v3973
        %v3998 = vmul.f32 1.0, %v3997
        %v3999 = vrcp.pop %v3974
        %v4000 = vmul.f32 1.0, %v3999
        %v4001 = vrcp.pop %v3975
        %v4002 = vmul.f32 1.0, %v4001
        %v4003 = vrcp.pop %v3976
        %v4004 = vmul.f32 1.0, %v4003
        %v4005 = vrcp.pop %v3977
        %v4006 = vmul.f32 1.0, %v4005
        %v4007 = vrcp.pop %v3978
        %v4008 = vmul.f32 1.0, %v4007
        %v4009 = vrcp.pop %v3979
        %v4010 = vmul.f32 1.0, %v4009
        %v4011 = vrcp.pop %v3980
        %v4012 = vmul.f32 1.0, %v4011
        %4029 = vrot.lane.b32.xlu0 %v3982, 64
        %v4030 = vpop.permute.xlu0 %4029
        %4031 = vrot.lane.b32.xlu0 %v3984, 64
        %v4032 = vpop.permute.xlu0 %4031
        %4033 = vrot.lane.b32.xlu0 %v3986, 64
        %v4034 = vpop.permute.xlu0 %4033
        %4035 = vrot.lane.b32.xlu0 %v3988, 64
        %v4036 = vpop.permute.xlu0 %4035
        %4037 = vrot.lane.b32.xlu0 %v3990, 64
        %v4038 = vpop.permute.xlu0 %4037
        %4039 = vrot.lane.b32.xlu0 %v3992, 64
        %v4040 = vpop.permute.xlu0 %4039
        %4041 = vrot.lane.b32.xlu0 %v3994, 64
        %v4042 = vpop.permute.xlu0 %4041
        %4043 = vrot.lane.b32.xlu0 %v3996, 64
        %v4044 = vpop.permute.xlu0 %4043
        %4045 = vrot.lane.b32.xlu0 %v3998, 64
        %v4046 = vpop.permute.xlu0 %4045
        %4047 = vrot.lane.b32.xlu0 %v4000, 64
        %v4048 = vpop.permute.xlu0 %4047
        %4049 = vrot.lane.b32.xlu0 %v4002, 64
        %v4050 = vpop.permute.xlu0 %4049
        %4051 = vrot.lane.b32.xlu0 %v4004, 64
        %v4052 = vpop.permute.xlu0 %4051
        %4053 = vrot.lane.b32.xlu0 %v4006, 64
        %v4054 = vpop.permute.xlu0 %4053
        %4055 = vrot.lane.b32.xlu0 %v4008, 64
        %v4056 = vpop.permute.xlu0 %4055
        %4057 = vrot.lane.b32.xlu0 %v4010, 64
        %v4058 = vpop.permute.xlu0 %4057
        %4059 = vrot.lane.b32.xlu0 %v4012, 64
        %v4060 = vpop.permute.xlu0 %4059
        %vm4077 = vcmask 1048064
        %4078 = vst.msk [vmem:[%s209] sm:$0xff] %vm4077, %v4030
        %4079 = vst.msk [vmem:[%s209 + $0x8] sm:$0xff] %vm4077, %v4032
        %4080 = vst.msk [vmem:[%s209 + $0x10] sm:$0xff] %vm4077, %v4034
        %4081 = vst.msk [vmem:[%s209 + $0x18] sm:$0xff] %vm4077, %v4036
        %4082 = vst.msk [vmem:[%s209 + $0x20] sm:$0xff] %vm4077, %v4038
        %4083 = vst.msk [vmem:[%s209 + $0x28] sm:$0xff] %vm4077, %v4040
        %4084 = vst.msk [vmem:[%s209 + $0x30] sm:$0xff] %vm4077, %v4042
        %4085 = vst.msk [vmem:[%s209 + $0x38] sm:$0xff] %vm4077, %v4044
        %4086 = vst.msk [vmem:[%s209 + $0x40] sm:$0xff] %vm4077, %v4046
        %4087 = vst.msk [vmem:[%s209 + $0x48] sm:$0xff] %vm4077, %v4048
        %4088 = vst.msk [vmem:[%s209 + $0x50] sm:$0xff] %vm4077, %v4050
        %4089 = vst.msk [vmem:[%s209 + $0x58] sm:$0xff] %vm4077, %v4052
        %4090 = vst.msk [vmem:[%s209 + $0x60] sm:$0xff] %vm4077, %v4054
        %4091 = vst.msk [vmem:[%s209 + $0x68] sm:$0xff] %vm4077, %v4056
        %4092 = vst.msk [vmem:[%s209 + $0x70] sm:$0xff] %vm4077, %v4058
        %4093 = vst.msk [vmem:[%s209 + $0x78] sm:$0xff] %vm4077, %v4060
        %s4094 = sand.u32 %s120, 1
        %s4095 = scalar_lea.sflag [#allocation3], %s4094
        %s4096 = sand.u32 %s120, 1
        %s4097 = smul.addr %s4096, 128
        %s4098 = scalar_lea.vmem [#allocation2], %s4097
        // Predicated region
        $region37: #{tpu_custom_call.1} parent=35 // pred_check
          %p4099 = pneg %p130
        $region38: #{tpu_custom_call.1} parent=35 // pred_check_branch
          %4101 = sbr.rel (%p4099) target = $region40
        $region39: #{tpu_custom_call.1} parent=35 // pred_region
          %s4102 = smul.u32 16, %s18
          %s4104 = ssub.s32 2048, 2048
          %4105 = vsyncadd %s4095, %s4104
          %s4106 = smul.addr %s4102, 128
          %s4107 = scalar_lea.hbm %s4, %s4106
          %s4108 = sshll.u32 %s4098, 4
          %s4109 = int_to_ptr.vmem [resolvable:$true] %s4108
          %4114 = dma.vmem_to_hbm [thread:$0]  %s4109, 2048, %s4107, %s4095, 128, 128, 8
        $region40: #{tpu_custom_call.1} parent=35 // pred_fallthru
          _
      $region36: #{tpu_custom_call.1} parent=5 // pred_fallthru
        _
      %p4115 = scmp.le.s32.totalorder 2, %s13
      // Predicated region
      $region41: #{tpu_custom_call.1} parent=5 // pred_check
        %p4116 = pneg %p4115
      $region42: #{tpu_custom_call.1} parent=5 // pred_check_branch
        %4118 = sbr.rel (%p4116) target = $region44
      $region43: #{tpu_custom_call.1} parent=5 // pred_region
        %s4119 = ssub.s32 %s13, 2
        // Predicated region
        $region45: #{tpu_custom_call.1} parent=43 // pred_check
          %p4120 = pneg %p136
        $region46: #{tpu_custom_call.1} parent=43 // pred_check_branch
          %4122 = sbr.rel (%p4120) target = $region48
        $region47: #{tpu_custom_call.1} parent=43 // pred_region
          %s4123 = sand.u32 %s121, 1
          %s4124 = scalar_lea.sflag [#allocation3], %s4123
          %s4125 = sand.u32 %s121, 1
          %s4126 = smul.addr %s4125, 128
          %s4127 = scalar_lea.vmem [#allocation2], %s4126
          %4128 = dma.done %s4124, 2048
        $region48: #{tpu_custom_call.1} parent=43 // pred_fallthru
          _
      $region44: #{tpu_custom_call.1} parent=5 // pred_fallthru
        _
    $region6: #{tpu_custom_call.1} parent=1 // loop_footer
      %s17 = sadd.s32 1, %s13
    $region7: #{tpu_custom_call.1} parent=1 // loop_footer_branch
      %12 = sbr.rel target = $region3
    $region8: #{tpu_custom_call.1} parent=1 // loop_exit
      _
    %4129 = vsyncpa [#allocation3], 1
    %s4130 = scalar_lea.sflag [#allocation3], 1
    %4131 = vsyncpa %s4130, 1

</llo_original>
